<compile_context>
chip_gen: v6e
topology: v6e:2x2x1
jax: 0.10.0
libtpu: 0.0.40
codegen_flags: <defaults>
</compile_context>

<pallas_src>
import functools

import jax
import jax.numpy as jnp
from jax.experimental import pallas as pl
from jax.experimental.pallas import tpu as pltpu


def mlp_kernel(x_ref, mask_ref, wc_ref, dwb_ref, w2_ref, b2_ref, o_ref, *,
               W, approx_gelu):
    """One block of `block_b` images per grid step, tokens flattened.

    x_ref   : (M, Cin+1)     bf16  flat tokens + trailing ones-column
    mask_ref: (M, 4)         f32   [top, bottom, left, right] neighbor valid
    wc_ref  : (9, Cin+1, Ch) bf16  per-tap fused fc1 weights (+ bias row)
    dwb_ref : (1, Ch)        f32   depthwise-conv bias
    w2_ref  : (Ch, Cout)     bf16  fc2 weight
    b2_ref  : (1, Cout)      f32   fc2 bias
    o_ref   : (M, Cout)      f32
    """
    M = x_ref.shape[0]
    xi = x_ref[...].astype(jnp.float32)                 # (M, Cin+1)
    top = mask_ref[:, 0:1]                              # dh = -1 valid
    bot = mask_ref[:, 1:2]                              # dh = +1 valid
    left = mask_ref[:, 2:3]                             # dw = -1 valid
    right = mask_ref[:, 3:4]                            # dw = +1 valid

    # roll(x, s)[n] = x[n - s].  Column (+-1) shifts are the only unaligned
    # sublane rolls; the +-W row shifts are whole-vreg moves when W % 8 == 0.
    # Column masks are folded into xl/xr once (column index is invariant
    # under a +-W shift, so they stay correct after the row roll).
    up = W % M                                          # -> x[n - W]  (dh=-1)
    dn = (M - W) % M                                    # -> x[n + W]  (dh=+1)
    xl = pltpu.roll(xi, shift=1, axis=0) * left         # x[n - 1], col-masked
    xr = pltpu.roll(xi, shift=(M - 1) % M, axis=0) * right   # x[n + 1]

    def mm(v, k):   # masked/shifted tokens @ fused tap-k weights (MXU, f32 acc)
        return jnp.dot(v.astype(jnp.bfloat16), wc_ref[k],
                       preferred_element_type=jnp.float32)

    # tap index k = (dh+1)*3 + (dw+1)
    acc = mm(xi, 4) + dwb_ref[...]                                   # center
    acc += mm(xl, 3) + mm(xr, 5)                                     # dh = 0
    acc += (mm(pltpu.roll(xl, shift=up, axis=0) * top, 0)
            + mm(pltpu.roll(xi, shift=up, axis=0) * top, 1)
            + mm(pltpu.roll(xr, shift=up, axis=0) * top, 2))         # dh = -1
    acc += (mm(pltpu.roll(xl, shift=dn, axis=0) * bot, 6)
            + mm(pltpu.roll(xi, shift=dn, axis=0) * bot, 7)
            + mm(pltpu.roll(xr, shift=dn, axis=0) * bot, 8))         # dh = +1

    # GELU: tanh form routes the transcendental to the EUP (frees the VALU).
    a = jax.nn.gelu(acc, approximate=approx_gelu)

    # fc2 (MXU; dropout p=0.0 -> identity)
    out = jnp.dot(a.astype(w2_ref.dtype), w2_ref[...],
                  preferred_element_type=jnp.float32) + b2_ref[...]
    o_ref[...] = out.astype(o_ref.dtype)


def _choose_block_b(B, N, Cin, Ch, Cout, *, target_rows=2048,
                    vmem_budget=40 * (1 << 20)):
    """Largest batch block whose working set fits a conservative VMEM budget,
    aiming for ~target_rows tokens/step, keeping >= 2 grid steps when B >= 2
    so the batch axis can shard across v7x's two TensorCores."""
    def est_bytes(bb):
        M = bb * N
        return (2 * M * (Cin + 1) * 2            # double-buffered bf16 input
                + 2 * M * Cout * 4               # double-buffered f32 output
                + 8 * M * max(Ch, Cin + 1) * 4   # live f32 temporaries
                + M * 4 * 4)                     # boundary masks

    divisors = [d for d in range(1, B + 1)
                if B % d == 0 and est_bytes(d) <= vmem_budget]
    if not divisors:
        return 1
    reach = [d for d in divisors if d * N >= target_rows]
    bb = min(reach) if reach else max(divisors)
    if B >= 2 and B // bb < 2:
        two_step = [d for d in divisors if B // d >= 2]
        if two_step:
            bb = max(two_step)
    return bb


def mlp_pallas(x, w1, b1, dwk, dwb, w2, b2, H, W, *, block_b=None,
               approx_gelu=True):
    """x: (B, N, Cin); w1: (Cin, Ch); b1: (1, Ch); dwk: (9, Ch) with row index
    (dh+1)*3 + (dw+1); dwb: (1, Ch); w2: (Ch, Cout); b2: (1, Cout)."""
    B, N, Cin = x.shape
    assert N == H * W
    Ch = w1.shape[1]
    Cout = w2.shape[1]
    if block_b is None:
        block_b = _choose_block_b(B, N, Cin, Ch, Cout)
    assert B % block_b == 0
    steps = B // block_b
    M = block_b * N
    assert steps == 1 or M % 8 == 0, "token block must be sublane aligned"

    # Fused per-tap fc1 weights: wc[k] = [W1 * tap_k ; b1 * tap_k].
    wc = jnp.concatenate(
        [w1[None, :, :] * dwk[:, None, :], (b1 * dwk)[:, None, :]],
        axis=1).astype(jnp.bfloat16)                     # (9, Cin+1, Ch)

    # Flat bf16 tokens with a constant ones-column (carries the fc1 bias,
    # including its edge-dependent contribution, through the per-tap masks).
    xf = x.reshape(B * N, Cin)
    xf = jnp.concatenate([xf, jnp.ones((B * N, 1), xf.dtype)],
                         axis=-1).astype(jnp.bfloat16)   # (B*N, Cin+1)

    # Per-token neighbor-validity masks (grid-step invariant, computed once
    # in the wrapper -> no in-kernel int div/mod).
    ids = jnp.arange(M, dtype=jnp.int32)
    w_ids = ids % W
    r_ids = (ids % N) // W
    masks = jnp.stack(
        [r_ids >= 1, r_ids <= H - 2, w_ids >= 1, w_ids <= W - 2],
        axis=-1).astype(jnp.float32)                     # (M, 4)

    w2b = w2.astype(jnp.bfloat16)

    # Explicit scoped-VMEM budget (default 16/32 MiB gates tile size; cap at
    # 64 MiB so it is also valid on v7x's 64 MiB physical VMEM).
    est = (2 * M * (Cin + 1) * 2 + 2 * M * Cout * 4 + M * 4 * 4
           + 8 * M * max(Ch, Cin + 1) * 4
           + 2 * (9 * (Cin + 1) * Ch + Ch * Cout) * 2 + (Ch + Cout) * 4)
    vmem_limit = int(min(64 * (1 << 20), max(32 * (1 << 20), 2 * est)))

    kernel = functools.partial(mlp_kernel, W=W, approx_gelu=approx_gelu)

    # Weights/biases/taps use constant index_maps (block-invariant operands;
    # default pipelining keeps a single resident copy).
    out_flat = pl.pallas_call(
        kernel,
        out_shape=jax.ShapeDtypeStruct((B * N, Cout), jnp.float32),
        grid_spec=pltpu.PrefetchScalarGridSpec(
            num_scalar_prefetch=0,
            grid=(steps,),
            in_specs=[
                pl.BlockSpec((M, Cin + 1), lambda i: (i, 0)),
                pl.BlockSpec((M, 4), lambda i: (0, 0)),
                pl.BlockSpec((9, Cin + 1, Ch), lambda i: (0, 0, 0)),
                pl.BlockSpec((1, Ch), lambda i: (0, 0)),
                pl.BlockSpec((Ch, Cout), lambda i: (0, 0)),
                pl.BlockSpec((1, Cout), lambda i: (0, 0)),
            ],
            out_specs=pl.BlockSpec((M, Cout), lambda i: (i, 0)),
        ),
        compiler_params=pltpu.CompilerParams(
            dimension_semantics=("parallel",),
            vmem_limit_bytes=vmem_limit),
    )(xf, masks, wc, dwb, w2b, b2)
    return out_flat.reshape(B, N, Cout)


def mlp_reference(x, w1, b1, dwk, dwb, w2, b2, H, W):
    """Plain-JAX reference (same math as the PyTorch module, f32, exact GELU)."""
    B, N, Cin = x.shape
    Ch = w1.shape[1]
    h = jnp.einsum("bnc,cd->bnd", x, w1,
                   precision=jax.lax.Precision.HIGHEST) + b1
    h2d = h.reshape(B, H, W, Ch)
    k = dwk.reshape(3, 3, Ch)[:, :, None, :]            # HWIO, in_per_group=1
    y = jax.lax.conv_general_dilated(
        h2d, k, window_strides=(1, 1), padding="SAME",
        dimension_numbers=("NHWC", "HWIO", "NHWC"),
        feature_group_count=Ch,
        precision=jax.lax.Precision.HIGHEST) + dwb
    a = jax.nn.gelu(y, approximate=False)
    out = jnp.einsum("bnd,de->bne", a.reshape(B, N, Ch), w2,
                     precision=jax.lax.Precision.HIGHEST) + b2
    return out


if __name__ == "__main__":
    B, H, W = 2, 16, 16
    N = H * W
    in_features, hidden_features, out_features = 32, 64, 32

    key = jax.random.PRNGKey(0)
    kx, k1, k2, k3, k4, k5, k6 = jax.random.split(key, 7)

    x = jax.random.normal(kx, (B, N, in_features), jnp.float32)

    # torch Linear weight is (out, in); we store the transposed (in, out)
    # layout directly.  Depthwise conv weight (Ch,1,3,3) is stored as (9, Ch)
    # with row index (dh+1)*3 + (dw+1).
    w1 = jax.random.normal(k1, (in_features, hidden_features), jnp.float32) / jnp.sqrt(in_features)
    b1 = 0.01 * jax.random.normal(k2, (1, hidden_features), jnp.float32)
    dwk = jax.random.normal(k3, (9, hidden_features), jnp.float32) / 3.0
    dwb = 0.01 * jax.random.normal(k4, (1, hidden_features), jnp.float32)
    w2 = jax.random.normal(k5, (hidden_features, out_features), jnp.float32) / jnp.sqrt(hidden_features)
    b2 = 0.01 * jax.random.normal(k6, (1, out_features), jnp.float32)

    ref = jax.block_until_ready(mlp_reference(x, w1, b1, dwk, dwb, w2, b2, H, W))

    # Auto block_b: keeps >= 2 grid steps at this small batch (block_b=1).
    out = jax.block_until_ready(mlp_pallas(x, w1, b1, dwk, dwb, w2, b2, H, W))
    assert out.shape == (B, N, out_features)
    err = float(jnp.max(jnp.abs(out - ref)))
    assert jnp.allclose(out, ref, atol=2e-2, rtol=2e-2), f"max abs err {err}"

    # Multi-image block (block_b=2, single step) to lock in roll/mask
    # correctness across image boundaries inside one token block.
    out2 = jax.block_until_ready(
        mlp_pallas(x, w1, b1, dwk, dwb, w2, b2, H, W, block_b=2))
    err2 = float(jnp.max(jnp.abs(out2 - ref)))
    assert jnp.allclose(out2, ref, atol=2e-2, rtol=2e-2), f"max abs err {err2}"

    print("KERNEL_OK")
</pallas_src>

<mosaic_0001>
module attributes {stable_mosaic.version = 11 : i64} {
  func.func @mlp_kernel(%arg0: i32, %arg1: memref<256x33xbf16, #tpu.memory_space<vmem>>, %arg2: memref<256x4xf32, #tpu.memory_space<vmem>>, %arg3: memref<9x33x64xbf16, #tpu.memory_space<vmem>>, %arg4: memref<1x64xf32, #tpu.memory_space<vmem>>, %arg5: memref<64x32xbf16, #tpu.memory_space<vmem>>, %arg6: memref<1x32xf32, #tpu.memory_space<vmem>>, %arg7: memref<256x32xf32, #tpu.memory_space<vmem>>) attributes {dimension_semantics = [#tpu.dimension_semantics<parallel>], iteration_bounds = array<i64: 2>, scalar_prefetch = 0 : i64, scratch_operands = 0 : i64, tpu.core_type = #tpu.core_type<tc>, window_params = [{transform_indices = @transform_0, window_bounds = array<i64: 256, 33>}, {pipeline_mode = #tpu.pipeline_mode<synchronous>, transform_indices = @transform_1, window_bounds = array<i64: 256, 4>}, {pipeline_mode = #tpu.pipeline_mode<synchronous>, transform_indices = @transform_2, window_bounds = array<i64: 9, 33, 64>}, {pipeline_mode = #tpu.pipeline_mode<synchronous>, transform_indices = @transform_3, window_bounds = array<i64: 1, 64>}, {pipeline_mode = #tpu.pipeline_mode<synchronous>, transform_indices = @transform_4, window_bounds = array<i64: 64, 32>}, {pipeline_mode = #tpu.pipeline_mode<synchronous>, transform_indices = @transform_5, window_bounds = array<i64: 1, 32>}, {transform_indices = @transform_6, window_bounds = array<i64: 256, 32>}]} {
    %c0 = arith.constant 0 : index
    %c0_0 = arith.constant 0 : index
    %0 = vector.load %arg1[%c0, %c0_0] : memref<256x33xbf16, #tpu.memory_space<vmem>>, vector<256x33xbf16>
    %1 = arith.extf %0 : vector<256x33xbf16> to vector<256x33xf32>
    %c0_1 = arith.constant 0 : index
    %c0_2 = arith.constant 0 : index
    %2 = vector.load %arg2[%c0_1, %c0_2] : memref<256x4xf32, #tpu.memory_space<vmem>>, vector<256x1xf32>
    %c0_3 = arith.constant 0 : index
    %c1 = arith.constant 1 : index
    %3 = vector.load %arg2[%c0_3, %c1] : memref<256x4xf32, #tpu.memory_space<vmem>>, vector<256x1xf32>
    %c0_4 = arith.constant 0 : index
    %c2 = arith.constant 2 : index
    %4 = vector.load %arg2[%c0_4, %c2] : memref<256x4xf32, #tpu.memory_space<vmem>>, vector<256x1xf32>
    %c0_5 = arith.constant 0 : index
    %c3 = arith.constant 3 : index
    %5 = vector.load %arg2[%c0_5, %c3] : memref<256x4xf32, #tpu.memory_space<vmem>>, vector<256x1xf32>
    %c1_i32 = arith.constant 1 : i32
    %6 = tpu.dynamic_rotate %1 by %c1_i32 dim 0 : vector<256x33xf32>, i32 -> vector<256x33xf32>
    %7 = vector.broadcast %4 : vector<256x1xf32> to vector<256x33xf32>
    %8 = arith.mulf %6, %7 : vector<256x33xf32>
    %c255_i32 = arith.constant 255 : i32
    %9 = tpu.dynamic_rotate %1 by %c255_i32 dim 0 : vector<256x33xf32>, i32 -> vector<256x33xf32>
    %10 = vector.broadcast %5 : vector<256x1xf32> to vector<256x33xf32>
    %11 = arith.mulf %9, %10 : vector<256x33xf32>
    %12 = arith.truncf %1 : vector<256x33xf32> to vector<256x33xbf16>
    %c4 = arith.constant 4 : index
    %c0_6 = arith.constant 0 : index
    %c0_7 = arith.constant 0 : index
    %13 = vector.load %arg3[%c4, %c0_6, %c0_7] : memref<9x33x64xbf16, #tpu.memory_space<vmem>>, vector<1x33x64xbf16>
    %14 = vector.shape_cast %13 : vector<1x33x64xbf16> to vector<33x64xbf16>
    %cst = arith.constant dense<0.000000e+00> : vector<256x64xf32>
    %15 = tpu.matmul %12, %14, %cst {dimension_numbers = #tpu.dot_dimension_numbers<[1], [0], [0], [1], [0, 0, 1, 1], [], []>} : vector<256x33xbf16>, vector<33x64xbf16>, vector<256x64xf32> -> vector<256x64xf32>
    %c0_8 = arith.constant 0 : index
    %c0_9 = arith.constant 0 : index
    %16 = vector.load %arg4[%c0_8, %c0_9] : memref<1x64xf32, #tpu.memory_space<vmem>>, vector<1x64xf32>
    %17 = vector.broadcast %16 : vector<1x64xf32> to vector<256x64xf32>
    %18 = arith.addf %15, %17 : vector<256x64xf32>
    %19 = arith.truncf %8 : vector<256x33xf32> to vector<256x33xbf16>
    %c3_10 = arith.constant 3 : index
    %c0_11 = arith.constant 0 : index
    %c0_12 = arith.constant 0 : index
    %20 = vector.load %arg3[%c3_10, %c0_11, %c0_12] : memref<9x33x64xbf16, #tpu.memory_space<vmem>>, vector<1x33x64xbf16>
    %21 = vector.shape_cast %20 : vector<1x33x64xbf16> to vector<33x64xbf16>
    %cst_13 = arith.constant dense<0.000000e+00> : vector<256x64xf32>
    %22 = tpu.matmul %19, %21, %cst_13 {dimension_numbers = #tpu.dot_dimension_numbers<[1], [0], [0], [1], [0, 0, 1, 1], [], []>} : vector<256x33xbf16>, vector<33x64xbf16>, vector<256x64xf32> -> vector<256x64xf32>
    %23 = arith.truncf %11 : vector<256x33xf32> to vector<256x33xbf16>
    %c5 = arith.constant 5 : index
    %c0_14 = arith.constant 0 : index
    %c0_15 = arith.constant 0 : index
    %24 = vector.load %arg3[%c5, %c0_14, %c0_15] : memref<9x33x64xbf16, #tpu.memory_space<vmem>>, vector<1x33x64xbf16>
    %25 = vector.shape_cast %24 : vector<1x33x64xbf16> to vector<33x64xbf16>
    %cst_16 = arith.constant dense<0.000000e+00> : vector<256x64xf32>
    %26 = tpu.matmul %23, %25, %cst_16 {dimension_numbers = #tpu.dot_dimension_numbers<[1], [0], [0], [1], [0, 0, 1, 1], [], []>} : vector<256x33xbf16>, vector<33x64xbf16>, vector<256x64xf32> -> vector<256x64xf32>
    %27 = arith.addf %22, %26 : vector<256x64xf32>
    %28 = arith.addf %18, %27 : vector<256x64xf32>
    %c16_i32 = arith.constant 16 : i32
    %29 = tpu.dynamic_rotate %8 by %c16_i32 dim 0 : vector<256x33xf32>, i32 -> vector<256x33xf32>
    %30 = vector.broadcast %2 : vector<256x1xf32> to vector<256x33xf32>
    %31 = arith.mulf %29, %30 : vector<256x33xf32>
    %32 = arith.truncf %31 : vector<256x33xf32> to vector<256x33xbf16>
    %c0_17 = arith.constant 0 : index
    %c0_18 = arith.constant 0 : index
    %c0_19 = arith.constant 0 : index
    %33 = vector.load %arg3[%c0_17, %c0_18, %c0_19] : memref<9x33x64xbf16, #tpu.memory_space<vmem>>, vector<1x33x64xbf16>
    %34 = vector.shape_cast %33 : vector<1x33x64xbf16> to vector<33x64xbf16>
    %cst_20 = arith.constant dense<0.000000e+00> : vector<256x64xf32>
    %35 = tpu.matmul %32, %34, %cst_20 {dimension_numbers = #tpu.dot_dimension_numbers<[1], [0], [0], [1], [0, 0, 1, 1], [], []>} : vector<256x33xbf16>, vector<33x64xbf16>, vector<256x64xf32> -> vector<256x64xf32>
    %c16_i32_21 = arith.constant 16 : i32
    %36 = tpu.dynamic_rotate %1 by %c16_i32_21 dim 0 : vector<256x33xf32>, i32 -> vector<256x33xf32>
    %37 = vector.broadcast %2 : vector<256x1xf32> to vector<256x33xf32>
    %38 = arith.mulf %36, %37 : vector<256x33xf32>
    %39 = arith.truncf %38 : vector<256x33xf32> to vector<256x33xbf16>
    %c1_22 = arith.constant 1 : index
    %c0_23 = arith.constant 0 : index
    %c0_24 = arith.constant 0 : index
    %40 = vector.load %arg3[%c1_22, %c0_23, %c0_24] : memref<9x33x64xbf16, #tpu.memory_space<vmem>>, vector<1x33x64xbf16>
    %41 = vector.shape_cast %40 : vector<1x33x64xbf16> to vector<33x64xbf16>
    %cst_25 = arith.constant dense<0.000000e+00> : vector<256x64xf32>
    %42 = tpu.matmul %39, %41, %cst_25 {dimension_numbers = #tpu.dot_dimension_numbers<[1], [0], [0], [1], [0, 0, 1, 1], [], []>} : vector<256x33xbf16>, vector<33x64xbf16>, vector<256x64xf32> -> vector<256x64xf32>
    %43 = arith.addf %35, %42 : vector<256x64xf32>
    %c16_i32_26 = arith.constant 16 : i32
    %44 = tpu.dynamic_rotate %11 by %c16_i32_26 dim 0 : vector<256x33xf32>, i32 -> vector<256x33xf32>
    %45 = vector.broadcast %2 : vector<256x1xf32> to vector<256x33xf32>
    %46 = arith.mulf %44, %45 : vector<256x33xf32>
    %47 = arith.truncf %46 : vector<256x33xf32> to vector<256x33xbf16>
    %c2_27 = arith.constant 2 : index
    %c0_28 = arith.constant 0 : index
    %c0_29 = arith.constant 0 : index
    %48 = vector.load %arg3[%c2_27, %c0_28, %c0_29] : memref<9x33x64xbf16, #tpu.memory_space<vmem>>, vector<1x33x64xbf16>
    %49 = vector.shape_cast %48 : vector<1x33x64xbf16> to vector<33x64xbf16>
    %cst_30 = arith.constant dense<0.000000e+00> : vector<256x64xf32>
    %50 = tpu.matmul %47, %49, %cst_30 {dimension_numbers = #tpu.dot_dimension_numbers<[1], [0], [0], [1], [0, 0, 1, 1], [], []>} : vector<256x33xbf16>, vector<33x64xbf16>, vector<256x64xf32> -> vector<256x64xf32>
    %51 = arith.addf %43, %50 : vector<256x64xf32>
    %52 = arith.addf %28, %51 : vector<256x64xf32>
    %c240_i32 = arith.constant 240 : i32
    %53 = tpu.dynamic_rotate %8 by %c240_i32 dim 0 : vector<256x33xf32>, i32 -> vector<256x33xf32>
    %54 = vector.broadcast %3 : vector<256x1xf32> to vector<256x33xf32>
    %55 = arith.mulf %53, %54 : vector<256x33xf32>
    %56 = arith.truncf %55 : vector<256x33xf32> to vector<256x33xbf16>
    %c6 = arith.constant 6 : index
    %c0_31 = arith.constant 0 : index
    %c0_32 = arith.constant 0 : index
    %57 = vector.load %arg3[%c6, %c0_31, %c0_32] : memref<9x33x64xbf16, #tpu.memory_space<vmem>>, vector<1x33x64xbf16>
    %58 = vector.shape_cast %57 : vector<1x33x64xbf16> to vector<33x64xbf16>
    %cst_33 = arith.constant dense<0.000000e+00> : vector<256x64xf32>
    %59 = tpu.matmul %56, %58, %cst_33 {dimension_numbers = #tpu.dot_dimension_numbers<[1], [0], [0], [1], [0, 0, 1, 1], [], []>} : vector<256x33xbf16>, vector<33x64xbf16>, vector<256x64xf32> -> vector<256x64xf32>
    %c240_i32_34 = arith.constant 240 : i32
    %60 = tpu.dynamic_rotate %1 by %c240_i32_34 dim 0 : vector<256x33xf32>, i32 -> vector<256x33xf32>
    %61 = vector.broadcast %3 : vector<256x1xf32> to vector<256x33xf32>
    %62 = arith.mulf %60, %61 : vector<256x33xf32>
    %63 = arith.truncf %62 : vector<256x33xf32> to vector<256x33xbf16>
    %c7 = arith.constant 7 : index
    %c0_35 = arith.constant 0 : index
    %c0_36 = arith.constant 0 : index
    %64 = vector.load %arg3[%c7, %c0_35, %c0_36] : memref<9x33x64xbf16, #tpu.memory_space<vmem>>, vector<1x33x64xbf16>
    %65 = vector.shape_cast %64 : vector<1x33x64xbf16> to vector<33x64xbf16>
    %cst_37 = arith.constant dense<0.000000e+00> : vector<256x64xf32>
    %66 = tpu.matmul %63, %65, %cst_37 {dimension_numbers = #tpu.dot_dimension_numbers<[1], [0], [0], [1], [0, 0, 1, 1], [], []>} : vector<256x33xbf16>, vector<33x64xbf16>, vector<256x64xf32> -> vector<256x64xf32>
    %67 = arith.addf %59, %66 : vector<256x64xf32>
    %c240_i32_38 = arith.constant 240 : i32
    %68 = tpu.dynamic_rotate %11 by %c240_i32_38 dim 0 : vector<256x33xf32>, i32 -> vector<256x33xf32>
    %69 = vector.broadcast %3 : vector<256x1xf32> to vector<256x33xf32>
    %70 = arith.mulf %68, %69 : vector<256x33xf32>
    %71 = arith.truncf %70 : vector<256x33xf32> to vector<256x33xbf16>
    %c8 = arith.constant 8 : index
    %c0_39 = arith.constant 0 : index
    %c0_40 = arith.constant 0 : index
    %72 = vector.load %arg3[%c8, %c0_39, %c0_40] : memref<9x33x64xbf16, #tpu.memory_space<vmem>>, vector<1x33x64xbf16>
    %73 = vector.shape_cast %72 : vector<1x33x64xbf16> to vector<33x64xbf16>
    %cst_41 = arith.constant dense<0.000000e+00> : vector<256x64xf32>
    %74 = tpu.matmul %71, %73, %cst_41 {dimension_numbers = #tpu.dot_dimension_numbers<[1], [0], [0], [1], [0, 0, 1, 1], [], []>} : vector<256x33xbf16>, vector<33x64xbf16>, vector<256x64xf32> -> vector<256x64xf32>
    %75 = arith.addf %67, %74 : vector<256x64xf32>
    %76 = arith.addf %52, %75 : vector<256x64xf32>
    %77 = arith.mulf %76, %76 : vector<256x64xf32>
    %78 = arith.mulf %76, %77 : vector<256x64xf32>
    %cst_42 = arith.constant 4.471500e-02 : f32
    %79 = vector.broadcast %cst_42 : f32 to vector<256x64xf32>
    %80 = arith.mulf %79, %78 : vector<256x64xf32>
    %81 = arith.addf %76, %80 : vector<256x64xf32>
    %cst_43 = arith.constant 0.797884583 : f32
    %82 = vector.broadcast %cst_43 : f32 to vector<256x64xf32>
    %83 = arith.mulf %82, %81 : vector<256x64xf32>
    %84 = math.tanh %83 : vector<256x64xf32>
    %cst_44 = arith.constant 1.000000e+00 : f32
    %85 = vector.broadcast %cst_44 : f32 to vector<256x64xf32>
    %86 = arith.addf %85, %84 : vector<256x64xf32>
    %cst_45 = arith.constant 5.000000e-01 : f32
    %87 = vector.broadcast %cst_45 : f32 to vector<256x64xf32>
    %88 = arith.mulf %87, %86 : vector<256x64xf32>
    %89 = arith.mulf %76, %88 : vector<256x64xf32>
    %90 = arith.truncf %89 : vector<256x64xf32> to vector<256x64xbf16>
    %c0_46 = arith.constant 0 : index
    %c0_47 = arith.constant 0 : index
    %91 = vector.load %arg5[%c0_46, %c0_47] : memref<64x32xbf16, #tpu.memory_space<vmem>>, vector<64x32xbf16>
    %cst_48 = arith.constant dense<0.000000e+00> : vector<256x32xf32>
    %92 = tpu.matmul %90, %91, %cst_48 {dimension_numbers = #tpu.dot_dimension_numbers<[1], [0], [0], [1], [0, 0, 1, 1], [], []>} : vector<256x64xbf16>, vector<64x32xbf16>, vector<256x32xf32> -> vector<256x32xf32>
    %c0_49 = arith.constant 0 : index
    %c0_50 = arith.constant 0 : index
    %93 = vector.load %arg6[%c0_49, %c0_50] : memref<1x32xf32, #tpu.memory_space<vmem>>, vector<1x32xf32>
    %94 = vector.broadcast %93 : vector<1x32xf32> to vector<256x32xf32>
    %95 = arith.addf %92, %94 : vector<256x32xf32>
    %c0_51 = arith.constant 0 : index
    %c0_52 = arith.constant 0 : index
    %96 = vector.load %arg7[%c0_51, %c0_52] : memref<256x32xf32, #tpu.memory_space<vmem>>, vector<256x32xf32>
    tpu.vector_store %arg7[%c0_51, %c0_52], %95 {strides = array<i32>} : memref<256x32xf32, #tpu.memory_space<vmem>>, vector<256x32xf32>,
    return
  }
  func.func @transform_0(%arg0: i32) -> (i32, i32) {
    %c0_i32 = arith.constant 0 : i32
    %c0_i32_0 = arith.constant 0 : i32
    return %arg0, %c0_i32 : i32, i32
  }
  func.func @transform_1(%arg0: i32) -> (i32, i32) {
    %c0_i32 = arith.constant 0 : i32
    %c0_i32_0 = arith.constant 0 : i32
    %c0_i32_1 = arith.constant 0 : i32
    return %c0_i32, %c0_i32_0 : i32, i32
  }
  func.func @transform_2(%arg0: i32) -> (i32, i32, i32) {
    %c0_i32 = arith.constant 0 : i32
    %c0_i32_0 = arith.constant 0 : i32
    %c0_i32_1 = arith.constant 0 : i32
    %c0_i32_2 = arith.constant 0 : i32
    return %c0_i32, %c0_i32_0, %c0_i32_1 : i32, i32, i32
  }
  func.func @transform_3(%arg0: i32) -> (i32, i32) {
    %c0_i32 = arith.constant 0 : i32
    %c0_i32_0 = arith.constant 0 : i32
    %c0_i32_1 = arith.constant 0 : i32
    return %c0_i32, %c0_i32_0 : i32, i32
  }
  func.func @transform_4(%arg0: i32) -> (i32, i32) {
    %c0_i32 = arith.constant 0 : i32
    %c0_i32_0 = arith.constant 0 : i32
    %c0_i32_1 = arith.constant 0 : i32
    return %c0_i32, %c0_i32_0 : i32, i32
  }
  func.func @transform_5(%arg0: i32) -> (i32, i32) {
    %c0_i32 = arith.constant 0 : i32
    %c0_i32_0 = arith.constant 0 : i32
    %c0_i32_1 = arith.constant 0 : i32
    return %c0_i32, %c0_i32_0 : i32, i32
  }
  func.func @transform_6(%arg0: i32) -> (i32, i32) {
    %c0_i32 = arith.constant 0 : i32
    %c0_i32_0 = arith.constant 0 : i32
    return %arg0, %c0_i32 : i32, i32
  }
}

</mosaic_0001>

<llo_original>
// kernel: tpu_custom_call.1
$region0: #{tpu_custom_call.1}
  #allocation0 [shape = 'u32[]', space=smem, size = 0x4, offset = 0x4, fixed_abs, tag = 'smem constant byte address 0x4 - core index']
  #allocation1 [shape = 'u32[144,128]{1,0:T(1,128)}', space=vmem, size = 0x12000, scoped, tag = 'internal scratch']
  %s0 = inlined_call_operand.vmem [shape: bf16[512,33], index: 0, kind: input, shape index: {}]
  %s1 = inlined_call_operand.vmem [shape: f32[256,4], index: 1, kind: input, shape index: {}]
  %s2 = inlined_call_operand.vmem [shape: bf16[9,33,64], index: 2, kind: input, shape index: {}]
  %s3 = inlined_call_operand.vmem [shape: f32[1,64], index: 3, kind: input, shape index: {}]
  %s4 = inlined_call_operand.vmem [shape: bf16[64,32], index: 4, kind: input, shape index: {}]
  %s5 = inlined_call_operand.vmem [shape: f32[1,32], index: 5, kind: input, shape index: {}]
  %s6 = inlined_call_operand.vmem [shape: f32[512,32], index: 6, kind: output, shape index: {}]
  %s7 = sld [smem:[#allocation0]]
  $region57: #{tpu_custom_call.1} parent=0
    _
  %s9 = ssub.s32 1, %s7
  %s10 = scalar_select 0, %s9, %s7
  loop: start=0, step=1, limit=4
  $region2: #{tpu_custom_call.1} parent=0 // loop_pre_header
    _
  $region3: #{tpu_custom_call.1} parent=0 // loop_header
    %s12 = sphi 0, %s16
    %p13 = scmp.ge.s32.totalorder %s12, 4
    %s22 = sphi 0, %s24
    %s25 = sphi 0, %s22
    %s26 = sphi 0, %s25
    %s42 = sphi 0, %s26
    %s46 = sphi 0, %s46
    %s48 = sphi 0, %s46
    %s49 = sphi 0, %s48
    %s63 = sphi 0, %s49
    %s67 = sphi 0, %s67
    %s69 = sphi 0, %s67
    %s70 = sphi 0, %s69
    %s84 = sphi 0, %s70
    %s88 = sphi 0, %s88
    %s90 = sphi 0, %s88
    %s91 = sphi 0, %s90
    %s105 = sphi 0, %s91
    %s109 = sphi 0, %s109
    %s111 = sphi 0, %s109
    %s112 = sphi 0, %s111
    %s126 = sphi 0, %s112
    %s130 = sphi 0, %s130
    %s132 = sphi 0, %s130
    %s133 = sphi 0, %s132
    %s147 = sphi 0, %s133
    %s153 = sphi 0, %s155
    %s156 = sphi 0, %s153
    %s157 = sphi 0, %s156
    %s173 = sphi 0, %s157
  $region4: #{tpu_custom_call.1} parent=0 // loop_header_branch
    %15 = sbr.rel (%p13) target = $region8
  $region5: #{tpu_custom_call.1} parent=0 // loop_body
    %s17 = ssub.s32 %s12, 1
    %s18 = ssub.s32 %s12, 2
    %s19 = sadd.s32 %s12, 1
    %s20 = ssub.s32 %s12, %s19
    %p21 = scmp.eq.s32.totalorder %s20, 0
    %s23 = sadd.s32 %s22, 1
    %s24 = scalar_select %p21, %s22, %s23
    %p27 = pneg %p21
    %p28 = scmp.eq.s32.totalorder %s12, 1
    %p29 = por %p27, %p28
    %p30 = scmp.ne.s32.totalorder %s22, %s25
    %p31 = scmp.eq.s32.totalorder %s12, 0
    %p32 = por %p30, %p31
    %p33 = scmp.ne.s32.totalorder %s22, %s25
    %p34 = scmp.eq.s32.totalorder %s17, 1
    %p35 = por %p33, %p34
    %p36 = scmp.ne.s32.totalorder %s25, %s26
    %p37 = scmp.eq.s32.totalorder %s17, 0
    %p38 = por %p36, %p37
    %p39 = scmp.ne.s32.totalorder %s25, %s26
    %p40 = scmp.eq.s32.totalorder %s18, 1
    %p41 = por %p39, %p40
    %p43 = scmp.ne.s32.totalorder %s26, %s42
    %p44 = scmp.eq.s32.totalorder %s18, 0
    %p45 = por %p43, %p44
    %s47 = sadd.s32 %s46, 1
    %p50 = scmp.eq.s32.totalorder %s12, 1
    %p51 = scmp.ne.s32.totalorder %s46, %s48
    %p52 = scmp.eq.s32.totalorder %s12, 0
    %p53 = por %p51, %p52
    %p54 = scmp.ne.s32.totalorder %s46, %s48
    %p55 = scmp.eq.s32.totalorder %s17, 1
    %p56 = por %p54, %p55
    %p57 = scmp.ne.s32.totalorder %s48, %s49
    %p58 = scmp.eq.s32.totalorder %s17, 0
    %p59 = por %p57, %p58
    %p60 = scmp.ne.s32.totalorder %s48, %s49
    %p61 = scmp.eq.s32.totalorder %s18, 1
    %p62 = por %p60, %p61
    %p64 = scmp.ne.s32.totalorder %s49, %s63
    %p65 = scmp.eq.s32.totalorder %s18, 0
    %p66 = por %p64, %p65
    %s68 = sadd.s32 %s67, 1
    %p71 = scmp.eq.s32.totalorder %s12, 1
    %p72 = scmp.ne.s32.totalorder %s67, %s69
    %p73 = scmp.eq.s32.totalorder %s12, 0
    %p74 = por %p72, %p73
    %p75 = scmp.ne.s32.totalorder %s67, %s69
    %p76 = scmp.eq.s32.totalorder %s17, 1
    %p77 = por %p75, %p76
    %p78 = scmp.ne.s32.totalorder %s69, %s70
    %p79 = scmp.eq.s32.totalorder %s17, 0
    %p80 = por %p78, %p79
    %p81 = scmp.ne.s32.totalorder %s69, %s70
    %p82 = scmp.eq.s32.totalorder %s18, 1
    %p83 = por %p81, %p82
    %p85 = scmp.ne.s32.totalorder %s70, %s84
    %p86 = scmp.eq.s32.totalorder %s18, 0
    %p87 = por %p85, %p86
    %s89 = sadd.s32 %s88, 1
    %p92 = scmp.eq.s32.totalorder %s12, 1
    %p93 = scmp.ne.s32.totalorder %s88, %s90
    %p94 = scmp.eq.s32.totalorder %s12, 0
    %p95 = por %p93, %p94
    %p96 = scmp.ne.s32.totalorder %s88, %s90
    %p97 = scmp.eq.s32.totalorder %s17, 1
    %p98 = por %p96, %p97
    %p99 = scmp.ne.s32.totalorder %s90, %s91
    %p100 = scmp.eq.s32.totalorder %s17, 0
    %p101 = por %p99, %p100
    %p102 = scmp.ne.s32.totalorder %s90, %s91
    %p103 = scmp.eq.s32.totalorder %s18, 1
    %p104 = por %p102, %p103
    %p106 = scmp.ne.s32.totalorder %s91, %s105
    %p107 = scmp.eq.s32.totalorder %s18, 0
    %p108 = por %p106, %p107
    %s110 = sadd.s32 %s109, 1
    %p113 = scmp.eq.s32.totalorder %s12, 1
    %p114 = scmp.ne.s32.totalorder %s109, %s111
    %p115 = scmp.eq.s32.totalorder %s12, 0
    %p116 = por %p114, %p115
    %p117 = scmp.ne.s32.totalorder %s109, %s111
    %p118 = scmp.eq.s32.totalorder %s17, 1
    %p119 = por %p117, %p118
    %p120 = scmp.ne.s32.totalorder %s111, %s112
    %p121 = scmp.eq.s32.totalorder %s17, 0
    %p122 = por %p120, %p121
    %p123 = scmp.ne.s32.totalorder %s111, %s112
    %p124 = scmp.eq.s32.totalorder %s18, 1
    %p125 = por %p123, %p124
    %p127 = scmp.ne.s32.totalorder %s112, %s126
    %p128 = scmp.eq.s32.totalorder %s18, 0
    %p129 = por %p127, %p128
    %s131 = sadd.s32 %s130, 1
    %p134 = scmp.eq.s32.totalorder %s12, 1
    %p135 = scmp.ne.s32.totalorder %s130, %s132
    %p136 = scmp.eq.s32.totalorder %s12, 0
    %p137 = por %p135, %p136
    %p138 = scmp.ne.s32.totalorder %s130, %s132
    %p139 = scmp.eq.s32.totalorder %s17, 1
    %p140 = por %p138, %p139
    %p141 = scmp.ne.s32.totalorder %s132, %s133
    %p142 = scmp.eq.s32.totalorder %s17, 0
    %p143 = por %p141, %p142
    %p144 = scmp.ne.s32.totalorder %s132, %s133
    %p145 = scmp.eq.s32.totalorder %s18, 1
    %p146 = por %p144, %p145
    %p148 = scmp.ne.s32.totalorder %s133, %s147
    %p149 = scmp.eq.s32.totalorder %s18, 0
    %p150 = por %p148, %p149
    %s151 = ssub.s32 %s12, %s19
    %p152 = scmp.eq.s32.totalorder %s151, 0
    %s154 = sadd.s32 %s153, 1
    %s155 = scalar_select %p152, %s153, %s154
    %p158 = pneg %p152
    %p159 = scmp.eq.s32.totalorder %s12, 1
    %p160 = por %p158, %p159
    %p161 = scmp.ne.s32.totalorder %s153, %s156
    %p162 = scmp.eq.s32.totalorder %s12, 0
    %p163 = por %p161, %p162
    %p164 = scmp.ne.s32.totalorder %s153, %s156
    %p165 = scmp.eq.s32.totalorder %s17, 1
    %p166 = por %p164, %p165
    %p167 = scmp.ne.s32.totalorder %s156, %s157
    %p168 = scmp.eq.s32.totalorder %s17, 0
    %p169 = por %p167, %p168
    %p170 = scmp.ne.s32.totalorder %s156, %s157
    %p171 = scmp.eq.s32.totalorder %s18, 1
    %p172 = por %p170, %p171
    %p174 = scmp.ne.s32.totalorder %s157, %s173
    %p175 = scmp.eq.s32.totalorder %s18, 0
    %p176 = por %p174, %p175
    %p177 = scmp.le.s32.totalorder 1, %s12
    %p178 = scmp.lt.s32.totalorder %s12, 3
    %p179 = pnand %p177, %p178
    %p180 = pneg %p179
    // Predicated region
    $region9: #{tpu_custom_call.1} parent=5 // pred_check
      _
    $region10: #{tpu_custom_call.1} parent=5 // pred_check_branch
      %182 = sbr.rel (%p179) target = $region12
    $region11: #{tpu_custom_call.1} parent=5 // pred_region
      %s183 = ssub.s32 %s12, 1
      // Predicated region
      $region13: #{tpu_custom_call.1} parent=11 // pred_check
        %p184 = pneg %p59
      $region14: #{tpu_custom_call.1} parent=11 // pred_check_branch
        %186 = sbr.rel (%p184) target = $region16
      $region15: #{tpu_custom_call.1} parent=11 // pred_region
        _
      $region16: #{tpu_custom_call.1} parent=11 // pred_fallthru
        _
      // Predicated region
      $region17: #{tpu_custom_call.1} parent=11 // pred_check
        %p187 = pneg %p80
      $region18: #{tpu_custom_call.1} parent=11 // pred_check_branch
        %189 = sbr.rel (%p187) target = $region20
      $region19: #{tpu_custom_call.1} parent=11 // pred_region
        _
      $region20: #{tpu_custom_call.1} parent=11 // pred_fallthru
        _
      // Predicated region
      $region21: #{tpu_custom_call.1} parent=11 // pred_check
        %p190 = pneg %p101
      $region22: #{tpu_custom_call.1} parent=11 // pred_check_branch
        %192 = sbr.rel (%p190) target = $region24
      $region23: #{tpu_custom_call.1} parent=11 // pred_region
        _
      $region24: #{tpu_custom_call.1} parent=11 // pred_fallthru
        _
      // Predicated region
      $region25: #{tpu_custom_call.1} parent=11 // pred_check
        %p193 = pneg %p122
      $region26: #{tpu_custom_call.1} parent=11 // pred_check_branch
        %195 = sbr.rel (%p193) target = $region28
      $region27: #{tpu_custom_call.1} parent=11 // pred_region
        _
      $region28: #{tpu_custom_call.1} parent=11 // pred_fallthru
        _
      // Predicated region
      $region29: #{tpu_custom_call.1} parent=11 // pred_check
        %p196 = pneg %p143
      $region30: #{tpu_custom_call.1} parent=11 // pred_check_branch
        %198 = sbr.rel (%p196) target = $region32
      $region31: #{tpu_custom_call.1} parent=11 // pred_region
        _
      $region32: #{tpu_custom_call.1} parent=11 // pred_fallthru
        _
    $region12: #{tpu_custom_call.1} parent=5 // pred_fallthru
      _
    %p199 = scmp.lt.s32.totalorder %s12, 2
    // Predicated region
    $region33: #{tpu_custom_call.1} parent=5 // pred_check
      %p200 = pneg %p199
    $region34: #{tpu_custom_call.1} parent=5 // pred_check_branch
      %202 = sbr.rel (%p200) target = $region36
    $region35: #{tpu_custom_call.1} parent=5 // pred_region
      // Predicated region
      $region37: #{tpu_custom_call.1} parent=35 // pred_check
        %p203 = pneg %p32
      $region38: #{tpu_custom_call.1} parent=35 // pred_check_branch
        %205 = sbr.rel (%p203) target = $region40
      $region39: #{tpu_custom_call.1} parent=35 // pred_region
        %s206 = smul.u32 32, %s12
        %p207 = scmp.lt.s32.totalorder %s206, 63
        %s208 = scalar_select %p207, %s206, 63
        %s209 = smul.addr %s208, 4
        %s210 = scalar_lea.vmem %s0, %s209
        %s211 = smul.u32 32, %s12
      $region40: #{tpu_custom_call.1} parent=35 // pred_fallthru
        _
    $region36: #{tpu_custom_call.1} parent=5 // pred_fallthru
      _
    %p212 = scmp.le.s32.totalorder 1, %s12
    %p213 = scmp.lt.s32.totalorder %s12, 3
    %p214 = pnand %p212, %p213
    %p215 = pneg %p214
    // Predicated region
    $region41: #{tpu_custom_call.1} parent=5 // pred_check
      _
    $region42: #{tpu_custom_call.1} parent=5 // pred_check_branch
      %217 = sbr.rel (%p214) target = $region44
    $region43: #{tpu_custom_call.1} parent=5 // pred_region
      %s218 = ssub.s32 %s12, 1
      %s219 = smul.u32 32, %s17
      %p220 = scmp.lt.s32.totalorder %s219, 63
      %s221 = scalar_select %p220, %s219, 63
      %s222 = smul.addr %s221, 4
      %s223 = scalar_lea.vmem %s0, %s222
      %p224 = pneg %p38
      %p225 = pneg %p35
      %p226 = pneg %p59
      %p227 = pneg %p56
      %p228 = pneg %p80
      %p229 = pneg %p77
      %p230 = pneg %p101
      %p231 = pneg %p98
      %p232 = pneg %p122
      %p233 = pneg %p119
      %p234 = pneg %p143
      %p235 = pneg %p140
      %p236 = pneg %p169
      %p237 = pneg %p166
      %s238 = smul.u32 32, %s17
      %p239 = scmp.lt.s32.totalorder %s238, 63
      %s240 = scalar_select %p239, %s238, 63
      %s241 = smul.addr %s240, 8
      %s242 = scalar_lea.vmem %s6, %s241
      %s243 = smul.u32 32, %s17
      %p244 = scmp.lt.s32.totalorder %s243, 63
      %s245 = scalar_select %p244, %s243, 63
      %s246 = smul.addr %s245, 4
      %s247 = scalar_lea.vmem %s0, %s246
      %s248 = smul.u32 32, %s17
      %s249 = smul.u32 32, %s17
      %p250 = scmp.lt.s32.totalorder %s249, 63
      %s251 = scalar_select %p250, %s249, 63
      %s252 = smul.addr %s251, 8
      %s253 = scalar_lea.vmem %s6, %s252
      %s254 = smul.u32 32, %s17
      %v256 = vld [vmem:[%s247] sm:$0xf]
      %v257 = vld [vmem:[%s247 + $0x4] sm:$0xf]
      %v258 = vld [vmem:[%s247 + $0x8] sm:$0xf]
      %v259 = vld [vmem:[%s247 + $0xc] sm:$0xf]
      %v260 = vld [vmem:[%s247 + $0x10] sm:$0xf]
      %v261 = vld [vmem:[%s247 + $0x14] sm:$0xf]
      %v262 = vld [vmem:[%s247 + $0x18] sm:$0xf]
      %v263 = vld [vmem:[%s247 + $0x1c] sm:$0xf]
      %v264 = vld [vmem:[%s247 + $0x20] sm:$0xf]
      %v265 = vld [vmem:[%s247 + $0x24] sm:$0xf]
      %v266 = vld [vmem:[%s247 + $0x28] sm:$0xf]
      %v267 = vld [vmem:[%s247 + $0x2c] sm:$0xf]
      %v268 = vld [vmem:[%s247 + $0x30] sm:$0xf]
      %v269 = vld [vmem:[%s247 + $0x34] sm:$0xf]
      %v270 = vld [vmem:[%s247 + $0x38] sm:$0xf]
      %v271 = vld [vmem:[%s247 + $0x3c] sm:$0xf]
      %v272 = vld [vmem:[%s247 + $0x40] sm:$0xf]
      %v273 = vld [vmem:[%s247 + $0x44] sm:$0xf]
      %v274 = vld [vmem:[%s247 + $0x48] sm:$0xf]
      %v275 = vld [vmem:[%s247 + $0x4c] sm:$0xf]
      %v276 = vld [vmem:[%s247 + $0x50] sm:$0xf]
      %v277 = vld [vmem:[%s247 + $0x54] sm:$0xf]
      %v278 = vld [vmem:[%s247 + $0x58] sm:$0xf]
      %v279 = vld [vmem:[%s247 + $0x5c] sm:$0xf]
      %v280 = vld [vmem:[%s247 + $0x60] sm:$0xf]
      %v281 = vld [vmem:[%s247 + $0x64] sm:$0xf]
      %v282 = vld [vmem:[%s247 + $0x68] sm:$0xf]
      %v283 = vld [vmem:[%s247 + $0x6c] sm:$0xf]
      %v284 = vld [vmem:[%s247 + $0x70] sm:$0xf]
      %v285 = vld [vmem:[%s247 + $0x74] sm:$0xf]
      %v286 = vld [vmem:[%s247 + $0x78] sm:$0xf]
      %v287 = vld [vmem:[%s247 + $0x7c] sm:$0xf]
      %v288 = vunpack.c.l.bf16 %v256
      %v289 = vunpack.c.l.bf16 %v257
      %v290 = vunpack.c.l.bf16 %v258
      %v291 = vunpack.c.l.bf16 %v259
      %v292 = vunpack.c.l.bf16 %v260
      %v293 = vunpack.c.l.bf16 %v261
      %v294 = vunpack.c.l.bf16 %v262
      %v295 = vunpack.c.l.bf16 %v263
      %v296 = vunpack.c.l.bf16 %v264
      %v297 = vunpack.c.l.bf16 %v265
      %v298 = vunpack.c.l.bf16 %v266
      %v299 = vunpack.c.l.bf16 %v267
      %v300 = vunpack.c.l.bf16 %v268
      %v301 = vunpack.c.l.bf16 %v269
      %v302 = vunpack.c.l.bf16 %v270
      %v303 = vunpack.c.l.bf16 %v271
      %v304 = vunpack.c.l.bf16 %v272
      %v305 = vunpack.c.l.bf16 %v273
      %v306 = vunpack.c.l.bf16 %v274
      %v307 = vunpack.c.l.bf16 %v275
      %v308 = vunpack.c.l.bf16 %v276
      %v309 = vunpack.c.l.bf16 %v277
      %v310 = vunpack.c.l.bf16 %v278
      %v311 = vunpack.c.l.bf16 %v279
      %v312 = vunpack.c.l.bf16 %v280
      %v313 = vunpack.c.l.bf16 %v281
      %v314 = vunpack.c.l.bf16 %v282
      %v315 = vunpack.c.l.bf16 %v283
      %v316 = vunpack.c.l.bf16 %v284
      %v317 = vunpack.c.l.bf16 %v285
      %v318 = vunpack.c.l.bf16 %v286
      %v319 = vunpack.c.l.bf16 %v287
      %v320 = vld [vmem:[%s1] sm:$0xff]
      %v321 = vld [vmem:[%s1 + $0x8] sm:$0xff]
      %v322 = vld [vmem:[%s1 + $0x10] sm:$0xff]
      %v323 = vld [vmem:[%s1 + $0x18] sm:$0xff]
      %v324 = vld [vmem:[%s1 + $0x20] sm:$0xff]
      %v325 = vld [vmem:[%s1 + $0x28] sm:$0xff]
      %v326 = vld [vmem:[%s1 + $0x30] sm:$0xff]
      %v327 = vld [vmem:[%s1 + $0x38] sm:$0xff]
      %v328 = vld [vmem:[%s1 + $0x40] sm:$0xff]
      %v329 = vld [vmem:[%s1 + $0x48] sm:$0xff]
      %v330 = vld [vmem:[%s1 + $0x50] sm:$0xff]
      %v331 = vld [vmem:[%s1 + $0x58] sm:$0xff]
      %v332 = vld [vmem:[%s1 + $0x60] sm:$0xff]
      %v333 = vld [vmem:[%s1 + $0x68] sm:$0xff]
      %v334 = vld [vmem:[%s1 + $0x70] sm:$0xff]
      %v335 = vld [vmem:[%s1 + $0x78] sm:$0xff]
      %v336 = vld [vmem:[%s1 + $0x80] sm:$0xff]
      %v337 = vld [vmem:[%s1 + $0x88] sm:$0xff]
      %v338 = vld [vmem:[%s1 + $0x90] sm:$0xff]
      %v339 = vld [vmem:[%s1 + $0x98] sm:$0xff]
      %v340 = vld [vmem:[%s1 + $0xa0] sm:$0xff]
      %v341 = vld [vmem:[%s1 + $0xa8] sm:$0xff]
      %v342 = vld [vmem:[%s1 + $0xb0] sm:$0xff]
      %v343 = vld [vmem:[%s1 + $0xb8] sm:$0xff]
      %v344 = vld [vmem:[%s1 + $0xc0] sm:$0xff]
      %v345 = vld [vmem:[%s1 + $0xc8] sm:$0xff]
      %v346 = vld [vmem:[%s1 + $0xd0] sm:$0xff]
      %v347 = vld [vmem:[%s1 + $0xd8] sm:$0xff]
      %v348 = vld [vmem:[%s1 + $0xe0] sm:$0xff]
      %v349 = vld [vmem:[%s1 + $0xe8] sm:$0xff]
      %v350 = vld [vmem:[%s1 + $0xf0] sm:$0xff]
      %v351 = vld [vmem:[%s1 + $0xf8] sm:$0xff]
      %v352 = vrot.slane %v288, 7
      %v353 = vrot.slane %v289, 7
      %v354 = vrot.slane %v290, 7
      %v355 = vrot.slane %v291, 7
      %v356 = vrot.slane %v292, 7
      %v357 = vrot.slane %v293, 7
      %v358 = vrot.slane %v294, 7
      %v359 = vrot.slane %v295, 7
      %v360 = vrot.slane %v296, 7
      %v361 = vrot.slane %v297, 7
      %v362 = vrot.slane %v298, 7
      %v363 = vrot.slane %v299, 7
      %v364 = vrot.slane %v300, 7
      %v365 = vrot.slane %v301, 7
      %v366 = vrot.slane %v302, 7
      %v367 = vrot.slane %v303, 7
      %v368 = vrot.slane %v304, 7
      %v369 = vrot.slane %v305, 7
      %v370 = vrot.slane %v306, 7
      %v371 = vrot.slane %v307, 7
      %v372 = vrot.slane %v308, 7
      %v373 = vrot.slane %v309, 7
      %v374 = vrot.slane %v310, 7
      %v375 = vrot.slane %v311, 7
      %v376 = vrot.slane %v312, 7
      %v377 = vrot.slane %v313, 7
      %v378 = vrot.slane %v314, 7
      %v379 = vrot.slane %v315, 7
      %v380 = vrot.slane %v316, 7
      %v381 = vrot.slane %v317, 7
      %v382 = vrot.slane %v318, 7
      %v383 = vrot.slane %v319, 7
      %v384 = vlaneseq
      %v385 = vshrl.u32 %v384, 7
      %vm386 = vcmp.lt.s32.totalorder %v385, 1
      %v387 = vsel %vm386, %v382, %v383
      %v388 = vsel %vm386, %v381, %v382
      %v389 = vsel %vm386, %v380, %v381
      %v390 = vsel %vm386, %v379, %v380
      %v391 = vsel %vm386, %v378, %v379
      %v392 = vsel %vm386, %v377, %v378
      %v393 = vsel %vm386, %v376, %v377
      %v394 = vsel %vm386, %v375, %v376
      %v395 = vsel %vm386, %v374, %v375
      %v396 = vsel %vm386, %v373, %v374
      %v397 = vsel %vm386, %v372, %v373
      %v398 = vsel %vm386, %v371, %v372
      %v399 = vsel %vm386, %v370, %v371
      %v400 = vsel %vm386, %v369, %v370
      %v401 = vsel %vm386, %v368, %v369
      %v402 = vsel %vm386, %v367, %v368
      %v403 = vsel %vm386, %v366, %v367
      %v404 = vsel %vm386, %v365, %v366
      %v405 = vsel %vm386, %v364, %v365
      %v406 = vsel %vm386, %v363, %v364
      %v407 = vsel %vm386, %v362, %v363
      %v408 = vsel %vm386, %v361, %v362
      %v409 = vsel %vm386, %v360, %v361
      %v410 = vsel %vm386, %v359, %v360
      %v411 = vsel %vm386, %v358, %v359
      %v412 = vsel %vm386, %v357, %v358
      %v413 = vsel %vm386, %v356, %v357
      %v414 = vsel %vm386, %v355, %v356
      %v415 = vsel %vm386, %v354, %v355
      %v416 = vsel %vm386, %v353, %v354
      %v417 = vsel %vm386, %v352, %v353
      %v418 = vsel %vm386, %v383, %v352
      %420 = vset.pattern.permute.xlu0 2
      %421 = vperm.xlu0 %420, %v320
      %v422 = vpop.permute.xlu0 %421
      %425 = vset.pattern.permute.xlu0 2
      %426 = vperm.xlu0 %425, %v321
      %v427 = vpop.permute.xlu0 %426
      %430 = vset.pattern.permute.xlu0 2
      %431 = vperm.xlu0 %430, %v322
      %v432 = vpop.permute.xlu0 %431
      %435 = vset.pattern.permute.xlu0 2
      %436 = vperm.xlu0 %435, %v323
      %v437 = vpop.permute.xlu0 %436
      %440 = vset.pattern.permute.xlu0 2
      %441 = vperm.xlu0 %440, %v324
      %v442 = vpop.permute.xlu0 %441
      %445 = vset.pattern.permute.xlu0 2
      %446 = vperm.xlu0 %445, %v325
      %v447 = vpop.permute.xlu0 %446
      %450 = vset.pattern.permute.xlu0 2
      %451 = vperm.xlu0 %450, %v326
      %v452 = vpop.permute.xlu0 %451
      %455 = vset.pattern.permute.xlu0 2
      %456 = vperm.xlu0 %455, %v327
      %v457 = vpop.permute.xlu0 %456
      %460 = vset.pattern.permute.xlu0 2
      %461 = vperm.xlu0 %460, %v328
      %v462 = vpop.permute.xlu0 %461
      %465 = vset.pattern.permute.xlu0 2
      %466 = vperm.xlu0 %465, %v329
      %v467 = vpop.permute.xlu0 %466
      %470 = vset.pattern.permute.xlu0 2
      %471 = vperm.xlu0 %470, %v330
      %v472 = vpop.permute.xlu0 %471
      %475 = vset.pattern.permute.xlu0 2
      %476 = vperm.xlu0 %475, %v331
      %v477 = vpop.permute.xlu0 %476
      %480 = vset.pattern.permute.xlu0 2
      %481 = vperm.xlu0 %480, %v332
      %v482 = vpop.permute.xlu0 %481
      %485 = vset.pattern.permute.xlu0 2
      %486 = vperm.xlu0 %485, %v333
      %v487 = vpop.permute.xlu0 %486
      %490 = vset.pattern.permute.xlu0 2
      %491 = vperm.xlu0 %490, %v334
      %v492 = vpop.permute.xlu0 %491
      %495 = vset.pattern.permute.xlu0 2
      %496 = vperm.xlu0 %495, %v335
      %v497 = vpop.permute.xlu0 %496
      %500 = vset.pattern.permute.xlu0 2
      %501 = vperm.xlu0 %500, %v336
      %v502 = vpop.permute.xlu0 %501
      %505 = vset.pattern.permute.xlu0 2
      %506 = vperm.xlu0 %505, %v337
      %v507 = vpop.permute.xlu0 %506
      %510 = vset.pattern.permute.xlu0 2
      %511 = vperm.xlu0 %510, %v338
      %v512 = vpop.permute.xlu0 %511
      %515 = vset.pattern.permute.xlu0 2
      %516 = vperm.xlu0 %515, %v339
      %v517 = vpop.permute.xlu0 %516
      %520 = vset.pattern.permute.xlu0 2
      %521 = vperm.xlu0 %520, %v340
      %v522 = vpop.permute.xlu0 %521
      %525 = vset.pattern.permute.xlu0 2
      %526 = vperm.xlu0 %525, %v341
      %v527 = vpop.permute.xlu0 %526
      %530 = vset.pattern.permute.xlu0 2
      %531 = vperm.xlu0 %530, %v342
      %v532 = vpop.permute.xlu0 %531
      %535 = vset.pattern.permute.xlu0 2
      %536 = vperm.xlu0 %535, %v343
      %v537 = vpop.permute.xlu0 %536
      %540 = vset.pattern.permute.xlu0 2
      %541 = vperm.xlu0 %540, %v344
      %v542 = vpop.permute.xlu0 %541
      %545 = vset.pattern.permute.xlu0 2
      %546 = vperm.xlu0 %545, %v345
      %v547 = vpop.permute.xlu0 %546
      %550 = vset.pattern.permute.xlu0 2
      %551 = vperm.xlu0 %550, %v346
      %v552 = vpop.permute.xlu0 %551
      %555 = vset.pattern.permute.xlu0 2
      %556 = vperm.xlu0 %555, %v347
      %v557 = vpop.permute.xlu0 %556
      %560 = vset.pattern.permute.xlu0 2
      %561 = vperm.xlu0 %560, %v348
      %v562 = vpop.permute.xlu0 %561
      %565 = vset.pattern.permute.xlu0 2
      %566 = vperm.xlu0 %565, %v349
      %v567 = vpop.permute.xlu0 %566
      %570 = vset.pattern.permute.xlu0 2
      %571 = vperm.xlu0 %570, %v350
      %v572 = vpop.permute.xlu0 %571
      %575 = vset.pattern.permute.xlu0 2
      %576 = vperm.xlu0 %575, %v351
      %v577 = vpop.permute.xlu0 %576
      %v579 = vmul.f32 %v418, %v422
      %v580 = vmul.f32 %v417, %v427
      %v581 = vmul.f32 %v416, %v432
      %v582 = vmul.f32 %v415, %v437
      %v583 = vmul.f32 %v414, %v442
      %v584 = vmul.f32 %v413, %v447
      %v585 = vmul.f32 %v412, %v452
      %v586 = vmul.f32 %v411, %v457
      %v587 = vmul.f32 %v410, %v462
      %v588 = vmul.f32 %v409, %v467
      %v589 = vmul.f32 %v408, %v472
      %v590 = vmul.f32 %v407, %v477
      %v591 = vmul.f32 %v406, %v482
      %v592 = vmul.f32 %v405, %v487
      %v593 = vmul.f32 %v404, %v492
      %v594 = vmul.f32 %v403, %v497
      %v595 = vmul.f32 %v402, %v502
      %v596 = vmul.f32 %v401, %v507
      %v597 = vmul.f32 %v400, %v512
      %v598 = vmul.f32 %v399, %v517
      %v599 = vmul.f32 %v398, %v522
      %v600 = vmul.f32 %v397, %v527
      %v601 = vmul.f32 %v396, %v532
      %v602 = vmul.f32 %v395, %v537
      %v603 = vmul.f32 %v394, %v542
      %v604 = vmul.f32 %v393, %v547
      %v605 = vmul.f32 %v392, %v552
      %v606 = vmul.f32 %v391, %v557
      %v607 = vmul.f32 %v390, %v562
      %v608 = vmul.f32 %v389, %v567
      %v609 = vmul.f32 %v388, %v572
      %v610 = vmul.f32 %v387, %v577
      %v611 = vrot.slane %v288, 1
      %v612 = vrot.slane %v289, 1
      %v613 = vrot.slane %v290, 1
      %v614 = vrot.slane %v291, 1
      %v615 = vrot.slane %v292, 1
      %v616 = vrot.slane %v293, 1
      %v617 = vrot.slane %v294, 1
      %v618 = vrot.slane %v295, 1
      %v619 = vrot.slane %v296, 1
      %v620 = vrot.slane %v297, 1
      %v621 = vrot.slane %v298, 1
      %v622 = vrot.slane %v299, 1
      %v623 = vrot.slane %v300, 1
      %v624 = vrot.slane %v301, 1
      %v625 = vrot.slane %v302, 1
      %v626 = vrot.slane %v303, 1
      %v627 = vrot.slane %v304, 1
      %v628 = vrot.slane %v305, 1
      %v629 = vrot.slane %v306, 1
      %v630 = vrot.slane %v307, 1
      %v631 = vrot.slane %v308, 1
      %v632 = vrot.slane %v309, 1
      %v633 = vrot.slane %v310, 1
      %v634 = vrot.slane %v311, 1
      %v635 = vrot.slane %v312, 1
      %v636 = vrot.slane %v313, 1
      %v637 = vrot.slane %v314, 1
      %v638 = vrot.slane %v315, 1
      %v639 = vrot.slane %v316, 1
      %v640 = vrot.slane %v317, 1
      %v641 = vrot.slane %v318, 1
      %v642 = vrot.slane %v319, 1
      %vm643 = vcmp.lt.s32.totalorder %v385, 7
      %v644 = vsel %vm643, %v641, %v642
      %v645 = vsel %vm643, %v640, %v641
      %v646 = vsel %vm643, %v639, %v640
      %v647 = vsel %vm643, %v638, %v639
      %v648 = vsel %vm643, %v637, %v638
      %v649 = vsel %vm643, %v636, %v637
      %v650 = vsel %vm643, %v635, %v636
      %v651 = vsel %vm643, %v634, %v635
      %v652 = vsel %vm643, %v633, %v634
      %v653 = vsel %vm643, %v632, %v633
      %v654 = vsel %vm643, %v631, %v632
      %v655 = vsel %vm643, %v630, %v631
      %v656 = vsel %vm643, %v629, %v630
      %v657 = vsel %vm643, %v628, %v629
      %v658 = vsel %vm643, %v627, %v628
      %v659 = vsel %vm643, %v626, %v627
      %v660 = vsel %vm643, %v625, %v626
      %v661 = vsel %vm643, %v624, %v625
      %v662 = vsel %vm643, %v623, %v624
      %v663 = vsel %vm643, %v622, %v623
      %v664 = vsel %vm643, %v621, %v622
      %v665 = vsel %vm643, %v620, %v621
      %v666 = vsel %vm643, %v619, %v620
      %v667 = vsel %vm643, %v618, %v619
      %v668 = vsel %vm643, %v617, %v618
      %v669 = vsel %vm643, %v616, %v617
      %v670 = vsel %vm643, %v615, %v616
      %v671 = vsel %vm643, %v614, %v615
      %v672 = vsel %vm643, %v613, %v614
      %v673 = vsel %vm643, %v612, %v613
      %v674 = vsel %vm643, %v611, %v612
      %v675 = vsel %vm643, %v642, %v611
      %676 = vset.pattern.permute.xlu0 3
      %677 = vperm.xlu0 %676, %v320
      %v678 = vpop.permute.xlu0 %677
      %680 = vset.pattern.permute.xlu0 3
      %681 = vperm.xlu0 %680, %v321
      %v682 = vpop.permute.xlu0 %681
      %684 = vset.pattern.permute.xlu0 3
      %685 = vperm.xlu0 %684, %v322
      %v686 = vpop.permute.xlu0 %685
      %688 = vset.pattern.permute.xlu0 3
      %689 = vperm.xlu0 %688, %v323
      %v690 = vpop.permute.xlu0 %689
      %692 = vset.pattern.permute.xlu0 3
      %693 = vperm.xlu0 %692, %v324
      %v694 = vpop.permute.xlu0 %693
      %696 = vset.pattern.permute.xlu0 3
      %697 = vperm.xlu0 %696, %v325
      %v698 = vpop.permute.xlu0 %697
      %700 = vset.pattern.permute.xlu0 3
      %701 = vperm.xlu0 %700, %v326
      %v702 = vpop.permute.xlu0 %701
      %704 = vset.pattern.permute.xlu0 3
      %705 = vperm.xlu0 %704, %v327
      %v706 = vpop.permute.xlu0 %705
      %708 = vset.pattern.permute.xlu0 3
      %709 = vperm.xlu0 %708, %v328
      %v710 = vpop.permute.xlu0 %709
      %712 = vset.pattern.permute.xlu0 3
      %713 = vperm.xlu0 %712, %v329
      %v714 = vpop.permute.xlu0 %713
      %716 = vset.pattern.permute.xlu0 3
      %717 = vperm.xlu0 %716, %v330
      %v718 = vpop.permute.xlu0 %717
      %720 = vset.pattern.permute.xlu0 3
      %721 = vperm.xlu0 %720, %v331
      %v722 = vpop.permute.xlu0 %721
      %724 = vset.pattern.permute.xlu0 3
      %725 = vperm.xlu0 %724, %v332
      %v726 = vpop.permute.xlu0 %725
      %728 = vset.pattern.permute.xlu0 3
      %729 = vperm.xlu0 %728, %v333
      %v730 = vpop.permute.xlu0 %729
      %732 = vset.pattern.permute.xlu0 3
      %733 = vperm.xlu0 %732, %v334
      %v734 = vpop.permute.xlu0 %733
      %736 = vset.pattern.permute.xlu0 3
      %737 = vperm.xlu0 %736, %v335
      %v738 = vpop.permute.xlu0 %737
      %740 = vset.pattern.permute.xlu0 3
      %741 = vperm.xlu0 %740, %v336
      %v742 = vpop.permute.xlu0 %741
      %744 = vset.pattern.permute.xlu0 3
      %745 = vperm.xlu0 %744, %v337
      %v746 = vpop.permute.xlu0 %745
      %748 = vset.pattern.permute.xlu0 3
      %749 = vperm.xlu0 %748, %v338
      %v750 = vpop.permute.xlu0 %749
      %752 = vset.pattern.permute.xlu0 3
      %753 = vperm.xlu0 %752, %v339
      %v754 = vpop.permute.xlu0 %753
      %756 = vset.pattern.permute.xlu0 3
      %757 = vperm.xlu0 %756, %v340
      %v758 = vpop.permute.xlu0 %757
      %760 = vset.pattern.permute.xlu0 3
      %761 = vperm.xlu0 %760, %v341
      %v762 = vpop.permute.xlu0 %761
      %764 = vset.pattern.permute.xlu0 3
      %765 = vperm.xlu0 %764, %v342
      %v766 = vpop.permute.xlu0 %765
      %768 = vset.pattern.permute.xlu0 3
      %769 = vperm.xlu0 %768, %v343
      %v770 = vpop.permute.xlu0 %769
      %772 = vset.pattern.permute.xlu0 3
      %773 = vperm.xlu0 %772, %v344
      %v774 = vpop.permute.xlu0 %773
      %776 = vset.pattern.permute.xlu0 3
      %777 = vperm.xlu0 %776, %v345
      %v778 = vpop.permute.xlu0 %777
      %780 = vset.pattern.permute.xlu0 3
      %781 = vperm.xlu0 %780, %v346
      %v782 = vpop.permute.xlu0 %781
      %784 = vset.pattern.permute.xlu0 3
      %785 = vperm.xlu0 %784, %v347
      %v786 = vpop.permute.xlu0 %785
      %788 = vset.pattern.permute.xlu0 3
      %789 = vperm.xlu0 %788, %v348
      %v790 = vpop.permute.xlu0 %789
      %792 = vset.pattern.permute.xlu0 3
      %793 = vperm.xlu0 %792, %v349
      %v794 = vpop.permute.xlu0 %793
      %796 = vset.pattern.permute.xlu0 3
      %797 = vperm.xlu0 %796, %v350
      %v798 = vpop.permute.xlu0 %797
      %800 = vset.pattern.permute.xlu0 3
      %801 = vperm.xlu0 %800, %v351
      %v802 = vpop.permute.xlu0 %801
      %v804 = vmul.f32 %v674, %v678
      %v805 = vmul.f32 %v673, %v682
      %v806 = vmul.f32 %v672, %v686
      %v807 = vmul.f32 %v671, %v690
      %v808 = vmul.f32 %v670, %v694
      %v809 = vmul.f32 %v669, %v698
      %v810 = vmul.f32 %v668, %v702
      %v811 = vmul.f32 %v667, %v706
      %v812 = vmul.f32 %v666, %v710
      %v813 = vmul.f32 %v665, %v714
      %v814 = vmul.f32 %v664, %v718
      %v815 = vmul.f32 %v663, %v722
      %v816 = vmul.f32 %v662, %v726
      %v817 = vmul.f32 %v661, %v730
      %v818 = vmul.f32 %v660, %v734
      %v819 = vmul.f32 %v659, %v738
      %v820 = vmul.f32 %v658, %v742
      %v821 = vmul.f32 %v657, %v746
      %v822 = vmul.f32 %v656, %v750
      %v823 = vmul.f32 %v655, %v754
      %v824 = vmul.f32 %v654, %v758
      %v825 = vmul.f32 %v653, %v762
      %v826 = vmul.f32 %v652, %v766
      %v827 = vmul.f32 %v651, %v770
      %v828 = vmul.f32 %v650, %v774
      %v829 = vmul.f32 %v649, %v778
      %v830 = vmul.f32 %v648, %v782
      %v831 = vmul.f32 %v647, %v786
      %v832 = vmul.f32 %v646, %v790
      %v833 = vmul.f32 %v645, %v794
      %v834 = vmul.f32 %v644, %v798
      %v835 = vmul.f32 %v675, %v802
      %s836 = scalar_lea.vmem %s2, 80
      %v837 = vld [vmem:[%s836] sm:$0xf]
      %v838 = vld [vmem:[%s836 + $0x4] sm:$0xf]
      %v839 = vld [vmem:[%s836 + $0x8] sm:$0xf]
      %v840 = vld [vmem:[%s836 + $0xc] sm:$0xf]
      %v841 = vld [vmem:[%s836 + $0x10] sm:$0x1]
      %v842 = vld [vmem:[%s3] sm:$0x1]
      %v844 = vlaneseq
      %v845 = vshrl.u32 %v844, 7
      %v846 = vsub.s32 0, %v845
      %v847 = vrot.slane %v842, %v846
      %v881 = vunpack.c.l.b16 %v256
      %v882 = vunpack.c.l.b16 %v257
      %v883 = vunpack.c.l.b16 %v258
      %v884 = vunpack.c.l.b16 %v259
      %v885 = vunpack.c.l.b16 %v260
      %v886 = vunpack.c.l.b16 %v261
      %v887 = vunpack.c.l.b16 %v262
      %v888 = vunpack.c.l.b16 %v263
      %v889 = vunpack.c.l.b16 %v264
      %v890 = vunpack.c.l.b16 %v265
      %v891 = vunpack.c.l.b16 %v266
      %v892 = vunpack.c.l.b16 %v267
      %v893 = vunpack.c.l.b16 %v268
      %v894 = vunpack.c.l.b16 %v269
      %v895 = vunpack.c.l.b16 %v270
      %v896 = vunpack.c.l.b16 %v271
      %v897 = vunpack.c.l.b16 %v272
      %v898 = vunpack.c.l.b16 %v273
      %v899 = vunpack.c.l.b16 %v274
      %v900 = vunpack.c.l.b16 %v275
      %v901 = vunpack.c.l.b16 %v276
      %v902 = vunpack.c.l.b16 %v277
      %v903 = vunpack.c.l.b16 %v278
      %v904 = vunpack.c.l.b16 %v279
      %v905 = vunpack.c.l.b16 %v280
      %v906 = vunpack.c.l.b16 %v281
      %v907 = vunpack.c.l.b16 %v282
      %v908 = vunpack.c.l.b16 %v283
      %v909 = vunpack.c.l.b16 %v284
      %v910 = vunpack.c.l.b16 %v285
      %v911 = vunpack.c.l.b16 %v286
      %v912 = vunpack.c.l.b16 %v287
      %v913 = vpack.c.b16 %v882, %v881
      %v914 = vpack.c.b16 %v884, %v883
      %v915 = vpack.c.b16 %v886, %v885
      %v916 = vpack.c.b16 %v888, %v887
      %v917 = vpack.c.b16 %v890, %v889
      %v918 = vpack.c.b16 %v892, %v891
      %v919 = vpack.c.b16 %v894, %v893
      %v920 = vpack.c.b16 %v896, %v895
      %v921 = vpack.c.b16 %v898, %v897
      %v922 = vpack.c.b16 %v900, %v899
      %v923 = vpack.c.b16 %v902, %v901
      %v924 = vpack.c.b16 %v904, %v903
      %v925 = vpack.c.b16 %v906, %v905
      %v926 = vpack.c.b16 %v908, %v907
      %v927 = vpack.c.b16 %v910, %v909
      %v928 = vpack.c.b16 %v912, %v911
      %v934 = vunpack.c.l.b16 %v837
      %v935 = vunpack.c.l.b16 %v838
      %v936 = vunpack.c.l.b16 %v839
      %v937 = vunpack.c.l.b16 %v840
      %v938 = vunpack.c.l.b16 %v841
      %v939 = vpack.c.b16 %v935, %v934
      %v940 = vpack.c.b16 %v937, %v936
      %v941 = vpack.c.b16 %v938, %v938
      %vm944 = vcmask 269312
      %v946 = vsel %vm944, %v913, 0
      %v949 = vsel %vm944, %v914, 0
      %v952 = vsel %vm944, %v915, 0
      %v955 = vsel %vm944, %v916, 0
      %v958 = vsel %vm944, %v917, 0
      %v961 = vsel %vm944, %v918, 0
      %v964 = vsel %vm944, %v919, 0
      %v967 = vsel %vm944, %v920, 0
      %v970 = vsel %vm944, %v921, 0
      %v973 = vsel %vm944, %v922, 0
      %v976 = vsel %vm944, %v923, 0
      %v979 = vsel %vm944, %v924, 0
      %v982 = vsel %vm944, %v925, 0
      %v985 = vsel %vm944, %v926, 0
      %v988 = vsel %vm944, %v927, 0
      %v991 = vsel %vm944, %v928, 0
      %vm993 = vcmask 1040384
      %v994 = vsel 0, 4294967295, 65535
      %v995 = vsel %vm993, %v994, 0
      %v997 = vand.u32 %v941, %v995
      %999 = vmatprep.subr.bf16.mxu0 0
      %1000 = vmatpush1.bf16.msra.mxu0 0
      %1001 = vmatprep.subr.bf16.mxu0 0
      %1002 = vmatpush1.bf16.msra.mxu0 0
      %1003 = vmatprep.subr.bf16.mxu0 0
      %1004 = vmatpush1.bf16.msra.mxu0 0
      %1005 = vmatprep.subr.bf16.mxu0 0
      %1006 = vmatpush1.bf16.msra.mxu0 0
      %1007 = vmatprep.subr.bf16.mxu0 0
      %1008 = vmatpush1.bf16.msra.mxu0 0
      %1009 = vmatprep.subr.bf16.mxu0 0
      %1010 = vmatpush1.bf16.msra.mxu0 %v997
      %1011 = vmatprep.subr.bf16.mxu0 0
      %1012 = vmatpush1.bf16.msra.mxu0 %v940
      %1013 = vmatprep.subr.bf16.mxu0 0
      %1014 = vmatpush1.bf16.msra.mxu0 %v939
      %1015 = vmatprep.subr.bf16.mxu0 0
      %1016 = vmatpush2.bf16.msra.mxu0 0
      %1017 = vmatprep.subr.bf16.mxu0 0
      %1018 = vmatpush2.bf16.msra.mxu0 0
      %1019 = vmatprep.subr.bf16.mxu0 0
      %1020 = vmatpush2.bf16.msra.mxu0 0
      %1021 = vmatprep.subr.bf16.mxu0 0
      %1022 = vmatpush2.bf16.msra.mxu0 0
      %1023 = vmatprep.subr.bf16.mxu0 0
      %1024 = vmatpush2.bf16.msra.mxu0 0
      %1025 = vmatprep.subr.bf16.mxu0 0
      %1026 = vmatpush2.bf16.msra.mxu0 0
      %1027 = vmatprep.subr.bf16.mxu0 0
      %1028 = vmatpush2.bf16.msra.mxu0 0
      %1029 = vmatprep.subr.bf16.mxu0 0
      %1030 = vmatpush2.bf16.msra.mxu0 0
      %1031 = vmatprep.mubr.bf16.mxu0 0
      %1032 = vmatmul.mubr.bf16.gmra.mxu0 %v946
      %v1033 = vpop.f32.mrf.mxu0
      %v1034 = vadd.f32 %v847, %v1033
      %v1035 = vpop.f32.mrf.mxu0
      %v1036 = vpop.f32.mrf.mxu0
      %v1037 = vadd.f32 %v847, %v1036
      %v1038 = vpop.f32.mrf.mxu0
      %1039 = vmatprep.mubr.bf16.mxu0 0
      %1040 = vmatmul.mubr.bf16.gmra.mxu0 %v949
      %v1041 = vpop.f32.mrf.mxu0
      %v1042 = vadd.f32 %v847, %v1041
      %v1043 = vpop.f32.mrf.mxu0
      %v1044 = vpop.f32.mrf.mxu0
      %v1045 = vadd.f32 %v847, %v1044
      %v1046 = vpop.f32.mrf.mxu0
      %1047 = vmatprep.mubr.bf16.mxu0 0
      %1048 = vmatmul.mubr.bf16.gmra.mxu0 %v952
      %v1049 = vpop.f32.mrf.mxu0
      %v1050 = vadd.f32 %v847, %v1049
      %v1051 = vpop.f32.mrf.mxu0
      %v1052 = vpop.f32.mrf.mxu0
      %v1053 = vadd.f32 %v847, %v1052
      %v1054 = vpop.f32.mrf.mxu0
      %1055 = vmatprep.mubr.bf16.mxu0 0
      %1056 = vmatmul.mubr.bf16.gmra.mxu0 %v955
      %v1057 = vpop.f32.mrf.mxu0
      %v1058 = vadd.f32 %v847, %v1057
      %v1059 = vpop.f32.mrf.mxu0
      %v1060 = vpop.f32.mrf.mxu0
      %v1061 = vadd.f32 %v847, %v1060
      %v1062 = vpop.f32.mrf.mxu0
      %1063 = vmatprep.mubr.bf16.mxu0 0
      %1064 = vmatmul.mubr.bf16.gmra.mxu0 %v958
      %v1065 = vpop.f32.mrf.mxu0
      %v1066 = vadd.f32 %v847, %v1065
      %v1067 = vpop.f32.mrf.mxu0
      %v1068 = vpop.f32.mrf.mxu0
      %v1069 = vadd.f32 %v847, %v1068
      %v1070 = vpop.f32.mrf.mxu0
      %1071 = vmatprep.mubr.bf16.mxu0 0
      %1072 = vmatmul.mubr.bf16.gmra.mxu0 %v961
      %v1073 = vpop.f32.mrf.mxu0
      %v1074 = vadd.f32 %v847, %v1073
      %v1075 = vpop.f32.mrf.mxu0
      %v1076 = vpop.f32.mrf.mxu0
      %v1077 = vadd.f32 %v847, %v1076
      %v1078 = vpop.f32.mrf.mxu0
      %1079 = vmatprep.mubr.bf16.mxu0 0
      %1080 = vmatmul.mubr.bf16.gmra.mxu0 %v964
      %v1081 = vpop.f32.mrf.mxu0
      %v1082 = vadd.f32 %v847, %v1081
      %v1083 = vpop.f32.mrf.mxu0
      %v1084 = vpop.f32.mrf.mxu0
      %v1085 = vadd.f32 %v847, %v1084
      %v1086 = vpop.f32.mrf.mxu0
      %1087 = vmatprep.mubr.bf16.mxu0 0
      %1088 = vmatmul.mubr.bf16.gmra.mxu0 %v967
      %v1089 = vpop.f32.mrf.mxu0
      %v1090 = vadd.f32 %v847, %v1089
      %v1091 = vpop.f32.mrf.mxu0
      %v1092 = vpop.f32.mrf.mxu0
      %v1093 = vadd.f32 %v847, %v1092
      %v1094 = vpop.f32.mrf.mxu0
      %1095 = vmatprep.mubr.bf16.mxu0 0
      %1096 = vmatmul.mubr.bf16.gmra.mxu0 %v970
      %v1097 = vpop.f32.mrf.mxu0
      %v1098 = vadd.f32 %v847, %v1097
      %v1099 = vpop.f32.mrf.mxu0
      %v1100 = vpop.f32.mrf.mxu0
      %v1101 = vadd.f32 %v847, %v1100
      %v1102 = vpop.f32.mrf.mxu0
      %1103 = vmatprep.mubr.bf16.mxu0 0
      %1104 = vmatmul.mubr.bf16.gmra.mxu0 %v973
      %v1105 = vpop.f32.mrf.mxu0
      %v1106 = vadd.f32 %v847, %v1105
      %v1107 = vpop.f32.mrf.mxu0
      %v1108 = vpop.f32.mrf.mxu0
      %v1109 = vadd.f32 %v847, %v1108
      %v1110 = vpop.f32.mrf.mxu0
      %1111 = vmatprep.mubr.bf16.mxu0 0
      %1112 = vmatmul.mubr.bf16.gmra.mxu0 %v976
      %v1113 = vpop.f32.mrf.mxu0
      %v1114 = vadd.f32 %v847, %v1113
      %v1115 = vpop.f32.mrf.mxu0
      %v1116 = vpop.f32.mrf.mxu0
      %v1117 = vadd.f32 %v847, %v1116
      %v1118 = vpop.f32.mrf.mxu0
      %1119 = vmatprep.mubr.bf16.mxu0 0
      %1120 = vmatmul.mubr.bf16.gmra.mxu0 %v979
      %v1121 = vpop.f32.mrf.mxu0
      %v1122 = vadd.f32 %v847, %v1121
      %v1123 = vpop.f32.mrf.mxu0
      %v1124 = vpop.f32.mrf.mxu0
      %v1125 = vadd.f32 %v847, %v1124
      %v1126 = vpop.f32.mrf.mxu0
      %1127 = vmatprep.mubr.bf16.mxu0 0
      %1128 = vmatmul.mubr.bf16.gmra.mxu0 %v982
      %v1129 = vpop.f32.mrf.mxu0
      %v1130 = vadd.f32 %v847, %v1129
      %v1131 = vpop.f32.mrf.mxu0
      %v1132 = vpop.f32.mrf.mxu0
      %v1133 = vadd.f32 %v847, %v1132
      %v1134 = vpop.f32.mrf.mxu0
      %1135 = vmatprep.mubr.bf16.mxu0 0
      %1136 = vmatmul.mubr.bf16.gmra.mxu0 %v985
      %v1137 = vpop.f32.mrf.mxu0
      %v1138 = vadd.f32 %v847, %v1137
      %v1139 = vpop.f32.mrf.mxu0
      %v1140 = vpop.f32.mrf.mxu0
      %v1141 = vadd.f32 %v847, %v1140
      %v1142 = vpop.f32.mrf.mxu0
      %1143 = vmatprep.mubr.bf16.mxu0 0
      %1144 = vmatmul.mubr.bf16.gmra.mxu0 %v988
      %v1145 = vpop.f32.mrf.mxu0
      %v1146 = vadd.f32 %v847, %v1145
      %v1147 = vpop.f32.mrf.mxu0
      %v1148 = vpop.f32.mrf.mxu0
      %v1149 = vadd.f32 %v847, %v1148
      %v1150 = vpop.f32.mrf.mxu0
      %1151 = vmatprep.mubr.bf16.mxu0 0
      %1152 = vmatmul.mubr.bf16.gmra.mxu0 %v991
      %v1153 = vpop.f32.mrf.mxu0
      %v1154 = vadd.f32 %v847, %v1153
      %v1155 = vpop.f32.mrf.mxu0
      %v1156 = vpop.f32.mrf.mxu0
      %v1157 = vadd.f32 %v847, %v1156
      %v1158 = vpop.f32.mrf.mxu0
      %1159 = vdwg.mxu0
      %v1160 = vpack.c.bf16 %v580, %v579
      %v1161 = vpack.c.bf16 %v582, %v581
      %v1162 = vpack.c.bf16 %v584, %v583
      %v1163 = vpack.c.bf16 %v586, %v585
      %v1164 = vpack.c.bf16 %v588, %v587
      %v1165 = vpack.c.bf16 %v590, %v589
      %v1166 = vpack.c.bf16 %v592, %v591
      %v1167 = vpack.c.bf16 %v594, %v593
      %v1168 = vpack.c.bf16 %v596, %v595
      %v1169 = vpack.c.bf16 %v598, %v597
      %v1170 = vpack.c.bf16 %v600, %v599
      %v1171 = vpack.c.bf16 %v602, %v601
      %v1172 = vpack.c.bf16 %v604, %v603
      %v1173 = vpack.c.bf16 %v606, %v605
      %v1174 = vpack.c.bf16 %v608, %v607
      %v1175 = vpack.c.bf16 %v610, %v609
      %s1176 = scalar_lea.vmem %s2, 60
      %v1177 = vld [vmem:[%s1176] sm:$0xf]
      %v1178 = vld [vmem:[%s1176 + $0x4] sm:$0xf]
      %v1179 = vld [vmem:[%s1176 + $0x8] sm:$0xf]
      %v1180 = vld [vmem:[%s1176 + $0xc] sm:$0xf]
      %v1181 = vld [vmem:[%s1176 + $0x10] sm:$0x1]
      %v1182 = vpack.c.bf16 %v805, %v804
      %v1183 = vpack.c.bf16 %v807, %v806
      %v1184 = vpack.c.bf16 %v809, %v808
      %v1185 = vpack.c.bf16 %v811, %v810
      %v1186 = vpack.c.bf16 %v813, %v812
      %v1187 = vpack.c.bf16 %v815, %v814
      %v1188 = vpack.c.bf16 %v817, %v816
      %v1189 = vpack.c.bf16 %v819, %v818
      %v1190 = vpack.c.bf16 %v821, %v820
      %v1191 = vpack.c.bf16 %v823, %v822
      %v1192 = vpack.c.bf16 %v825, %v824
      %v1193 = vpack.c.bf16 %v827, %v826
      %v1194 = vpack.c.bf16 %v829, %v828
      %v1195 = vpack.c.bf16 %v831, %v830
      %v1196 = vpack.c.bf16 %v833, %v832
      %v1197 = vpack.c.bf16 %v835, %v834
      %s1198 = scalar_lea.vmem %s2, 100
      %v1199 = vld [vmem:[%s1198] sm:$0xf]
      %v1200 = vld [vmem:[%s1198 + $0x4] sm:$0xf]
      %v1201 = vld [vmem:[%s1198 + $0x8] sm:$0xf]
      %v1202 = vld [vmem:[%s1198 + $0xc] sm:$0xf]
      %v1203 = vld [vmem:[%s1198 + $0x10] sm:$0x1]
      %v1209 = vunpack.c.l.b16 %v1199
      %v1210 = vunpack.c.l.b16 %v1200
      %v1211 = vunpack.c.l.b16 %v1201
      %v1212 = vunpack.c.l.b16 %v1202
      %v1213 = vunpack.c.l.b16 %v1203
      %v1214 = vpack.c.b16 %v1210, %v1209
      %v1215 = vpack.c.b16 %v1212, %v1211
      %v1216 = vpack.c.b16 %v1213, %v1213
      %v1220 = vsel %vm944, %v1182, 0
      %v1223 = vsel %vm944, %v1183, 0
      %v1226 = vsel %vm944, %v1184, 0
      %v1229 = vsel %vm944, %v1185, 0
      %v1232 = vsel %vm944, %v1186, 0
      %v1235 = vsel %vm944, %v1187, 0
      %v1238 = vsel %vm944, %v1188, 0
      %v1241 = vsel %vm944, %v1189, 0
      %v1244 = vsel %vm944, %v1190, 0
      %v1247 = vsel %vm944, %v1191, 0
      %v1250 = vsel %vm944, %v1192, 0
      %v1253 = vsel %vm944, %v1193, 0
      %v1256 = vsel %vm944, %v1194, 0
      %v1259 = vsel %vm944, %v1195, 0
      %v1262 = vsel %vm944, %v1196, 0
      %v1265 = vsel %vm944, %v1197, 0
      %v1268 = vand.u32 %v1216, %v995
      %1270 = vmatprep.subr.bf16.mxu0 0
      %1271 = vmatpush1.bf16.msra.mxu0 0
      %1272 = vmatprep.subr.bf16.mxu0 0
      %1273 = vmatpush1.bf16.msra.mxu0 0
      %1274 = vmatprep.subr.bf16.mxu0 0
      %1275 = vmatpush1.bf16.msra.mxu0 0
      %1276 = vmatprep.subr.bf16.mxu0 0
      %1277 = vmatpush1.bf16.msra.mxu0 0
      %1278 = vmatprep.subr.bf16.mxu0 0
      %1279 = vmatpush1.bf16.msra.mxu0 0
      %1280 = vmatprep.subr.bf16.mxu0 0
      %1281 = vmatpush1.bf16.msra.mxu0 %v1268
      %1282 = vmatprep.subr.bf16.mxu0 0
      %1283 = vmatpush1.bf16.msra.mxu0 %v1215
      %1284 = vmatprep.subr.bf16.mxu0 0
      %1285 = vmatpush1.bf16.msra.mxu0 %v1214
      %1286 = vmatprep.subr.bf16.mxu0 0
      %1287 = vmatpush2.bf16.msra.mxu0 0
      %1288 = vmatprep.subr.bf16.mxu0 0
      %1289 = vmatpush2.bf16.msra.mxu0 0
      %1290 = vmatprep.subr.bf16.mxu0 0
      %1291 = vmatpush2.bf16.msra.mxu0 0
      %1292 = vmatprep.subr.bf16.mxu0 0
      %1293 = vmatpush2.bf16.msra.mxu0 0
      %1294 = vmatprep.subr.bf16.mxu0 0
      %1295 = vmatpush2.bf16.msra.mxu0 0
      %1296 = vmatprep.subr.bf16.mxu0 0
      %1297 = vmatpush2.bf16.msra.mxu0 0
      %1298 = vmatprep.subr.bf16.mxu0 0
      %1299 = vmatpush2.bf16.msra.mxu0 0
      %1300 = vmatprep.subr.bf16.mxu0 0
      %1301 = vmatpush2.bf16.msra.mxu0 0
      %1302 = vmatprep.mubr.bf16.mxu0 0
      %1303 = vmatmul.mubr.bf16.gmra.mxu0 %v1220
      %v1304 = vpop.f32.mrf.mxu0
      %v1305 = vadd.f32 0.0, %v1304
      %v1306 = vpop.f32.mrf.mxu0
      %v1307 = vpop.f32.mrf.mxu0
      %v1308 = vadd.f32 0.0, %v1307
      %v1309 = vpop.f32.mrf.mxu0
      %1310 = vmatprep.mubr.bf16.mxu0 0
      %1311 = vmatmul.mubr.bf16.gmra.mxu0 %v1223
      %v1312 = vpop.f32.mrf.mxu0
      %v1313 = vadd.f32 0.0, %v1312
      %v1314 = vpop.f32.mrf.mxu0
      %v1315 = vpop.f32.mrf.mxu0
      %v1316 = vadd.f32 0.0, %v1315
      %v1317 = vpop.f32.mrf.mxu0
      %1318 = vmatprep.mubr.bf16.mxu0 0
      %1319 = vmatmul.mubr.bf16.gmra.mxu0 %v1226
      %v1320 = vpop.f32.mrf.mxu0
      %v1321 = vadd.f32 0.0, %v1320
      %v1322 = vpop.f32.mrf.mxu0
      %v1323 = vpop.f32.mrf.mxu0
      %v1324 = vadd.f32 0.0, %v1323
      %v1325 = vpop.f32.mrf.mxu0
      %1326 = vmatprep.mubr.bf16.mxu0 0
      %1327 = vmatmul.mubr.bf16.gmra.mxu0 %v1229
      %v1328 = vpop.f32.mrf.mxu0
      %v1329 = vadd.f32 0.0, %v1328
      %v1330 = vpop.f32.mrf.mxu0
      %v1331 = vpop.f32.mrf.mxu0
      %v1332 = vadd.f32 0.0, %v1331
      %v1333 = vpop.f32.mrf.mxu0
      %1334 = vmatprep.mubr.bf16.mxu0 0
      %1335 = vmatmul.mubr.bf16.gmra.mxu0 %v1232
      %v1336 = vpop.f32.mrf.mxu0
      %v1337 = vadd.f32 0.0, %v1336
      %v1338 = vpop.f32.mrf.mxu0
      %v1339 = vpop.f32.mrf.mxu0
      %v1340 = vadd.f32 0.0, %v1339
      %v1341 = vpop.f32.mrf.mxu0
      %1342 = vmatprep.mubr.bf16.mxu0 0
      %1343 = vmatmul.mubr.bf16.gmra.mxu0 %v1235
      %v1344 = vpop.f32.mrf.mxu0
      %v1345 = vadd.f32 0.0, %v1344
      %v1346 = vpop.f32.mrf.mxu0
      %v1347 = vpop.f32.mrf.mxu0
      %v1348 = vadd.f32 0.0, %v1347
      %v1349 = vpop.f32.mrf.mxu0
      %1350 = vmatprep.mubr.bf16.mxu0 0
      %1351 = vmatmul.mubr.bf16.gmra.mxu0 %v1238
      %v1352 = vpop.f32.mrf.mxu0
      %v1353 = vadd.f32 0.0, %v1352
      %v1354 = vpop.f32.mrf.mxu0
      %v1355 = vpop.f32.mrf.mxu0
      %v1356 = vadd.f32 0.0, %v1355
      %v1357 = vpop.f32.mrf.mxu0
      %1358 = vmatprep.mubr.bf16.mxu0 0
      %1359 = vmatmul.mubr.bf16.gmra.mxu0 %v1241
      %v1360 = vpop.f32.mrf.mxu0
      %v1361 = vadd.f32 0.0, %v1360
      %v1362 = vpop.f32.mrf.mxu0
      %v1363 = vpop.f32.mrf.mxu0
      %v1364 = vadd.f32 0.0, %v1363
      %v1365 = vpop.f32.mrf.mxu0
      %1366 = vmatprep.mubr.bf16.mxu0 0
      %1367 = vmatmul.mubr.bf16.gmra.mxu0 %v1244
      %v1368 = vpop.f32.mrf.mxu0
      %v1369 = vadd.f32 0.0, %v1368
      %v1370 = vpop.f32.mrf.mxu0
      %v1371 = vpop.f32.mrf.mxu0
      %v1372 = vadd.f32 0.0, %v1371
      %v1373 = vpop.f32.mrf.mxu0
      %1374 = vmatprep.mubr.bf16.mxu0 0
      %1375 = vmatmul.mubr.bf16.gmra.mxu0 %v1247
      %v1376 = vpop.f32.mrf.mxu0
      %v1377 = vadd.f32 0.0, %v1376
      %v1378 = vpop.f32.mrf.mxu0
      %v1379 = vpop.f32.mrf.mxu0
      %v1380 = vadd.f32 0.0, %v1379
      %v1381 = vpop.f32.mrf.mxu0
      %1382 = vmatprep.mubr.bf16.mxu0 0
      %1383 = vmatmul.mubr.bf16.gmra.mxu0 %v1250
      %v1384 = vpop.f32.mrf.mxu0
      %v1385 = vadd.f32 0.0, %v1384
      %v1386 = vpop.f32.mrf.mxu0
      %v1387 = vpop.f32.mrf.mxu0
      %v1388 = vadd.f32 0.0, %v1387
      %v1389 = vpop.f32.mrf.mxu0
      %1390 = vmatprep.mubr.bf16.mxu0 0
      %1391 = vmatmul.mubr.bf16.gmra.mxu0 %v1253
      %v1392 = vpop.f32.mrf.mxu0
      %v1393 = vadd.f32 0.0, %v1392
      %v1394 = vpop.f32.mrf.mxu0
      %v1395 = vpop.f32.mrf.mxu0
      %v1396 = vadd.f32 0.0, %v1395
      %v1397 = vpop.f32.mrf.mxu0
      %1398 = vmatprep.mubr.bf16.mxu0 0
      %1399 = vmatmul.mubr.bf16.gmra.mxu0 %v1256
      %v1400 = vpop.f32.mrf.mxu0
      %v1401 = vadd.f32 0.0, %v1400
      %v1402 = vpop.f32.mrf.mxu0
      %v1403 = vpop.f32.mrf.mxu0
      %v1404 = vadd.f32 0.0, %v1403
      %v1405 = vpop.f32.mrf.mxu0
      %1406 = vmatprep.mubr.bf16.mxu0 0
      %1407 = vmatmul.mubr.bf16.gmra.mxu0 %v1259
      %v1408 = vpop.f32.mrf.mxu0
      %v1409 = vadd.f32 0.0, %v1408
      %v1410 = vpop.f32.mrf.mxu0
      %v1411 = vpop.f32.mrf.mxu0
      %v1412 = vadd.f32 0.0, %v1411
      %v1413 = vpop.f32.mrf.mxu0
      %1414 = vmatprep.mubr.bf16.mxu0 0
      %1415 = vmatmul.mubr.bf16.gmra.mxu0 %v1262
      %v1416 = vpop.f32.mrf.mxu0
      %v1417 = vadd.f32 0.0, %v1416
      %v1418 = vpop.f32.mrf.mxu0
      %v1419 = vpop.f32.mrf.mxu0
      %v1420 = vadd.f32 0.0, %v1419
      %v1421 = vpop.f32.mrf.mxu0
      %1422 = vmatprep.mubr.bf16.mxu0 0
      %1423 = vmatmul.mubr.bf16.gmra.mxu0 %v1265
      %v1424 = vpop.f32.mrf.mxu0
      %v1425 = vadd.f32 0.0, %v1424
      %v1426 = vpop.f32.mrf.mxu0
      %v1427 = vpop.f32.mrf.mxu0
      %v1428 = vadd.f32 0.0, %v1427
      %v1429 = vpop.f32.mrf.mxu0
      %1430 = vdwg.mxu0
      %v1436 = vunpack.c.l.b16 %v1177
      %v1437 = vunpack.c.l.b16 %v1178
      %v1438 = vunpack.c.l.b16 %v1179
      %v1439 = vunpack.c.l.b16 %v1180
      %v1440 = vunpack.c.l.b16 %v1181
      %v1441 = vpack.c.b16 %v1437, %v1436
      %v1442 = vpack.c.b16 %v1439, %v1438
      %v1443 = vpack.c.b16 %v1440, %v1440
      %v1447 = vsel %vm944, %v1160, 0
      %v1450 = vsel %vm944, %v1161, 0
      %v1453 = vsel %vm944, %v1162, 0
      %v1456 = vsel %vm944, %v1163, 0
      %v1459 = vsel %vm944, %v1164, 0
      %v1462 = vsel %vm944, %v1165, 0
      %v1465 = vsel %vm944, %v1166, 0
      %v1468 = vsel %vm944, %v1167, 0
      %v1471 = vsel %vm944, %v1168, 0
      %v1474 = vsel %vm944, %v1169, 0
      %v1477 = vsel %vm944, %v1170, 0
      %v1480 = vsel %vm944, %v1171, 0
      %v1483 = vsel %vm944, %v1172, 0
      %v1486 = vsel %vm944, %v1173, 0
      %v1489 = vsel %vm944, %v1174, 0
      %v1492 = vsel %vm944, %v1175, 0
      %v1495 = vand.u32 %v1443, %v995
      %1497 = vmatprep.subr.bf16.mxu0 0
      %1498 = vmatpush1.bf16.msra.mxu0 0
      %1499 = vmatprep.subr.bf16.mxu0 0
      %1500 = vmatpush1.bf16.msra.mxu0 0
      %1501 = vmatprep.subr.bf16.mxu0 0
      %1502 = vmatpush1.bf16.msra.mxu0 0
      %1503 = vmatprep.subr.bf16.mxu0 0
      %1504 = vmatpush1.bf16.msra.mxu0 0
      %1505 = vmatprep.subr.bf16.mxu0 0
      %1506 = vmatpush1.bf16.msra.mxu0 0
      %1507 = vmatprep.subr.bf16.mxu0 0
      %1508 = vmatpush1.bf16.msra.mxu0 %v1495
      %1509 = vmatprep.subr.bf16.mxu0 0
      %1510 = vmatpush1.bf16.msra.mxu0 %v1442
      %1511 = vmatprep.subr.bf16.mxu0 0
      %1512 = vmatpush1.bf16.msra.mxu0 %v1441
      %1513 = vmatprep.subr.bf16.mxu0 0
      %1514 = vmatpush2.bf16.msra.mxu0 0
      %1515 = vmatprep.subr.bf16.mxu0 0
      %1516 = vmatpush2.bf16.msra.mxu0 0
      %1517 = vmatprep.subr.bf16.mxu0 0
      %1518 = vmatpush2.bf16.msra.mxu0 0
      %1519 = vmatprep.subr.bf16.mxu0 0
      %1520 = vmatpush2.bf16.msra.mxu0 0
      %1521 = vmatprep.subr.bf16.mxu0 0
      %1522 = vmatpush2.bf16.msra.mxu0 0
      %1523 = vmatprep.subr.bf16.mxu0 0
      %1524 = vmatpush2.bf16.msra.mxu0 0
      %1525 = vmatprep.subr.bf16.mxu0 0
      %1526 = vmatpush2.bf16.msra.mxu0 0
      %1527 = vmatprep.subr.bf16.mxu0 0
      %1528 = vmatpush2.bf16.msra.mxu0 0
      %1529 = vmatprep.mubr.bf16.mxu0 0
      %1530 = vmatmul.mubr.bf16.gmra.mxu0 %v1447
      %v1531 = vpop.f32.mrf.mxu0
      %v1532 = vadd.f32 %v1305, %v1531
      %v1533 = vpop.f32.mrf.mxu0
      %v1534 = vpop.f32.mrf.mxu0
      %v1535 = vadd.f32 %v1308, %v1534
      %v1536 = vpop.f32.mrf.mxu0
      %1537 = vmatprep.mubr.bf16.mxu0 0
      %1538 = vmatmul.mubr.bf16.gmra.mxu0 %v1450
      %v1539 = vpop.f32.mrf.mxu0
      %v1540 = vadd.f32 %v1313, %v1539
      %v1541 = vpop.f32.mrf.mxu0
      %v1542 = vpop.f32.mrf.mxu0
      %v1543 = vadd.f32 %v1316, %v1542
      %v1544 = vpop.f32.mrf.mxu0
      %1545 = vmatprep.mubr.bf16.mxu0 0
      %1546 = vmatmul.mubr.bf16.gmra.mxu0 %v1453
      %v1547 = vpop.f32.mrf.mxu0
      %v1548 = vadd.f32 %v1321, %v1547
      %v1549 = vpop.f32.mrf.mxu0
      %v1550 = vpop.f32.mrf.mxu0
      %v1551 = vadd.f32 %v1324, %v1550
      %v1552 = vpop.f32.mrf.mxu0
      %1553 = vmatprep.mubr.bf16.mxu0 0
      %1554 = vmatmul.mubr.bf16.gmra.mxu0 %v1456
      %v1555 = vpop.f32.mrf.mxu0
      %v1556 = vadd.f32 %v1329, %v1555
      %v1557 = vpop.f32.mrf.mxu0
      %v1558 = vpop.f32.mrf.mxu0
      %v1559 = vadd.f32 %v1332, %v1558
      %v1560 = vpop.f32.mrf.mxu0
      %1561 = vmatprep.mubr.bf16.mxu0 0
      %1562 = vmatmul.mubr.bf16.gmra.mxu0 %v1459
      %v1563 = vpop.f32.mrf.mxu0
      %v1564 = vadd.f32 %v1337, %v1563
      %v1565 = vpop.f32.mrf.mxu0
      %v1566 = vpop.f32.mrf.mxu0
      %v1567 = vadd.f32 %v1340, %v1566
      %v1568 = vpop.f32.mrf.mxu0
      %1569 = vmatprep.mubr.bf16.mxu0 0
      %1570 = vmatmul.mubr.bf16.gmra.mxu0 %v1462
      %v1571 = vpop.f32.mrf.mxu0
      %v1572 = vadd.f32 %v1345, %v1571
      %v1573 = vpop.f32.mrf.mxu0
      %v1574 = vpop.f32.mrf.mxu0
      %v1575 = vadd.f32 %v1348, %v1574
      %v1576 = vpop.f32.mrf.mxu0
      %1577 = vmatprep.mubr.bf16.mxu0 0
      %1578 = vmatmul.mubr.bf16.gmra.mxu0 %v1465
      %v1579 = vpop.f32.mrf.mxu0
      %v1580 = vadd.f32 %v1353, %v1579
      %v1581 = vpop.f32.mrf.mxu0
      %v1582 = vpop.f32.mrf.mxu0
      %v1583 = vadd.f32 %v1356, %v1582
      %v1584 = vpop.f32.mrf.mxu0
      %1585 = vmatprep.mubr.bf16.mxu0 0
      %1586 = vmatmul.mubr.bf16.gmra.mxu0 %v1468
      %v1587 = vpop.f32.mrf.mxu0
      %v1588 = vadd.f32 %v1361, %v1587
      %v1589 = vpop.f32.mrf.mxu0
      %v1590 = vpop.f32.mrf.mxu0
      %v1591 = vadd.f32 %v1364, %v1590
      %v1592 = vpop.f32.mrf.mxu0
      %1593 = vmatprep.mubr.bf16.mxu0 0
      %1594 = vmatmul.mubr.bf16.gmra.mxu0 %v1471
      %v1595 = vpop.f32.mrf.mxu0
      %v1596 = vadd.f32 %v1369, %v1595
      %v1597 = vpop.f32.mrf.mxu0
      %v1598 = vpop.f32.mrf.mxu0
      %v1599 = vadd.f32 %v1372, %v1598
      %v1600 = vpop.f32.mrf.mxu0
      %1601 = vmatprep.mubr.bf16.mxu0 0
      %1602 = vmatmul.mubr.bf16.gmra.mxu0 %v1474
      %v1603 = vpop.f32.mrf.mxu0
      %v1604 = vadd.f32 %v1377, %v1603
      %v1605 = vpop.f32.mrf.mxu0
      %v1606 = vpop.f32.mrf.mxu0
      %v1607 = vadd.f32 %v1380, %v1606
      %v1608 = vpop.f32.mrf.mxu0
      %1609 = vmatprep.mubr.bf16.mxu0 0
      %1610 = vmatmul.mubr.bf16.gmra.mxu0 %v1477
      %v1611 = vpop.f32.mrf.mxu0
      %v1612 = vadd.f32 %v1385, %v1611
      %v1613 = vpop.f32.mrf.mxu0
      %v1614 = vpop.f32.mrf.mxu0
      %v1615 = vadd.f32 %v1388, %v1614
      %v1616 = vpop.f32.mrf.mxu0
      %1617 = vmatprep.mubr.bf16.mxu0 0
      %1618 = vmatmul.mubr.bf16.gmra.mxu0 %v1480
      %v1619 = vpop.f32.mrf.mxu0
      %v1620 = vadd.f32 %v1393, %v1619
      %v1621 = vpop.f32.mrf.mxu0
      %v1622 = vpop.f32.mrf.mxu0
      %v1623 = vadd.f32 %v1396, %v1622
      %v1624 = vpop.f32.mrf.mxu0
      %1625 = vmatprep.mubr.bf16.mxu0 0
      %1626 = vmatmul.mubr.bf16.gmra.mxu0 %v1483
      %v1627 = vpop.f32.mrf.mxu0
      %v1628 = vadd.f32 %v1401, %v1627
      %v1629 = vpop.f32.mrf.mxu0
      %v1630 = vpop.f32.mrf.mxu0
      %v1631 = vadd.f32 %v1404, %v1630
      %v1632 = vpop.f32.mrf.mxu0
      %1633 = vmatprep.mubr.bf16.mxu0 0
      %1634 = vmatmul.mubr.bf16.gmra.mxu0 %v1486
      %v1635 = vpop.f32.mrf.mxu0
      %v1636 = vadd.f32 %v1409, %v1635
      %v1637 = vpop.f32.mrf.mxu0
      %v1638 = vpop.f32.mrf.mxu0
      %v1639 = vadd.f32 %v1412, %v1638
      %v1640 = vpop.f32.mrf.mxu0
      %1641 = vmatprep.mubr.bf16.mxu0 0
      %1642 = vmatmul.mubr.bf16.gmra.mxu0 %v1489
      %v1643 = vpop.f32.mrf.mxu0
      %v1644 = vadd.f32 %v1417, %v1643
      %v1645 = vpop.f32.mrf.mxu0
      %v1646 = vpop.f32.mrf.mxu0
      %v1647 = vadd.f32 %v1420, %v1646
      %v1648 = vpop.f32.mrf.mxu0
      %1649 = vmatprep.mubr.bf16.mxu0 0
      %1650 = vmatmul.mubr.bf16.gmra.mxu0 %v1492
      %v1651 = vpop.f32.mrf.mxu0
      %v1652 = vadd.f32 %v1425, %v1651
      %v1653 = vpop.f32.mrf.mxu0
      %v1654 = vpop.f32.mrf.mxu0
      %v1655 = vadd.f32 %v1428, %v1654
      %v1656 = vpop.f32.mrf.mxu0
      %1657 = vdwg.mxu0
      %v1658 = vadd.f32 %v1034, %v1532
      %v1659 = vadd.f32 %v1037, %v1535
      %v1660 = vadd.f32 %v1042, %v1540
      %v1661 = vadd.f32 %v1045, %v1543
      %v1662 = vadd.f32 %v1050, %v1548
      %v1663 = vadd.f32 %v1053, %v1551
      %v1664 = vadd.f32 %v1058, %v1556
      %v1665 = vadd.f32 %v1061, %v1559
      %v1666 = vadd.f32 %v1066, %v1564
      %v1667 = vadd.f32 %v1069, %v1567
      %v1668 = vadd.f32 %v1074, %v1572
      %v1669 = vadd.f32 %v1077, %v1575
      %v1670 = vadd.f32 %v1082, %v1580
      %v1671 = vadd.f32 %v1085, %v1583
      %v1672 = vadd.f32 %v1090, %v1588
      %v1673 = vadd.f32 %v1093, %v1591
      %v1674 = vadd.f32 %v1098, %v1596
      %v1675 = vadd.f32 %v1101, %v1599
      %v1676 = vadd.f32 %v1106, %v1604
      %v1677 = vadd.f32 %v1109, %v1607
      %v1678 = vadd.f32 %v1114, %v1612
      %v1679 = vadd.f32 %v1117, %v1615
      %v1680 = vadd.f32 %v1122, %v1620
      %v1681 = vadd.f32 %v1125, %v1623
      %v1682 = vadd.f32 %v1130, %v1628
      %v1683 = vadd.f32 %v1133, %v1631
      %v1684 = vadd.f32 %v1138, %v1636
      %v1685 = vadd.f32 %v1141, %v1639
      %v1686 = vadd.f32 %v1146, %v1644
      %v1687 = vadd.f32 %v1149, %v1647
      %v1688 = vadd.f32 %v1154, %v1652
      %v1689 = vadd.f32 %v1157, %v1655
      %1690 = vset.pattern.permute.xlu0 0
      %1691 = vperm.xlu0 %1690, %v320
      %v1692 = vpop.permute.xlu0 %1691
      %1694 = vset.pattern.permute.xlu0 0
      %1695 = vperm.xlu0 %1694, %v321
      %v1696 = vpop.permute.xlu0 %1695
      %1698 = vset.pattern.permute.xlu0 0
      %1699 = vperm.xlu0 %1698, %v322
      %v1700 = vpop.permute.xlu0 %1699
      %1702 = vset.pattern.permute.xlu0 0
      %1703 = vperm.xlu0 %1702, %v323
      %v1704 = vpop.permute.xlu0 %1703
      %1706 = vset.pattern.permute.xlu0 0
      %1707 = vperm.xlu0 %1706, %v324
      %v1708 = vpop.permute.xlu0 %1707
      %1710 = vset.pattern.permute.xlu0 0
      %1711 = vperm.xlu0 %1710, %v325
      %v1712 = vpop.permute.xlu0 %1711
      %1714 = vset.pattern.permute.xlu0 0
      %1715 = vperm.xlu0 %1714, %v326
      %v1716 = vpop.permute.xlu0 %1715
      %1718 = vset.pattern.permute.xlu0 0
      %1719 = vperm.xlu0 %1718, %v327
      %v1720 = vpop.permute.xlu0 %1719
      %1722 = vset.pattern.permute.xlu0 0
      %1723 = vperm.xlu0 %1722, %v328
      %v1724 = vpop.permute.xlu0 %1723
      %1726 = vset.pattern.permute.xlu0 0
      %1727 = vperm.xlu0 %1726, %v329
      %v1728 = vpop.permute.xlu0 %1727
      %1730 = vset.pattern.permute.xlu0 0
      %1731 = vperm.xlu0 %1730, %v330
      %v1732 = vpop.permute.xlu0 %1731
      %1734 = vset.pattern.permute.xlu0 0
      %1735 = vperm.xlu0 %1734, %v331
      %v1736 = vpop.permute.xlu0 %1735
      %1738 = vset.pattern.permute.xlu0 0
      %1739 = vperm.xlu0 %1738, %v332
      %v1740 = vpop.permute.xlu0 %1739
      %1742 = vset.pattern.permute.xlu0 0
      %1743 = vperm.xlu0 %1742, %v333
      %v1744 = vpop.permute.xlu0 %1743
      %1746 = vset.pattern.permute.xlu0 0
      %1747 = vperm.xlu0 %1746, %v334
      %v1748 = vpop.permute.xlu0 %1747
      %1750 = vset.pattern.permute.xlu0 0
      %1751 = vperm.xlu0 %1750, %v335
      %v1752 = vpop.permute.xlu0 %1751
      %1754 = vset.pattern.permute.xlu0 0
      %1755 = vperm.xlu0 %1754, %v336
      %v1756 = vpop.permute.xlu0 %1755
      %1758 = vset.pattern.permute.xlu0 0
      %1759 = vperm.xlu0 %1758, %v337
      %v1760 = vpop.permute.xlu0 %1759
      %1762 = vset.pattern.permute.xlu0 0
      %1763 = vperm.xlu0 %1762, %v338
      %v1764 = vpop.permute.xlu0 %1763
      %1766 = vset.pattern.permute.xlu0 0
      %1767 = vperm.xlu0 %1766, %v339
      %v1768 = vpop.permute.xlu0 %1767
      %1770 = vset.pattern.permute.xlu0 0
      %1771 = vperm.xlu0 %1770, %v340
      %v1772 = vpop.permute.xlu0 %1771
      %1774 = vset.pattern.permute.xlu0 0
      %1775 = vperm.xlu0 %1774, %v341
      %v1776 = vpop.permute.xlu0 %1775
      %1778 = vset.pattern.permute.xlu0 0
      %1779 = vperm.xlu0 %1778, %v342
      %v1780 = vpop.permute.xlu0 %1779
      %1782 = vset.pattern.permute.xlu0 0
      %1783 = vperm.xlu0 %1782, %v343
      %v1784 = vpop.permute.xlu0 %1783
      %1786 = vset.pattern.permute.xlu0 0
      %1787 = vperm.xlu0 %1786, %v344
      %v1788 = vpop.permute.xlu0 %1787
      %1790 = vset.pattern.permute.xlu0 0
      %1791 = vperm.xlu0 %1790, %v345
      %v1792 = vpop.permute.xlu0 %1791
      %1794 = vset.pattern.permute.xlu0 0
      %1795 = vperm.xlu0 %1794, %v346
      %v1796 = vpop.permute.xlu0 %1795
      %1798 = vset.pattern.permute.xlu0 0
      %1799 = vperm.xlu0 %1798, %v347
      %v1800 = vpop.permute.xlu0 %1799
      %1802 = vset.pattern.permute.xlu0 0
      %1803 = vperm.xlu0 %1802, %v348
      %v1804 = vpop.permute.xlu0 %1803
      %1806 = vset.pattern.permute.xlu0 0
      %1807 = vperm.xlu0 %1806, %v349
      %v1808 = vpop.permute.xlu0 %1807
      %1810 = vset.pattern.permute.xlu0 0
      %1811 = vperm.xlu0 %1810, %v350
      %v1812 = vpop.permute.xlu0 %1811
      %1814 = vset.pattern.permute.xlu0 0
      %1815 = vperm.xlu0 %1814, %v351
      %v1816 = vpop.permute.xlu0 %1815
      %v1818 = vmul.f32 %v609, %v1692
      %v1819 = vmul.f32 %v610, %v1696
      %v1820 = vmul.f32 %v579, %v1700
      %v1821 = vmul.f32 %v580, %v1704
      %v1822 = vmul.f32 %v581, %v1708
      %v1823 = vmul.f32 %v582, %v1712
      %v1824 = vmul.f32 %v583, %v1716
      %v1825 = vmul.f32 %v584, %v1720
      %v1826 = vmul.f32 %v585, %v1724
      %v1827 = vmul.f32 %v586, %v1728
      %v1828 = vmul.f32 %v587, %v1732
      %v1829 = vmul.f32 %v588, %v1736
      %v1830 = vmul.f32 %v589, %v1740
      %v1831 = vmul.f32 %v590, %v1744
      %v1832 = vmul.f32 %v591, %v1748
      %v1833 = vmul.f32 %v592, %v1752
      %v1834 = vmul.f32 %v593, %v1756
      %v1835 = vmul.f32 %v594, %v1760
      %v1836 = vmul.f32 %v595, %v1764
      %v1837 = vmul.f32 %v596, %v1768
      %v1838 = vmul.f32 %v597, %v1772
      %v1839 = vmul.f32 %v598, %v1776
      %v1840 = vmul.f32 %v599, %v1780
      %v1841 = vmul.f32 %v600, %v1784
      %v1842 = vmul.f32 %v601, %v1788
      %v1843 = vmul.f32 %v602, %v1792
      %v1844 = vmul.f32 %v603, %v1796
      %v1845 = vmul.f32 %v604, %v1800
      %v1846 = vmul.f32 %v605, %v1804
      %v1847 = vmul.f32 %v606, %v1808
      %v1848 = vmul.f32 %v607, %v1812
      %v1849 = vmul.f32 %v608, %v1816
      %v1850 = vpack.c.bf16 %v1819, %v1818
      %v1851 = vpack.c.bf16 %v1821, %v1820
      %v1852 = vpack.c.bf16 %v1823, %v1822
      %v1853 = vpack.c.bf16 %v1825, %v1824
      %v1854 = vpack.c.bf16 %v1827, %v1826
      %v1855 = vpack.c.bf16 %v1829, %v1828
      %v1856 = vpack.c.bf16 %v1831, %v1830
      %v1857 = vpack.c.bf16 %v1833, %v1832
      %v1858 = vpack.c.bf16 %v1835, %v1834
      %v1859 = vpack.c.bf16 %v1837, %v1836
      %v1860 = vpack.c.bf16 %v1839, %v1838
      %v1861 = vpack.c.bf16 %v1841, %v1840
      %v1862 = vpack.c.bf16 %v1843, %v1842
      %v1863 = vpack.c.bf16 %v1845, %v1844
      %v1864 = vpack.c.bf16 %v1847, %v1846
      %v1865 = vpack.c.bf16 %v1849, %v1848
      %v1866 = vld [vmem:[%s2] sm:$0xf]
      %v1867 = vld [vmem:[%s2 + $0x4] sm:$0xf]
      %v1868 = vld [vmem:[%s2 + $0x8] sm:$0xf]
      %v1869 = vld [vmem:[%s2 + $0xc] sm:$0xf]
      %v1870 = vld [vmem:[%s2 + $0x10] sm:$0x1]
      %v1871 = vmul.f32 %v318, %v1692
      %v1872 = vmul.f32 %v319, %v1696
      %v1873 = vmul.f32 %v288, %v1700
      %v1874 = vmul.f32 %v289, %v1704
      %v1875 = vmul.f32 %v290, %v1708
      %v1876 = vmul.f32 %v291, %v1712
      %v1877 = vmul.f32 %v292, %v1716
      %v1878 = vmul.f32 %v293, %v1720
      %v1879 = vmul.f32 %v294, %v1724
      %v1880 = vmul.f32 %v295, %v1728
      %v1881 = vmul.f32 %v296, %v1732
      %v1882 = vmul.f32 %v297, %v1736
      %v1883 = vmul.f32 %v298, %v1740
      %v1884 = vmul.f32 %v299, %v1744
      %v1885 = vmul.f32 %v300, %v1748
      %v1886 = vmul.f32 %v301, %v1752
      %v1887 = vmul.f32 %v302, %v1756
      %v1888 = vmul.f32 %v303, %v1760
      %v1889 = vmul.f32 %v304, %v1764
      %v1890 = vmul.f32 %v305, %v1768
      %v1891 = vmul.f32 %v306, %v1772
      %v1892 = vmul.f32 %v307, %v1776
      %v1893 = vmul.f32 %v308, %v1780
      %v1894 = vmul.f32 %v309, %v1784
      %v1895 = vmul.f32 %v310, %v1788
      %v1896 = vmul.f32 %v311, %v1792
      %v1897 = vmul.f32 %v312, %v1796
      %v1898 = vmul.f32 %v313, %v1800
      %v1899 = vmul.f32 %v314, %v1804
      %v1900 = vmul.f32 %v315, %v1808
      %v1901 = vmul.f32 %v316, %v1812
      %v1902 = vmul.f32 %v317, %v1816
      %v1903 = vpack.c.bf16 %v1872, %v1871
      %v1904 = vpack.c.bf16 %v1874, %v1873
      %v1905 = vpack.c.bf16 %v1876, %v1875
      %v1906 = vpack.c.bf16 %v1878, %v1877
      %v1907 = vpack.c.bf16 %v1880, %v1879
      %v1908 = vpack.c.bf16 %v1882, %v1881
      %v1909 = vpack.c.bf16 %v1884, %v1883
      %v1910 = vpack.c.bf16 %v1886, %v1885
      %v1911 = vpack.c.bf16 %v1888, %v1887
      %v1912 = vpack.c.bf16 %v1890, %v1889
      %v1913 = vpack.c.bf16 %v1892, %v1891
      %v1914 = vpack.c.bf16 %v1894, %v1893
      %v1915 = vpack.c.bf16 %v1896, %v1895
      %v1916 = vpack.c.bf16 %v1898, %v1897
      %v1917 = vpack.c.bf16 %v1900, %v1899
      %v1918 = vpack.c.bf16 %v1902, %v1901
      %s1919 = scalar_lea.vmem %s2, 20
      %v1920 = vld [vmem:[%s1919] sm:$0xf]
      %v1921 = vld [vmem:[%s1919 + $0x4] sm:$0xf]
      %v1922 = vld [vmem:[%s1919 + $0x8] sm:$0xf]
      %v1923 = vld [vmem:[%s1919 + $0xc] sm:$0xf]
      %v1924 = vld [vmem:[%s1919 + $0x10] sm:$0x1]
      %v1930 = vunpack.c.l.b16 %v1920
      %v1931 = vunpack.c.l.b16 %v1921
      %v1932 = vunpack.c.l.b16 %v1922
      %v1933 = vunpack.c.l.b16 %v1923
      %v1934 = vunpack.c.l.b16 %v1924
      %v1935 = vpack.c.b16 %v1931, %v1930
      %v1936 = vpack.c.b16 %v1933, %v1932
      %v1937 = vpack.c.b16 %v1934, %v1934
      %v1941 = vsel %vm944, %v1903, 0
      %v1944 = vsel %vm944, %v1904, 0
      %v1947 = vsel %vm944, %v1905, 0
      %v1950 = vsel %vm944, %v1906, 0
      %v1953 = vsel %vm944, %v1907, 0
      %v1956 = vsel %vm944, %v1908, 0
      %v1959 = vsel %vm944, %v1909, 0
      %v1962 = vsel %vm944, %v1910, 0
      %v1965 = vsel %vm944, %v1911, 0
      %v1968 = vsel %vm944, %v1912, 0
      %v1971 = vsel %vm944, %v1913, 0
      %v1974 = vsel %vm944, %v1914, 0
      %v1977 = vsel %vm944, %v1915, 0
      %v1980 = vsel %vm944, %v1916, 0
      %v1983 = vsel %vm944, %v1917, 0
      %v1986 = vsel %vm944, %v1918, 0
      %v1989 = vand.u32 %v1937, %v995
      %1991 = vmatprep.subr.bf16.mxu0 0
      %1992 = vmatpush1.bf16.msra.mxu0 0
      %1993 = vmatprep.subr.bf16.mxu0 0
      %1994 = vmatpush1.bf16.msra.mxu0 0
      %1995 = vmatprep.subr.bf16.mxu0 0
      %1996 = vmatpush1.bf16.msra.mxu0 0
      %1997 = vmatprep.subr.bf16.mxu0 0
      %1998 = vmatpush1.bf16.msra.mxu0 0
      %1999 = vmatprep.subr.bf16.mxu0 0
      %2000 = vmatpush1.bf16.msra.mxu0 0
      %2001 = vmatprep.subr.bf16.mxu0 0
      %2002 = vmatpush1.bf16.msra.mxu0 %v1989
      %2003 = vmatprep.subr.bf16.mxu0 0
      %2004 = vmatpush1.bf16.msra.mxu0 %v1936
      %2005 = vmatprep.subr.bf16.mxu0 0
      %2006 = vmatpush1.bf16.msra.mxu0 %v1935
      %2007 = vmatprep.subr.bf16.mxu0 0
      %2008 = vmatpush2.bf16.msra.mxu0 0
      %2009 = vmatprep.subr.bf16.mxu0 0
      %2010 = vmatpush2.bf16.msra.mxu0 0
      %2011 = vmatprep.subr.bf16.mxu0 0
      %2012 = vmatpush2.bf16.msra.mxu0 0
      %2013 = vmatprep.subr.bf16.mxu0 0
      %2014 = vmatpush2.bf16.msra.mxu0 0
      %2015 = vmatprep.subr.bf16.mxu0 0
      %2016 = vmatpush2.bf16.msra.mxu0 0
      %2017 = vmatprep.subr.bf16.mxu0 0
      %2018 = vmatpush2.bf16.msra.mxu0 0
      %2019 = vmatprep.subr.bf16.mxu0 0
      %2020 = vmatpush2.bf16.msra.mxu0 0
      %2021 = vmatprep.subr.bf16.mxu0 0
      %2022 = vmatpush2.bf16.msra.mxu0 0
      %2023 = vmatprep.mubr.bf16.mxu0 0
      %2024 = vmatmul.mubr.bf16.gmra.mxu0 %v1941
      %v2025 = vpop.f32.mrf.mxu0
      %v2026 = vadd.f32 0.0, %v2025
      %v2027 = vpop.f32.mrf.mxu0
      %v2028 = vpop.f32.mrf.mxu0
      %v2029 = vadd.f32 0.0, %v2028
      %v2030 = vpop.f32.mrf.mxu0
      %2031 = vmatprep.mubr.bf16.mxu0 0
      %2032 = vmatmul.mubr.bf16.gmra.mxu0 %v1944
      %v2033 = vpop.f32.mrf.mxu0
      %v2034 = vadd.f32 0.0, %v2033
      %v2035 = vpop.f32.mrf.mxu0
      %v2036 = vpop.f32.mrf.mxu0
      %v2037 = vadd.f32 0.0, %v2036
      %v2038 = vpop.f32.mrf.mxu0
      %2039 = vmatprep.mubr.bf16.mxu0 0
      %2040 = vmatmul.mubr.bf16.gmra.mxu0 %v1947
      %v2041 = vpop.f32.mrf.mxu0
      %v2042 = vadd.f32 0.0, %v2041
      %v2043 = vpop.f32.mrf.mxu0
      %v2044 = vpop.f32.mrf.mxu0
      %v2045 = vadd.f32 0.0, %v2044
      %v2046 = vpop.f32.mrf.mxu0
      %2047 = vmatprep.mubr.bf16.mxu0 0
      %2048 = vmatmul.mubr.bf16.gmra.mxu0 %v1950
      %v2049 = vpop.f32.mrf.mxu0
      %v2050 = vadd.f32 0.0, %v2049
      %v2051 = vpop.f32.mrf.mxu0
      %v2052 = vpop.f32.mrf.mxu0
      %v2053 = vadd.f32 0.0, %v2052
      %v2054 = vpop.f32.mrf.mxu0
      %2055 = vmatprep.mubr.bf16.mxu0 0
      %2056 = vmatmul.mubr.bf16.gmra.mxu0 %v1953
      %v2057 = vpop.f32.mrf.mxu0
      %v2058 = vadd.f32 0.0, %v2057
      %v2059 = vpop.f32.mrf.mxu0
      %v2060 = vpop.f32.mrf.mxu0
      %v2061 = vadd.f32 0.0, %v2060
      %v2062 = vpop.f32.mrf.mxu0
      %2063 = vmatprep.mubr.bf16.mxu0 0
      %2064 = vmatmul.mubr.bf16.gmra.mxu0 %v1956
      %v2065 = vpop.f32.mrf.mxu0
      %v2066 = vadd.f32 0.0, %v2065
      %v2067 = vpop.f32.mrf.mxu0
      %v2068 = vpop.f32.mrf.mxu0
      %v2069 = vadd.f32 0.0, %v2068
      %v2070 = vpop.f32.mrf.mxu0
      %2071 = vmatprep.mubr.bf16.mxu0 0
      %2072 = vmatmul.mubr.bf16.gmra.mxu0 %v1959
      %v2073 = vpop.f32.mrf.mxu0
      %v2074 = vadd.f32 0.0, %v2073
      %v2075 = vpop.f32.mrf.mxu0
      %v2076 = vpop.f32.mrf.mxu0
      %v2077 = vadd.f32 0.0, %v2076
      %v2078 = vpop.f32.mrf.mxu0
      %2079 = vmatprep.mubr.bf16.mxu0 0
      %2080 = vmatmul.mubr.bf16.gmra.mxu0 %v1962
      %v2081 = vpop.f32.mrf.mxu0
      %v2082 = vadd.f32 0.0, %v2081
      %v2083 = vpop.f32.mrf.mxu0
      %v2084 = vpop.f32.mrf.mxu0
      %v2085 = vadd.f32 0.0, %v2084
      %v2086 = vpop.f32.mrf.mxu0
      %2087 = vmatprep.mubr.bf16.mxu0 0
      %2088 = vmatmul.mubr.bf16.gmra.mxu0 %v1965
      %v2089 = vpop.f32.mrf.mxu0
      %v2090 = vadd.f32 0.0, %v2089
      %v2091 = vpop.f32.mrf.mxu0
      %v2092 = vpop.f32.mrf.mxu0
      %v2093 = vadd.f32 0.0, %v2092
      %v2094 = vpop.f32.mrf.mxu0
      %2095 = vmatprep.mubr.bf16.mxu0 0
      %2096 = vmatmul.mubr.bf16.gmra.mxu0 %v1968
      %v2097 = vpop.f32.mrf.mxu0
      %v2098 = vadd.f32 0.0, %v2097
      %v2099 = vpop.f32.mrf.mxu0
      %v2100 = vpop.f32.mrf.mxu0
      %v2101 = vadd.f32 0.0, %v2100
      %v2102 = vpop.f32.mrf.mxu0
      %2103 = vmatprep.mubr.bf16.mxu0 0
      %2104 = vmatmul.mubr.bf16.gmra.mxu0 %v1971
      %v2105 = vpop.f32.mrf.mxu0
      %v2106 = vadd.f32 0.0, %v2105
      %v2107 = vpop.f32.mrf.mxu0
      %v2108 = vpop.f32.mrf.mxu0
      %v2109 = vadd.f32 0.0, %v2108
      %v2110 = vpop.f32.mrf.mxu0
      %2111 = vmatprep.mubr.bf16.mxu0 0
      %2112 = vmatmul.mubr.bf16.gmra.mxu0 %v1974
      %v2113 = vpop.f32.mrf.mxu0
      %v2114 = vadd.f32 0.0, %v2113
      %v2115 = vpop.f32.mrf.mxu0
      %v2116 = vpop.f32.mrf.mxu0
      %v2117 = vadd.f32 0.0, %v2116
      %v2118 = vpop.f32.mrf.mxu0
      %2119 = vmatprep.mubr.bf16.mxu0 0
      %2120 = vmatmul.mubr.bf16.gmra.mxu0 %v1977
      %v2121 = vpop.f32.mrf.mxu0
      %v2122 = vadd.f32 0.0, %v2121
      %v2123 = vpop.f32.mrf.mxu0
      %v2124 = vpop.f32.mrf.mxu0
      %v2125 = vadd.f32 0.0, %v2124
      %v2126 = vpop.f32.mrf.mxu0
      %2127 = vmatprep.mubr.bf16.mxu0 0
      %2128 = vmatmul.mubr.bf16.gmra.mxu0 %v1980
      %v2129 = vpop.f32.mrf.mxu0
      %v2130 = vadd.f32 0.0, %v2129
      %v2131 = vpop.f32.mrf.mxu0
      %v2132 = vpop.f32.mrf.mxu0
      %v2133 = vadd.f32 0.0, %v2132
      %v2134 = vpop.f32.mrf.mxu0
      %2135 = vmatprep.mubr.bf16.mxu0 0
      %2136 = vmatmul.mubr.bf16.gmra.mxu0 %v1983
      %v2137 = vpop.f32.mrf.mxu0
      %v2138 = vadd.f32 0.0, %v2137
      %v2139 = vpop.f32.mrf.mxu0
      %v2140 = vpop.f32.mrf.mxu0
      %v2141 = vadd.f32 0.0, %v2140
      %v2142 = vpop.f32.mrf.mxu0
      %2143 = vmatprep.mubr.bf16.mxu0 0
      %2144 = vmatmul.mubr.bf16.gmra.mxu0 %v1986
      %v2145 = vpop.f32.mrf.mxu0
      %v2146 = vadd.f32 0.0, %v2145
      %v2147 = vpop.f32.mrf.mxu0
      %v2148 = vpop.f32.mrf.mxu0
      %v2149 = vadd.f32 0.0, %v2148
      %v2150 = vpop.f32.mrf.mxu0
      %2151 = vdwg.mxu0
      %v2157 = vunpack.c.l.b16 %v1866
      %v2158 = vunpack.c.l.b16 %v1867
      %v2159 = vunpack.c.l.b16 %v1868
      %v2160 = vunpack.c.l.b16 %v1869
      %v2161 = vunpack.c.l.b16 %v1870
      %v2162 = vpack.c.b16 %v2158, %v2157
      %v2163 = vpack.c.b16 %v2160, %v2159
      %v2164 = vpack.c.b16 %v2161, %v2161
      %v2168 = vsel %vm944, %v1850, 0
      %v2171 = vsel %vm944, %v1851, 0
      %v2174 = vsel %vm944, %v1852, 0
      %v2177 = vsel %vm944, %v1853, 0
      %v2180 = vsel %vm944, %v1854, 0
      %v2183 = vsel %vm944, %v1855, 0
      %v2186 = vsel %vm944, %v1856, 0
      %v2189 = vsel %vm944, %v1857, 0
      %v2192 = vsel %vm944, %v1858, 0
      %v2195 = vsel %vm944, %v1859, 0
      %v2198 = vsel %vm944, %v1860, 0
      %v2201 = vsel %vm944, %v1861, 0
      %v2204 = vsel %vm944, %v1862, 0
      %v2207 = vsel %vm944, %v1863, 0
      %v2210 = vsel %vm944, %v1864, 0
      %v2213 = vsel %vm944, %v1865, 0
      %v2216 = vand.u32 %v2164, %v995
      %2218 = vmatprep.subr.bf16.mxu0 0
      %2219 = vmatpush1.bf16.msra.mxu0 0
      %2220 = vmatprep.subr.bf16.mxu0 0
      %2221 = vmatpush1.bf16.msra.mxu0 0
      %2222 = vmatprep.subr.bf16.mxu0 0
      %2223 = vmatpush1.bf16.msra.mxu0 0
      %2224 = vmatprep.subr.bf16.mxu0 0
      %2225 = vmatpush1.bf16.msra.mxu0 0
      %2226 = vmatprep.subr.bf16.mxu0 0
      %2227 = vmatpush1.bf16.msra.mxu0 0
      %2228 = vmatprep.subr.bf16.mxu0 0
      %2229 = vmatpush1.bf16.msra.mxu0 %v2216
      %2230 = vmatprep.subr.bf16.mxu0 0
      %2231 = vmatpush1.bf16.msra.mxu0 %v2163
      %2232 = vmatprep.subr.bf16.mxu0 0
      %2233 = vmatpush1.bf16.msra.mxu0 %v2162
      %2234 = vmatprep.subr.bf16.mxu0 0
      %2235 = vmatpush2.bf16.msra.mxu0 0
      %2236 = vmatprep.subr.bf16.mxu0 0
      %2237 = vmatpush2.bf16.msra.mxu0 0
      %2238 = vmatprep.subr.bf16.mxu0 0
      %2239 = vmatpush2.bf16.msra.mxu0 0
      %2240 = vmatprep.subr.bf16.mxu0 0
      %2241 = vmatpush2.bf16.msra.mxu0 0
      %2242 = vmatprep.subr.bf16.mxu0 0
      %2243 = vmatpush2.bf16.msra.mxu0 0
      %2244 = vmatprep.subr.bf16.mxu0 0
      %2245 = vmatpush2.bf16.msra.mxu0 0
      %2246 = vmatprep.subr.bf16.mxu0 0
      %2247 = vmatpush2.bf16.msra.mxu0 0
      %2248 = vmatprep.subr.bf16.mxu0 0
      %2249 = vmatpush2.bf16.msra.mxu0 0
      %2250 = vmatprep.mubr.bf16.mxu0 0
      %2251 = vmatmul.mubr.bf16.gmra.mxu0 %v2168
      %v2252 = vpop.f32.mrf.mxu0
      %v2253 = vadd.f32 %v2026, %v2252
      %v2254 = vpop.f32.mrf.mxu0
      %v2255 = vpop.f32.mrf.mxu0
      %v2256 = vadd.f32 %v2029, %v2255
      %v2257 = vpop.f32.mrf.mxu0
      %2258 = vmatprep.mubr.bf16.mxu0 0
      %2259 = vmatmul.mubr.bf16.gmra.mxu0 %v2171
      %v2260 = vpop.f32.mrf.mxu0
      %v2261 = vadd.f32 %v2034, %v2260
      %v2262 = vpop.f32.mrf.mxu0
      %v2263 = vpop.f32.mrf.mxu0
      %v2264 = vadd.f32 %v2037, %v2263
      %v2265 = vpop.f32.mrf.mxu0
      %2266 = vmatprep.mubr.bf16.mxu0 0
      %2267 = vmatmul.mubr.bf16.gmra.mxu0 %v2174
      %v2268 = vpop.f32.mrf.mxu0
      %v2269 = vadd.f32 %v2042, %v2268
      %v2270 = vpop.f32.mrf.mxu0
      %v2271 = vpop.f32.mrf.mxu0
      %v2272 = vadd.f32 %v2045, %v2271
      %v2273 = vpop.f32.mrf.mxu0
      %2274 = vmatprep.mubr.bf16.mxu0 0
      %2275 = vmatmul.mubr.bf16.gmra.mxu0 %v2177
      %v2276 = vpop.f32.mrf.mxu0
      %v2277 = vadd.f32 %v2050, %v2276
      %v2278 = vpop.f32.mrf.mxu0
      %v2279 = vpop.f32.mrf.mxu0
      %v2280 = vadd.f32 %v2053, %v2279
      %v2281 = vpop.f32.mrf.mxu0
      %2282 = vmatprep.mubr.bf16.mxu0 0
      %2283 = vmatmul.mubr.bf16.gmra.mxu0 %v2180
      %v2284 = vpop.f32.mrf.mxu0
      %v2285 = vadd.f32 %v2058, %v2284
      %v2286 = vpop.f32.mrf.mxu0
      %v2287 = vpop.f32.mrf.mxu0
      %v2288 = vadd.f32 %v2061, %v2287
      %v2289 = vpop.f32.mrf.mxu0
      %2290 = vmatprep.mubr.bf16.mxu0 0
      %2291 = vmatmul.mubr.bf16.gmra.mxu0 %v2183
      %v2292 = vpop.f32.mrf.mxu0
      %v2293 = vadd.f32 %v2066, %v2292
      %v2294 = vpop.f32.mrf.mxu0
      %v2295 = vpop.f32.mrf.mxu0
      %v2296 = vadd.f32 %v2069, %v2295
      %v2297 = vpop.f32.mrf.mxu0
      %2298 = vmatprep.mubr.bf16.mxu0 0
      %2299 = vmatmul.mubr.bf16.gmra.mxu0 %v2186
      %v2300 = vpop.f32.mrf.mxu0
      %v2301 = vadd.f32 %v2074, %v2300
      %v2302 = vpop.f32.mrf.mxu0
      %v2303 = vpop.f32.mrf.mxu0
      %v2304 = vadd.f32 %v2077, %v2303
      %v2305 = vpop.f32.mrf.mxu0
      %2306 = vmatprep.mubr.bf16.mxu0 0
      %2307 = vmatmul.mubr.bf16.gmra.mxu0 %v2189
      %v2308 = vpop.f32.mrf.mxu0
      %v2309 = vadd.f32 %v2082, %v2308
      %v2310 = vpop.f32.mrf.mxu0
      %v2311 = vpop.f32.mrf.mxu0
      %v2312 = vadd.f32 %v2085, %v2311
      %v2313 = vpop.f32.mrf.mxu0
      %2314 = vmatprep.mubr.bf16.mxu0 0
      %2315 = vmatmul.mubr.bf16.gmra.mxu0 %v2192
      %v2316 = vpop.f32.mrf.mxu0
      %v2317 = vadd.f32 %v2090, %v2316
      %v2318 = vpop.f32.mrf.mxu0
      %v2319 = vpop.f32.mrf.mxu0
      %v2320 = vadd.f32 %v2093, %v2319
      %v2321 = vpop.f32.mrf.mxu0
      %2322 = vmatprep.mubr.bf16.mxu0 0
      %2323 = vmatmul.mubr.bf16.gmra.mxu0 %v2195
      %v2324 = vpop.f32.mrf.mxu0
      %v2325 = vadd.f32 %v2098, %v2324
      %v2326 = vpop.f32.mrf.mxu0
      %v2327 = vpop.f32.mrf.mxu0
      %v2328 = vadd.f32 %v2101, %v2327
      %v2329 = vpop.f32.mrf.mxu0
      %2330 = vmatprep.mubr.bf16.mxu0 0
      %2331 = vmatmul.mubr.bf16.gmra.mxu0 %v2198
      %v2332 = vpop.f32.mrf.mxu0
      %v2333 = vadd.f32 %v2106, %v2332
      %v2334 = vpop.f32.mrf.mxu0
      %v2335 = vpop.f32.mrf.mxu0
      %v2336 = vadd.f32 %v2109, %v2335
      %v2337 = vpop.f32.mrf.mxu0
      %2338 = vmatprep.mubr.bf16.mxu0 0
      %2339 = vmatmul.mubr.bf16.gmra.mxu0 %v2201
      %v2340 = vpop.f32.mrf.mxu0
      %v2341 = vadd.f32 %v2114, %v2340
      %v2342 = vpop.f32.mrf.mxu0
      %v2343 = vpop.f32.mrf.mxu0
      %v2344 = vadd.f32 %v2117, %v2343
      %v2345 = vpop.f32.mrf.mxu0
      %2346 = vmatprep.mubr.bf16.mxu0 0
      %2347 = vmatmul.mubr.bf16.gmra.mxu0 %v2204
      %v2348 = vpop.f32.mrf.mxu0
      %v2349 = vadd.f32 %v2122, %v2348
      %v2350 = vpop.f32.mrf.mxu0
      %v2351 = vpop.f32.mrf.mxu0
      %v2352 = vadd.f32 %v2125, %v2351
      %v2353 = vpop.f32.mrf.mxu0
      %2354 = vmatprep.mubr.bf16.mxu0 0
      %2355 = vmatmul.mubr.bf16.gmra.mxu0 %v2207
      %v2356 = vpop.f32.mrf.mxu0
      %v2357 = vadd.f32 %v2130, %v2356
      %v2358 = vpop.f32.mrf.mxu0
      %v2359 = vpop.f32.mrf.mxu0
      %v2360 = vadd.f32 %v2133, %v2359
      %v2361 = vpop.f32.mrf.mxu0
      %2362 = vmatprep.mubr.bf16.mxu0 0
      %2363 = vmatmul.mubr.bf16.gmra.mxu0 %v2210
      %v2364 = vpop.f32.mrf.mxu0
      %v2365 = vadd.f32 %v2138, %v2364
      %v2366 = vpop.f32.mrf.mxu0
      %v2367 = vpop.f32.mrf.mxu0
      %v2368 = vadd.f32 %v2141, %v2367
      %v2369 = vpop.f32.mrf.mxu0
      %2370 = vmatprep.mubr.bf16.mxu0 0
      %2371 = vmatmul.mubr.bf16.gmra.mxu0 %v2213
      %v2372 = vpop.f32.mrf.mxu0
      %v2373 = vadd.f32 %v2146, %v2372
      %v2374 = vpop.f32.mrf.mxu0
      %v2375 = vpop.f32.mrf.mxu0
      %v2376 = vadd.f32 %v2149, %v2375
      %v2377 = vpop.f32.mrf.mxu0
      %2378 = vdwg.mxu0
      %v2379 = vmul.f32 %v834, %v1692
      %v2380 = vmul.f32 %v835, %v1696
      %v2381 = vmul.f32 %v804, %v1700
      %v2382 = vmul.f32 %v805, %v1704
      %v2383 = vmul.f32 %v806, %v1708
      %v2384 = vmul.f32 %v807, %v1712
      %v2385 = vmul.f32 %v808, %v1716
      %v2386 = vmul.f32 %v809, %v1720
      %v2387 = vmul.f32 %v810, %v1724
      %v2388 = vmul.f32 %v811, %v1728
      %v2389 = vmul.f32 %v812, %v1732
      %v2390 = vmul.f32 %v813, %v1736
      %v2391 = vmul.f32 %v814, %v1740
      %v2392 = vmul.f32 %v815, %v1744
      %v2393 = vmul.f32 %v816, %v1748
      %v2394 = vmul.f32 %v817, %v1752
      %v2395 = vmul.f32 %v818, %v1756
      %v2396 = vmul.f32 %v819, %v1760
      %v2397 = vmul.f32 %v820, %v1764
      %v2398 = vmul.f32 %v821, %v1768
      %v2399 = vmul.f32 %v822, %v1772
      %v2400 = vmul.f32 %v823, %v1776
      %v2401 = vmul.f32 %v824, %v1780
      %v2402 = vmul.f32 %v825, %v1784
      %v2403 = vmul.f32 %v826, %v1788
      %v2404 = vmul.f32 %v827, %v1792
      %v2405 = vmul.f32 %v828, %v1796
      %v2406 = vmul.f32 %v829, %v1800
      %v2407 = vmul.f32 %v830, %v1804
      %v2408 = vmul.f32 %v831, %v1808
      %v2409 = vmul.f32 %v832, %v1812
      %v2410 = vmul.f32 %v833, %v1816
      %v2411 = vpack.c.bf16 %v2380, %v2379
      %v2412 = vpack.c.bf16 %v2382, %v2381
      %v2413 = vpack.c.bf16 %v2384, %v2383
      %v2414 = vpack.c.bf16 %v2386, %v2385
      %v2415 = vpack.c.bf16 %v2388, %v2387
      %v2416 = vpack.c.bf16 %v2390, %v2389
      %v2417 = vpack.c.bf16 %v2392, %v2391
      %v2418 = vpack.c.bf16 %v2394, %v2393
      %v2419 = vpack.c.bf16 %v2396, %v2395
      %v2420 = vpack.c.bf16 %v2398, %v2397
      %v2421 = vpack.c.bf16 %v2400, %v2399
      %v2422 = vpack.c.bf16 %v2402, %v2401
      %v2423 = vpack.c.bf16 %v2404, %v2403
      %v2424 = vpack.c.bf16 %v2406, %v2405
      %v2425 = vpack.c.bf16 %v2408, %v2407
      %v2426 = vpack.c.bf16 %v2410, %v2409
      %s2427 = scalar_lea.vmem %s2, 40
      %v2428 = vld [vmem:[%s2427] sm:$0xf]
      %v2429 = vld [vmem:[%s2427 + $0x4] sm:$0xf]
      %v2430 = vld [vmem:[%s2427 + $0x8] sm:$0xf]
      %v2431 = vld [vmem:[%s2427 + $0xc] sm:$0xf]
      %v2432 = vld [vmem:[%s2427 + $0x10] sm:$0x1]
      %v2438 = vunpack.c.l.b16 %v2428
      %v2439 = vunpack.c.l.b16 %v2429
      %v2440 = vunpack.c.l.b16 %v2430
      %v2441 = vunpack.c.l.b16 %v2431
      %v2442 = vunpack.c.l.b16 %v2432
      %v2443 = vpack.c.b16 %v2439, %v2438
      %v2444 = vpack.c.b16 %v2441, %v2440
      %v2445 = vpack.c.b16 %v2442, %v2442
      %v2449 = vsel %vm944, %v2411, 0
      %v2452 = vsel %vm944, %v2412, 0
      %v2455 = vsel %vm944, %v2413, 0
      %v2458 = vsel %vm944, %v2414, 0
      %v2461 = vsel %vm944, %v2415, 0
      %v2464 = vsel %vm944, %v2416, 0
      %v2467 = vsel %vm944, %v2417, 0
      %v2470 = vsel %vm944, %v2418, 0
      %v2473 = vsel %vm944, %v2419, 0
      %v2476 = vsel %vm944, %v2420, 0
      %v2479 = vsel %vm944, %v2421, 0
      %v2482 = vsel %vm944, %v2422, 0
      %v2485 = vsel %vm944, %v2423, 0
      %v2488 = vsel %vm944, %v2424, 0
      %v2491 = vsel %vm944, %v2425, 0
      %v2494 = vsel %vm944, %v2426, 0
      %v2497 = vand.u32 %v2445, %v995
      %2499 = vmatprep.subr.bf16.mxu0 0
      %2500 = vmatpush1.bf16.msra.mxu0 0
      %2501 = vmatprep.subr.bf16.mxu0 0
      %2502 = vmatpush1.bf16.msra.mxu0 0
      %2503 = vmatprep.subr.bf16.mxu0 0
      %2504 = vmatpush1.bf16.msra.mxu0 0
      %2505 = vmatprep.subr.bf16.mxu0 0
      %2506 = vmatpush1.bf16.msra.mxu0 0
      %2507 = vmatprep.subr.bf16.mxu0 0
      %2508 = vmatpush1.bf16.msra.mxu0 0
      %2509 = vmatprep.subr.bf16.mxu0 0
      %2510 = vmatpush1.bf16.msra.mxu0 %v2497
      %2511 = vmatprep.subr.bf16.mxu0 0
      %2512 = vmatpush1.bf16.msra.mxu0 %v2444
      %2513 = vmatprep.subr.bf16.mxu0 0
      %2514 = vmatpush1.bf16.msra.mxu0 %v2443
      %2515 = vmatprep.subr.bf16.mxu0 0
      %2516 = vmatpush2.bf16.msra.mxu0 0
      %2517 = vmatprep.subr.bf16.mxu0 0
      %2518 = vmatpush2.bf16.msra.mxu0 0
      %2519 = vmatprep.subr.bf16.mxu0 0
      %2520 = vmatpush2.bf16.msra.mxu0 0
      %2521 = vmatprep.subr.bf16.mxu0 0
      %2522 = vmatpush2.bf16.msra.mxu0 0
      %2523 = vmatprep.subr.bf16.mxu0 0
      %2524 = vmatpush2.bf16.msra.mxu0 0
      %2525 = vmatprep.subr.bf16.mxu0 0
      %2526 = vmatpush2.bf16.msra.mxu0 0
      %2527 = vmatprep.subr.bf16.mxu0 0
      %2528 = vmatpush2.bf16.msra.mxu0 0
      %2529 = vmatprep.subr.bf16.mxu0 0
      %2530 = vmatpush2.bf16.msra.mxu0 0
      %2531 = vmatprep.mubr.bf16.mxu0 0
      %2532 = vmatmul.mubr.bf16.gmra.mxu0 %v2449
      %v2533 = vpop.f32.mrf.mxu0
      %v2534 = vadd.f32 0.0, %v2533
      %v2535 = vpop.f32.mrf.mxu0
      %v2536 = vpop.f32.mrf.mxu0
      %v2537 = vadd.f32 0.0, %v2536
      %v2538 = vpop.f32.mrf.mxu0
      %2539 = vmatprep.mubr.bf16.mxu0 0
      %2540 = vmatmul.mubr.bf16.gmra.mxu0 %v2452
      %v2541 = vpop.f32.mrf.mxu0
      %v2542 = vadd.f32 0.0, %v2541
      %v2543 = vpop.f32.mrf.mxu0
      %v2544 = vpop.f32.mrf.mxu0
      %v2545 = vadd.f32 0.0, %v2544
      %v2546 = vpop.f32.mrf.mxu0
      %2547 = vmatprep.mubr.bf16.mxu0 0
      %2548 = vmatmul.mubr.bf16.gmra.mxu0 %v2455
      %v2549 = vpop.f32.mrf.mxu0
      %v2550 = vadd.f32 0.0, %v2549
      %v2551 = vpop.f32.mrf.mxu0
      %v2552 = vpop.f32.mrf.mxu0
      %v2553 = vadd.f32 0.0, %v2552
      %v2554 = vpop.f32.mrf.mxu0
      %2555 = vmatprep.mubr.bf16.mxu0 0
      %2556 = vmatmul.mubr.bf16.gmra.mxu0 %v2458
      %v2557 = vpop.f32.mrf.mxu0
      %v2558 = vadd.f32 0.0, %v2557
      %v2559 = vpop.f32.mrf.mxu0
      %v2560 = vpop.f32.mrf.mxu0
      %v2561 = vadd.f32 0.0, %v2560
      %v2562 = vpop.f32.mrf.mxu0
      %2563 = vmatprep.mubr.bf16.mxu0 0
      %2564 = vmatmul.mubr.bf16.gmra.mxu0 %v2461
      %v2565 = vpop.f32.mrf.mxu0
      %v2566 = vadd.f32 0.0, %v2565
      %v2567 = vpop.f32.mrf.mxu0
      %v2568 = vpop.f32.mrf.mxu0
      %v2569 = vadd.f32 0.0, %v2568
      %v2570 = vpop.f32.mrf.mxu0
      %2571 = vmatprep.mubr.bf16.mxu0 0
      %2572 = vmatmul.mubr.bf16.gmra.mxu0 %v2464
      %v2573 = vpop.f32.mrf.mxu0
      %v2574 = vadd.f32 0.0, %v2573
      %v2575 = vpop.f32.mrf.mxu0
      %v2576 = vpop.f32.mrf.mxu0
      %v2577 = vadd.f32 0.0, %v2576
      %v2578 = vpop.f32.mrf.mxu0
      %2579 = vmatprep.mubr.bf16.mxu0 0
      %2580 = vmatmul.mubr.bf16.gmra.mxu0 %v2467
      %v2581 = vpop.f32.mrf.mxu0
      %v2582 = vadd.f32 0.0, %v2581
      %v2583 = vpop.f32.mrf.mxu0
      %v2584 = vpop.f32.mrf.mxu0
      %v2585 = vadd.f32 0.0, %v2584
      %v2586 = vpop.f32.mrf.mxu0
      %2587 = vmatprep.mubr.bf16.mxu0 0
      %2588 = vmatmul.mubr.bf16.gmra.mxu0 %v2470
      %v2589 = vpop.f32.mrf.mxu0
      %v2590 = vadd.f32 0.0, %v2589
      %v2591 = vpop.f32.mrf.mxu0
      %v2592 = vpop.f32.mrf.mxu0
      %v2593 = vadd.f32 0.0, %v2592
      %v2594 = vpop.f32.mrf.mxu0
      %2595 = vmatprep.mubr.bf16.mxu0 0
      %2596 = vmatmul.mubr.bf16.gmra.mxu0 %v2473
      %v2597 = vpop.f32.mrf.mxu0
      %v2598 = vadd.f32 0.0, %v2597
      %v2599 = vpop.f32.mrf.mxu0
      %v2600 = vpop.f32.mrf.mxu0
      %v2601 = vadd.f32 0.0, %v2600
      %v2602 = vpop.f32.mrf.mxu0
      %2603 = vmatprep.mubr.bf16.mxu0 0
      %2604 = vmatmul.mubr.bf16.gmra.mxu0 %v2476
      %v2605 = vpop.f32.mrf.mxu0
      %v2606 = vadd.f32 0.0, %v2605
      %v2607 = vpop.f32.mrf.mxu0
      %v2608 = vpop.f32.mrf.mxu0
      %v2609 = vadd.f32 0.0, %v2608
      %v2610 = vpop.f32.mrf.mxu0
      %2611 = vmatprep.mubr.bf16.mxu0 0
      %2612 = vmatmul.mubr.bf16.gmra.mxu0 %v2479
      %v2613 = vpop.f32.mrf.mxu0
      %v2614 = vadd.f32 0.0, %v2613
      %v2615 = vpop.f32.mrf.mxu0
      %v2616 = vpop.f32.mrf.mxu0
      %v2617 = vadd.f32 0.0, %v2616
      %v2618 = vpop.f32.mrf.mxu0
      %2619 = vmatprep.mubr.bf16.mxu0 0
      %2620 = vmatmul.mubr.bf16.gmra.mxu0 %v2482
      %v2621 = vpop.f32.mrf.mxu0
      %v2622 = vadd.f32 0.0, %v2621
      %v2623 = vpop.f32.mrf.mxu0
      %v2624 = vpop.f32.mrf.mxu0
      %v2625 = vadd.f32 0.0, %v2624
      %v2626 = vpop.f32.mrf.mxu0
      %2627 = vmatprep.mubr.bf16.mxu0 0
      %2628 = vmatmul.mubr.bf16.gmra.mxu0 %v2485
      %v2629 = vpop.f32.mrf.mxu0
      %v2630 = vadd.f32 0.0, %v2629
      %v2631 = vpop.f32.mrf.mxu0
      %v2632 = vpop.f32.mrf.mxu0
      %v2633 = vadd.f32 0.0, %v2632
      %v2634 = vpop.f32.mrf.mxu0
      %2635 = vmatprep.mubr.bf16.mxu0 0
      %2636 = vmatmul.mubr.bf16.gmra.mxu0 %v2488
      %v2637 = vpop.f32.mrf.mxu0
      %v2638 = vadd.f32 0.0, %v2637
      %v2639 = vpop.f32.mrf.mxu0
      %v2640 = vpop.f32.mrf.mxu0
      %v2641 = vadd.f32 0.0, %v2640
      %v2642 = vpop.f32.mrf.mxu0
      %2643 = vmatprep.mubr.bf16.mxu0 0
      %2644 = vmatmul.mubr.bf16.gmra.mxu0 %v2491
      %v2645 = vpop.f32.mrf.mxu0
      %v2646 = vadd.f32 0.0, %v2645
      %v2647 = vpop.f32.mrf.mxu0
      %v2648 = vpop.f32.mrf.mxu0
      %v2649 = vadd.f32 0.0, %v2648
      %v2650 = vpop.f32.mrf.mxu0
      %2651 = vmatprep.mubr.bf16.mxu0 0
      %2652 = vmatmul.mubr.bf16.gmra.mxu0 %v2494
      %v2653 = vpop.f32.mrf.mxu0
      %v2654 = vadd.f32 0.0, %v2653
      %v2655 = vpop.f32.mrf.mxu0
      %v2656 = vpop.f32.mrf.mxu0
      %v2657 = vadd.f32 0.0, %v2656
      %v2658 = vpop.f32.mrf.mxu0
      %2659 = vdwg.mxu0
      %v2660 = vadd.f32 %v2253, %v2534
      %v2661 = vadd.f32 %v2256, %v2537
      %v2662 = vadd.f32 %v2261, %v2542
      %v2663 = vadd.f32 %v2264, %v2545
      %v2664 = vadd.f32 %v2269, %v2550
      %v2665 = vadd.f32 %v2272, %v2553
      %v2666 = vadd.f32 %v2277, %v2558
      %v2667 = vadd.f32 %v2280, %v2561
      %v2668 = vadd.f32 %v2285, %v2566
      %v2669 = vadd.f32 %v2288, %v2569
      %v2670 = vadd.f32 %v2293, %v2574
      %v2671 = vadd.f32 %v2296, %v2577
      %v2672 = vadd.f32 %v2301, %v2582
      %v2673 = vadd.f32 %v2304, %v2585
      %v2674 = vadd.f32 %v2309, %v2590
      %v2675 = vadd.f32 %v2312, %v2593
      %v2676 = vadd.f32 %v2317, %v2598
      %v2677 = vadd.f32 %v2320, %v2601
      %v2678 = vadd.f32 %v2325, %v2606
      %v2679 = vadd.f32 %v2328, %v2609
      %v2680 = vadd.f32 %v2333, %v2614
      %v2681 = vadd.f32 %v2336, %v2617
      %v2682 = vadd.f32 %v2341, %v2622
      %v2683 = vadd.f32 %v2344, %v2625
      %v2684 = vadd.f32 %v2349, %v2630
      %v2685 = vadd.f32 %v2352, %v2633
      %v2686 = vadd.f32 %v2357, %v2638
      %v2687 = vadd.f32 %v2360, %v2641
      %v2688 = vadd.f32 %v2365, %v2646
      %v2689 = vadd.f32 %v2368, %v2649
      %v2690 = vadd.f32 %v2373, %v2654
      %v2691 = vadd.f32 %v2376, %v2657
      %v2692 = vadd.f32 %v1658, %v2660
      %v2693 = vadd.f32 %v1659, %v2661
      %v2694 = vadd.f32 %v1660, %v2662
      %v2695 = vadd.f32 %v1661, %v2663
      %v2696 = vadd.f32 %v1662, %v2664
      %v2697 = vadd.f32 %v1663, %v2665
      %v2698 = vadd.f32 %v1664, %v2666
      %v2699 = vadd.f32 %v1665, %v2667
      %v2700 = vadd.f32 %v1666, %v2668
      %v2701 = vadd.f32 %v1667, %v2669
      %v2702 = vadd.f32 %v1668, %v2670
      %v2703 = vadd.f32 %v1669, %v2671
      %v2704 = vadd.f32 %v1670, %v2672
      %v2705 = vadd.f32 %v1671, %v2673
      %v2706 = vadd.f32 %v1672, %v2674
      %v2707 = vadd.f32 %v1673, %v2675
      %v2708 = vadd.f32 %v1674, %v2676
      %v2709 = vadd.f32 %v1675, %v2677
      %v2710 = vadd.f32 %v1676, %v2678
      %v2711 = vadd.f32 %v1677, %v2679
      %v2712 = vadd.f32 %v1678, %v2680
      %v2713 = vadd.f32 %v1679, %v2681
      %v2714 = vadd.f32 %v1680, %v2682
      %v2715 = vadd.f32 %v1681, %v2683
      %v2716 = vadd.f32 %v1682, %v2684
      %v2717 = vadd.f32 %v1683, %v2685
      %v2718 = vadd.f32 %v1684, %v2686
      %v2719 = vadd.f32 %v1685, %v2687
      %v2720 = vadd.f32 %v1686, %v2688
      %v2721 = vadd.f32 %v1687, %v2689
      %v2722 = vadd.f32 %v1688, %v2690
      %v2723 = vadd.f32 %v1689, %v2691
      %2724 = vset.pattern.permute.xlu0 1
      %2725 = vperm.xlu0 %2724, %v320
      %v2726 = vpop.permute.xlu0 %2725
      %2728 = vset.pattern.permute.xlu0 1
      %2729 = vperm.xlu0 %2728, %v321
      %v2730 = vpop.permute.xlu0 %2729
      %2732 = vset.pattern.permute.xlu0 1
      %2733 = vperm.xlu0 %2732, %v322
      %v2734 = vpop.permute.xlu0 %2733
      %2736 = vset.pattern.permute.xlu0 1
      %2737 = vperm.xlu0 %2736, %v323
      %v2738 = vpop.permute.xlu0 %2737
      %2740 = vset.pattern.permute.xlu0 1
      %2741 = vperm.xlu0 %2740, %v324
      %v2742 = vpop.permute.xlu0 %2741
      %2744 = vset.pattern.permute.xlu0 1
      %2745 = vperm.xlu0 %2744, %v325
      %v2746 = vpop.permute.xlu0 %2745
      %2748 = vset.pattern.permute.xlu0 1
      %2749 = vperm.xlu0 %2748, %v326
      %v2750 = vpop.permute.xlu0 %2749
      %2752 = vset.pattern.permute.xlu0 1
      %2753 = vperm.xlu0 %2752, %v327
      %v2754 = vpop.permute.xlu0 %2753
      %2756 = vset.pattern.permute.xlu0 1
      %2757 = vperm.xlu0 %2756, %v328
      %v2758 = vpop.permute.xlu0 %2757
      %2760 = vset.pattern.permute.xlu0 1
      %2761 = vperm.xlu0 %2760, %v329
      %v2762 = vpop.permute.xlu0 %2761
      %2764 = vset.pattern.permute.xlu0 1
      %2765 = vperm.xlu0 %2764, %v330
      %v2766 = vpop.permute.xlu0 %2765
      %2768 = vset.pattern.permute.xlu0 1
      %2769 = vperm.xlu0 %2768, %v331
      %v2770 = vpop.permute.xlu0 %2769
      %2772 = vset.pattern.permute.xlu0 1
      %2773 = vperm.xlu0 %2772, %v332
      %v2774 = vpop.permute.xlu0 %2773
      %2776 = vset.pattern.permute.xlu0 1
      %2777 = vperm.xlu0 %2776, %v333
      %v2778 = vpop.permute.xlu0 %2777
      %2780 = vset.pattern.permute.xlu0 1
      %2781 = vperm.xlu0 %2780, %v334
      %v2782 = vpop.permute.xlu0 %2781
      %2784 = vset.pattern.permute.xlu0 1
      %2785 = vperm.xlu0 %2784, %v335
      %v2786 = vpop.permute.xlu0 %2785
      %2788 = vset.pattern.permute.xlu0 1
      %2789 = vperm.xlu0 %2788, %v336
      %v2790 = vpop.permute.xlu0 %2789
      %2792 = vset.pattern.permute.xlu0 1
      %2793 = vperm.xlu0 %2792, %v337
      %v2794 = vpop.permute.xlu0 %2793
      %2796 = vset.pattern.permute.xlu0 1
      %2797 = vperm.xlu0 %2796, %v338
      %v2798 = vpop.permute.xlu0 %2797
      %2800 = vset.pattern.permute.xlu0 1
      %2801 = vperm.xlu0 %2800, %v339
      %v2802 = vpop.permute.xlu0 %2801
      %2804 = vset.pattern.permute.xlu0 1
      %2805 = vperm.xlu0 %2804, %v340
      %v2806 = vpop.permute.xlu0 %2805
      %2808 = vset.pattern.permute.xlu0 1
      %2809 = vperm.xlu0 %2808, %v341
      %v2810 = vpop.permute.xlu0 %2809
      %2812 = vset.pattern.permute.xlu0 1
      %2813 = vperm.xlu0 %2812, %v342
      %v2814 = vpop.permute.xlu0 %2813
      %2816 = vset.pattern.permute.xlu0 1
      %2817 = vperm.xlu0 %2816, %v343
      %v2818 = vpop.permute.xlu0 %2817
      %2820 = vset.pattern.permute.xlu0 1
      %2821 = vperm.xlu0 %2820, %v344
      %v2822 = vpop.permute.xlu0 %2821
      %2824 = vset.pattern.permute.xlu0 1
      %2825 = vperm.xlu0 %2824, %v345
      %v2826 = vpop.permute.xlu0 %2825
      %2828 = vset.pattern.permute.xlu0 1
      %2829 = vperm.xlu0 %2828, %v346
      %v2830 = vpop.permute.xlu0 %2829
      %2832 = vset.pattern.permute.xlu0 1
      %2833 = vperm.xlu0 %2832, %v347
      %v2834 = vpop.permute.xlu0 %2833
      %2836 = vset.pattern.permute.xlu0 1
      %2837 = vperm.xlu0 %2836, %v348
      %v2838 = vpop.permute.xlu0 %2837
      %2840 = vset.pattern.permute.xlu0 1
      %2841 = vperm.xlu0 %2840, %v349
      %v2842 = vpop.permute.xlu0 %2841
      %2844 = vset.pattern.permute.xlu0 1
      %2845 = vperm.xlu0 %2844, %v350
      %v2846 = vpop.permute.xlu0 %2845
      %2848 = vset.pattern.permute.xlu0 1
      %2849 = vperm.xlu0 %2848, %v351
      %v2850 = vpop.permute.xlu0 %2849
      %v2852 = vmul.f32 %v581, %v2726
      %v2853 = vmul.f32 %v582, %v2730
      %v2854 = vmul.f32 %v583, %v2734
      %v2855 = vmul.f32 %v584, %v2738
      %v2856 = vmul.f32 %v585, %v2742
      %v2857 = vmul.f32 %v586, %v2746
      %v2858 = vmul.f32 %v587, %v2750
      %v2859 = vmul.f32 %v588, %v2754
      %v2860 = vmul.f32 %v589, %v2758
      %v2861 = vmul.f32 %v590, %v2762
      %v2862 = vmul.f32 %v591, %v2766
      %v2863 = vmul.f32 %v592, %v2770
      %v2864 = vmul.f32 %v593, %v2774
      %v2865 = vmul.f32 %v594, %v2778
      %v2866 = vmul.f32 %v595, %v2782
      %v2867 = vmul.f32 %v596, %v2786
      %v2868 = vmul.f32 %v597, %v2790
      %v2869 = vmul.f32 %v598, %v2794
      %v2870 = vmul.f32 %v599, %v2798
      %v2871 = vmul.f32 %v600, %v2802
      %v2872 = vmul.f32 %v601, %v2806
      %v2873 = vmul.f32 %v602, %v2810
      %v2874 = vmul.f32 %v603, %v2814
      %v2875 = vmul.f32 %v604, %v2818
      %v2876 = vmul.f32 %v605, %v2822
      %v2877 = vmul.f32 %v606, %v2826
      %v2878 = vmul.f32 %v607, %v2830
      %v2879 = vmul.f32 %v608, %v2834
      %v2880 = vmul.f32 %v609, %v2838
      %v2881 = vmul.f32 %v610, %v2842
      %v2882 = vmul.f32 %v579, %v2846
      %v2883 = vmul.f32 %v580, %v2850
      %v2884 = vpack.c.bf16 %v2853, %v2852
      %v2885 = vpack.c.bf16 %v2855, %v2854
      %v2886 = vpack.c.bf16 %v2857, %v2856
      %v2887 = vpack.c.bf16 %v2859, %v2858
      %v2888 = vpack.c.bf16 %v2861, %v2860
      %v2889 = vpack.c.bf16 %v2863, %v2862
      %v2890 = vpack.c.bf16 %v2865, %v2864
      %v2891 = vpack.c.bf16 %v2867, %v2866
      %v2892 = vpack.c.bf16 %v2869, %v2868
      %v2893 = vpack.c.bf16 %v2871, %v2870
      %v2894 = vpack.c.bf16 %v2873, %v2872
      %v2895 = vpack.c.bf16 %v2875, %v2874
      %v2896 = vpack.c.bf16 %v2877, %v2876
      %v2897 = vpack.c.bf16 %v2879, %v2878
      %v2898 = vpack.c.bf16 %v2881, %v2880
      %v2899 = vpack.c.bf16 %v2883, %v2882
      %s2900 = scalar_lea.vmem %s2, 120
      %v2901 = vld [vmem:[%s2900] sm:$0xf]
      %v2902 = vld [vmem:[%s2900 + $0x4] sm:$0xf]
      %v2903 = vld [vmem:[%s2900 + $0x8] sm:$0xf]
      %v2904 = vld [vmem:[%s2900 + $0xc] sm:$0xf]
      %v2905 = vld [vmem:[%s2900 + $0x10] sm:$0x1]
      %v2906 = vmul.f32 %v290, %v2726
      %v2907 = vmul.f32 %v291, %v2730
      %v2908 = vmul.f32 %v292, %v2734
      %v2909 = vmul.f32 %v293, %v2738
      %v2910 = vmul.f32 %v294, %v2742
      %v2911 = vmul.f32 %v295, %v2746
      %v2912 = vmul.f32 %v296, %v2750
      %v2913 = vmul.f32 %v297, %v2754
      %v2914 = vmul.f32 %v298, %v2758
      %v2915 = vmul.f32 %v299, %v2762
      %v2916 = vmul.f32 %v300, %v2766
      %v2917 = vmul.f32 %v301, %v2770
      %v2918 = vmul.f32 %v302, %v2774
      %v2919 = vmul.f32 %v303, %v2778
      %v2920 = vmul.f32 %v304, %v2782
      %v2921 = vmul.f32 %v305, %v2786
      %v2922 = vmul.f32 %v306, %v2790
      %v2923 = vmul.f32 %v307, %v2794
      %v2924 = vmul.f32 %v308, %v2798
      %v2925 = vmul.f32 %v309, %v2802
      %v2926 = vmul.f32 %v310, %v2806
      %v2927 = vmul.f32 %v311, %v2810
      %v2928 = vmul.f32 %v312, %v2814
      %v2929 = vmul.f32 %v313, %v2818
      %v2930 = vmul.f32 %v314, %v2822
      %v2931 = vmul.f32 %v315, %v2826
      %v2932 = vmul.f32 %v316, %v2830
      %v2933 = vmul.f32 %v317, %v2834
      %v2934 = vmul.f32 %v318, %v2838
      %v2935 = vmul.f32 %v319, %v2842
      %v2936 = vmul.f32 %v288, %v2846
      %v2937 = vmul.f32 %v289, %v2850
      %v2938 = vpack.c.bf16 %v2907, %v2906
      %v2939 = vpack.c.bf16 %v2909, %v2908
      %v2940 = vpack.c.bf16 %v2911, %v2910
      %v2941 = vpack.c.bf16 %v2913, %v2912
      %v2942 = vpack.c.bf16 %v2915, %v2914
      %v2943 = vpack.c.bf16 %v2917, %v2916
      %v2944 = vpack.c.bf16 %v2919, %v2918
      %v2945 = vpack.c.bf16 %v2921, %v2920
      %v2946 = vpack.c.bf16 %v2923, %v2922
      %v2947 = vpack.c.bf16 %v2925, %v2924
      %v2948 = vpack.c.bf16 %v2927, %v2926
      %v2949 = vpack.c.bf16 %v2929, %v2928
      %v2950 = vpack.c.bf16 %v2931, %v2930
      %v2951 = vpack.c.bf16 %v2933, %v2932
      %v2952 = vpack.c.bf16 %v2935, %v2934
      %v2953 = vpack.c.bf16 %v2937, %v2936
      %s2954 = scalar_lea.vmem %s2, 140
      %v2955 = vld [vmem:[%s2954] sm:$0xf]
      %v2956 = vld [vmem:[%s2954 + $0x4] sm:$0xf]
      %v2957 = vld [vmem:[%s2954 + $0x8] sm:$0xf]
      %v2958 = vld [vmem:[%s2954 + $0xc] sm:$0xf]
      %v2959 = vld [vmem:[%s2954 + $0x10] sm:$0x1]
      %v2965 = vunpack.c.l.b16 %v2955
      %v2966 = vunpack.c.l.b16 %v2956
      %v2967 = vunpack.c.l.b16 %v2957
      %v2968 = vunpack.c.l.b16 %v2958
      %v2969 = vunpack.c.l.b16 %v2959
      %v2970 = vpack.c.b16 %v2966, %v2965
      %v2971 = vpack.c.b16 %v2968, %v2967
      %v2972 = vpack.c.b16 %v2969, %v2969
      %v2976 = vsel %vm944, %v2938, 0
      %v2979 = vsel %vm944, %v2939, 0
      %v2982 = vsel %vm944, %v2940, 0
      %v2985 = vsel %vm944, %v2941, 0
      %v2988 = vsel %vm944, %v2942, 0
      %v2991 = vsel %vm944, %v2943, 0
      %v2994 = vsel %vm944, %v2944, 0
      %v2997 = vsel %vm944, %v2945, 0
      %v3000 = vsel %vm944, %v2946, 0
      %v3003 = vsel %vm944, %v2947, 0
      %v3006 = vsel %vm944, %v2948, 0
      %v3009 = vsel %vm944, %v2949, 0
      %v3012 = vsel %vm944, %v2950, 0
      %v3015 = vsel %vm944, %v2951, 0
      %v3018 = vsel %vm944, %v2952, 0
      %v3021 = vsel %vm944, %v2953, 0
      %v3024 = vand.u32 %v2972, %v995
      %3026 = vmatprep.subr.bf16.mxu0 0
      %3027 = vmatpush1.bf16.msra.mxu0 0
      %3028 = vmatprep.subr.bf16.mxu0 0
      %3029 = vmatpush1.bf16.msra.mxu0 0
      %3030 = vmatprep.subr.bf16.mxu0 0
      %3031 = vmatpush1.bf16.msra.mxu0 0
      %3032 = vmatprep.subr.bf16.mxu0 0
      %3033 = vmatpush1.bf16.msra.mxu0 0
      %3034 = vmatprep.subr.bf16.mxu0 0
      %3035 = vmatpush1.bf16.msra.mxu0 0
      %3036 = vmatprep.subr.bf16.mxu0 0
      %3037 = vmatpush1.bf16.msra.mxu0 %v3024
      %3038 = vmatprep.subr.bf16.mxu0 0
      %3039 = vmatpush1.bf16.msra.mxu0 %v2971
      %3040 = vmatprep.subr.bf16.mxu0 0
      %3041 = vmatpush1.bf16.msra.mxu0 %v2970
      %3042 = vmatprep.subr.bf16.mxu0 0
      %3043 = vmatpush2.bf16.msra.mxu0 0
      %3044 = vmatprep.subr.bf16.mxu0 0
      %3045 = vmatpush2.bf16.msra.mxu0 0
      %3046 = vmatprep.subr.bf16.mxu0 0
      %3047 = vmatpush2.bf16.msra.mxu0 0
      %3048 = vmatprep.subr.bf16.mxu0 0
      %3049 = vmatpush2.bf16.msra.mxu0 0
      %3050 = vmatprep.subr.bf16.mxu0 0
      %3051 = vmatpush2.bf16.msra.mxu0 0
      %3052 = vmatprep.subr.bf16.mxu0 0
      %3053 = vmatpush2.bf16.msra.mxu0 0
      %3054 = vmatprep.subr.bf16.mxu0 0
      %3055 = vmatpush2.bf16.msra.mxu0 0
      %3056 = vmatprep.subr.bf16.mxu0 0
      %3057 = vmatpush2.bf16.msra.mxu0 0
      %3058 = vmatprep.mubr.bf16.mxu0 0
      %3059 = vmatmul.mubr.bf16.gmra.mxu0 %v2976
      %v3060 = vpop.f32.mrf.mxu0
      %v3061 = vadd.f32 0.0, %v3060
      %v3062 = vpop.f32.mrf.mxu0
      %v3063 = vpop.f32.mrf.mxu0
      %v3064 = vadd.f32 0.0, %v3063
      %v3065 = vpop.f32.mrf.mxu0
      %3066 = vmatprep.mubr.bf16.mxu0 0
      %3067 = vmatmul.mubr.bf16.gmra.mxu0 %v2979
      %v3068 = vpop.f32.mrf.mxu0
      %v3069 = vadd.f32 0.0, %v3068
      %v3070 = vpop.f32.mrf.mxu0
      %v3071 = vpop.f32.mrf.mxu0
      %v3072 = vadd.f32 0.0, %v3071
      %v3073 = vpop.f32.mrf.mxu0
      %3074 = vmatprep.mubr.bf16.mxu0 0
      %3075 = vmatmul.mubr.bf16.gmra.mxu0 %v2982
      %v3076 = vpop.f32.mrf.mxu0
      %v3077 = vadd.f32 0.0, %v3076
      %v3078 = vpop.f32.mrf.mxu0
      %v3079 = vpop.f32.mrf.mxu0
      %v3080 = vadd.f32 0.0, %v3079
      %v3081 = vpop.f32.mrf.mxu0
      %3082 = vmatprep.mubr.bf16.mxu0 0
      %3083 = vmatmul.mubr.bf16.gmra.mxu0 %v2985
      %v3084 = vpop.f32.mrf.mxu0
      %v3085 = vadd.f32 0.0, %v3084
      %v3086 = vpop.f32.mrf.mxu0
      %v3087 = vpop.f32.mrf.mxu0
      %v3088 = vadd.f32 0.0, %v3087
      %v3089 = vpop.f32.mrf.mxu0
      %3090 = vmatprep.mubr.bf16.mxu0 0
      %3091 = vmatmul.mubr.bf16.gmra.mxu0 %v2988
      %v3092 = vpop.f32.mrf.mxu0
      %v3093 = vadd.f32 0.0, %v3092
      %v3094 = vpop.f32.mrf.mxu0
      %v3095 = vpop.f32.mrf.mxu0
      %v3096 = vadd.f32 0.0, %v3095
      %v3097 = vpop.f32.mrf.mxu0
      %3098 = vmatprep.mubr.bf16.mxu0 0
      %3099 = vmatmul.mubr.bf16.gmra.mxu0 %v2991
      %v3100 = vpop.f32.mrf.mxu0
      %v3101 = vadd.f32 0.0, %v3100
      %v3102 = vpop.f32.mrf.mxu0
      %v3103 = vpop.f32.mrf.mxu0
      %v3104 = vadd.f32 0.0, %v3103
      %v3105 = vpop.f32.mrf.mxu0
      %3106 = vmatprep.mubr.bf16.mxu0 0
      %3107 = vmatmul.mubr.bf16.gmra.mxu0 %v2994
      %v3108 = vpop.f32.mrf.mxu0
      %v3109 = vadd.f32 0.0, %v3108
      %v3110 = vpop.f32.mrf.mxu0
      %v3111 = vpop.f32.mrf.mxu0
      %v3112 = vadd.f32 0.0, %v3111
      %v3113 = vpop.f32.mrf.mxu0
      %3114 = vmatprep.mubr.bf16.mxu0 0
      %3115 = vmatmul.mubr.bf16.gmra.mxu0 %v2997
      %v3116 = vpop.f32.mrf.mxu0
      %v3117 = vadd.f32 0.0, %v3116
      %v3118 = vpop.f32.mrf.mxu0
      %v3119 = vpop.f32.mrf.mxu0
      %v3120 = vadd.f32 0.0, %v3119
      %v3121 = vpop.f32.mrf.mxu0
      %3122 = vmatprep.mubr.bf16.mxu0 0
      %3123 = vmatmul.mubr.bf16.gmra.mxu0 %v3000
      %v3124 = vpop.f32.mrf.mxu0
      %v3125 = vadd.f32 0.0, %v3124
      %v3126 = vpop.f32.mrf.mxu0
      %v3127 = vpop.f32.mrf.mxu0
      %v3128 = vadd.f32 0.0, %v3127
      %v3129 = vpop.f32.mrf.mxu0
      %3130 = vmatprep.mubr.bf16.mxu0 0
      %3131 = vmatmul.mubr.bf16.gmra.mxu0 %v3003
      %v3132 = vpop.f32.mrf.mxu0
      %v3133 = vadd.f32 0.0, %v3132
      %v3134 = vpop.f32.mrf.mxu0
      %v3135 = vpop.f32.mrf.mxu0
      %v3136 = vadd.f32 0.0, %v3135
      %v3137 = vpop.f32.mrf.mxu0
      %3138 = vmatprep.mubr.bf16.mxu0 0
      %3139 = vmatmul.mubr.bf16.gmra.mxu0 %v3006
      %v3140 = vpop.f32.mrf.mxu0
      %v3141 = vadd.f32 0.0, %v3140
      %v3142 = vpop.f32.mrf.mxu0
      %v3143 = vpop.f32.mrf.mxu0
      %v3144 = vadd.f32 0.0, %v3143
      %v3145 = vpop.f32.mrf.mxu0
      %3146 = vmatprep.mubr.bf16.mxu0 0
      %3147 = vmatmul.mubr.bf16.gmra.mxu0 %v3009
      %v3148 = vpop.f32.mrf.mxu0
      %v3149 = vadd.f32 0.0, %v3148
      %v3150 = vpop.f32.mrf.mxu0
      %v3151 = vpop.f32.mrf.mxu0
      %v3152 = vadd.f32 0.0, %v3151
      %v3153 = vpop.f32.mrf.mxu0
      %3154 = vmatprep.mubr.bf16.mxu0 0
      %3155 = vmatmul.mubr.bf16.gmra.mxu0 %v3012
      %v3156 = vpop.f32.mrf.mxu0
      %v3157 = vadd.f32 0.0, %v3156
      %v3158 = vpop.f32.mrf.mxu0
      %v3159 = vpop.f32.mrf.mxu0
      %v3160 = vadd.f32 0.0, %v3159
      %v3161 = vpop.f32.mrf.mxu0
      %3162 = vmatprep.mubr.bf16.mxu0 0
      %3163 = vmatmul.mubr.bf16.gmra.mxu0 %v3015
      %v3164 = vpop.f32.mrf.mxu0
      %v3165 = vadd.f32 0.0, %v3164
      %v3166 = vpop.f32.mrf.mxu0
      %v3167 = vpop.f32.mrf.mxu0
      %v3168 = vadd.f32 0.0, %v3167
      %v3169 = vpop.f32.mrf.mxu0
      %3170 = vmatprep.mubr.bf16.mxu0 0
      %3171 = vmatmul.mubr.bf16.gmra.mxu0 %v3018
      %v3172 = vpop.f32.mrf.mxu0
      %v3173 = vadd.f32 0.0, %v3172
      %v3174 = vpop.f32.mrf.mxu0
      %v3175 = vpop.f32.mrf.mxu0
      %v3176 = vadd.f32 0.0, %v3175
      %v3177 = vpop.f32.mrf.mxu0
      %3178 = vmatprep.mubr.bf16.mxu0 0
      %3179 = vmatmul.mubr.bf16.gmra.mxu0 %v3021
      %v3180 = vpop.f32.mrf.mxu0
      %v3181 = vadd.f32 0.0, %v3180
      %v3182 = vpop.f32.mrf.mxu0
      %v3183 = vpop.f32.mrf.mxu0
      %v3184 = vadd.f32 0.0, %v3183
      %v3185 = vpop.f32.mrf.mxu0
      %3186 = vdwg.mxu0
      %v3192 = vunpack.c.l.b16 %v2901
      %v3193 = vunpack.c.l.b16 %v2902
      %v3194 = vunpack.c.l.b16 %v2903
      %v3195 = vunpack.c.l.b16 %v2904
      %v3196 = vunpack.c.l.b16 %v2905
      %v3197 = vpack.c.b16 %v3193, %v3192
      %v3198 = vpack.c.b16 %v3195, %v3194
      %v3199 = vpack.c.b16 %v3196, %v3196
      %v3203 = vsel %vm944, %v2884, 0
      %v3206 = vsel %vm944, %v2885, 0
      %v3209 = vsel %vm944, %v2886, 0
      %v3212 = vsel %vm944, %v2887, 0
      %v3215 = vsel %vm944, %v2888, 0
      %v3218 = vsel %vm944, %v2889, 0
      %v3221 = vsel %vm944, %v2890, 0
      %v3224 = vsel %vm944, %v2891, 0
      %v3227 = vsel %vm944, %v2892, 0
      %v3230 = vsel %vm944, %v2893, 0
      %v3233 = vsel %vm944, %v2894, 0
      %v3236 = vsel %vm944, %v2895, 0
      %v3239 = vsel %vm944, %v2896, 0
      %v3242 = vsel %vm944, %v2897, 0
      %v3245 = vsel %vm944, %v2898, 0
      %v3248 = vsel %vm944, %v2899, 0
      %v3251 = vand.u32 %v3199, %v995
      %3253 = vmatprep.subr.bf16.mxu0 0
      %3254 = vmatpush1.bf16.msra.mxu0 0
      %3255 = vmatprep.subr.bf16.mxu0 0
      %3256 = vmatpush1.bf16.msra.mxu0 0
      %3257 = vmatprep.subr.bf16.mxu0 0
      %3258 = vmatpush1.bf16.msra.mxu0 0
      %3259 = vmatprep.subr.bf16.mxu0 0
      %3260 = vmatpush1.bf16.msra.mxu0 0
      %3261 = vmatprep.subr.bf16.mxu0 0
      %3262 = vmatpush1.bf16.msra.mxu0 0
      %3263 = vmatprep.subr.bf16.mxu0 0
      %3264 = vmatpush1.bf16.msra.mxu0 %v3251
      %3265 = vmatprep.subr.bf16.mxu0 0
      %3266 = vmatpush1.bf16.msra.mxu0 %v3198
      %3267 = vmatprep.subr.bf16.mxu0 0
      %3268 = vmatpush1.bf16.msra.mxu0 %v3197
      %3269 = vmatprep.subr.bf16.mxu0 0
      %3270 = vmatpush2.bf16.msra.mxu0 0
      %3271 = vmatprep.subr.bf16.mxu0 0
      %3272 = vmatpush2.bf16.msra.mxu0 0
      %3273 = vmatprep.subr.bf16.mxu0 0
      %3274 = vmatpush2.bf16.msra.mxu0 0
      %3275 = vmatprep.subr.bf16.mxu0 0
      %3276 = vmatpush2.bf16.msra.mxu0 0
      %3277 = vmatprep.subr.bf16.mxu0 0
      %3278 = vmatpush2.bf16.msra.mxu0 0
      %3279 = vmatprep.subr.bf16.mxu0 0
      %3280 = vmatpush2.bf16.msra.mxu0 0
      %3281 = vmatprep.subr.bf16.mxu0 0
      %3282 = vmatpush2.bf16.msra.mxu0 0
      %3283 = vmatprep.subr.bf16.mxu0 0
      %3284 = vmatpush2.bf16.msra.mxu0 0
      %3285 = vmatprep.mubr.bf16.mxu0 0
      %3286 = vmatmul.mubr.bf16.gmra.mxu0 %v3203
      %v3287 = vpop.f32.mrf.mxu0
      %v3288 = vadd.f32 %v3061, %v3287
      %v3289 = vpop.f32.mrf.mxu0
      %v3290 = vpop.f32.mrf.mxu0
      %v3291 = vadd.f32 %v3064, %v3290
      %v3292 = vpop.f32.mrf.mxu0
      %3293 = vmatprep.mubr.bf16.mxu0 0
      %3294 = vmatmul.mubr.bf16.gmra.mxu0 %v3206
      %v3295 = vpop.f32.mrf.mxu0
      %v3296 = vadd.f32 %v3069, %v3295
      %v3297 = vpop.f32.mrf.mxu0
      %v3298 = vpop.f32.mrf.mxu0
      %v3299 = vadd.f32 %v3072, %v3298
      %v3300 = vpop.f32.mrf.mxu0
      %3301 = vmatprep.mubr.bf16.mxu0 0
      %3302 = vmatmul.mubr.bf16.gmra.mxu0 %v3209
      %v3303 = vpop.f32.mrf.mxu0
      %v3304 = vadd.f32 %v3077, %v3303
      %v3305 = vpop.f32.mrf.mxu0
      %v3306 = vpop.f32.mrf.mxu0
      %v3307 = vadd.f32 %v3080, %v3306
      %v3308 = vpop.f32.mrf.mxu0
      %3309 = vmatprep.mubr.bf16.mxu0 0
      %3310 = vmatmul.mubr.bf16.gmra.mxu0 %v3212
      %v3311 = vpop.f32.mrf.mxu0
      %v3312 = vadd.f32 %v3085, %v3311
      %v3313 = vpop.f32.mrf.mxu0
      %v3314 = vpop.f32.mrf.mxu0
      %v3315 = vadd.f32 %v3088, %v3314
      %v3316 = vpop.f32.mrf.mxu0
      %3317 = vmatprep.mubr.bf16.mxu0 0
      %3318 = vmatmul.mubr.bf16.gmra.mxu0 %v3215
      %v3319 = vpop.f32.mrf.mxu0
      %v3320 = vadd.f32 %v3093, %v3319
      %v3321 = vpop.f32.mrf.mxu0
      %v3322 = vpop.f32.mrf.mxu0
      %v3323 = vadd.f32 %v3096, %v3322
      %v3324 = vpop.f32.mrf.mxu0
      %3325 = vmatprep.mubr.bf16.mxu0 0
      %3326 = vmatmul.mubr.bf16.gmra.mxu0 %v3218
      %v3327 = vpop.f32.mrf.mxu0
      %v3328 = vadd.f32 %v3101, %v3327
      %v3329 = vpop.f32.mrf.mxu0
      %v3330 = vpop.f32.mrf.mxu0
      %v3331 = vadd.f32 %v3104, %v3330
      %v3332 = vpop.f32.mrf.mxu0
      %3333 = vmatprep.mubr.bf16.mxu0 0
      %3334 = vmatmul.mubr.bf16.gmra.mxu0 %v3221
      %v3335 = vpop.f32.mrf.mxu0
      %v3336 = vadd.f32 %v3109, %v3335
      %v3337 = vpop.f32.mrf.mxu0
      %v3338 = vpop.f32.mrf.mxu0
      %v3339 = vadd.f32 %v3112, %v3338
      %v3340 = vpop.f32.mrf.mxu0
      %3341 = vmatprep.mubr.bf16.mxu0 0
      %3342 = vmatmul.mubr.bf16.gmra.mxu0 %v3224
      %v3343 = vpop.f32.mrf.mxu0
      %v3344 = vadd.f32 %v3117, %v3343
      %v3345 = vpop.f32.mrf.mxu0
      %v3346 = vpop.f32.mrf.mxu0
      %v3347 = vadd.f32 %v3120, %v3346
      %v3348 = vpop.f32.mrf.mxu0
      %3349 = vmatprep.mubr.bf16.mxu0 0
      %3350 = vmatmul.mubr.bf16.gmra.mxu0 %v3227
      %v3351 = vpop.f32.mrf.mxu0
      %v3352 = vadd.f32 %v3125, %v3351
      %v3353 = vpop.f32.mrf.mxu0
      %v3354 = vpop.f32.mrf.mxu0
      %v3355 = vadd.f32 %v3128, %v3354
      %v3356 = vpop.f32.mrf.mxu0
      %3357 = vmatprep.mubr.bf16.mxu0 0
      %3358 = vmatmul.mubr.bf16.gmra.mxu0 %v3230
      %v3359 = vpop.f32.mrf.mxu0
      %v3360 = vadd.f32 %v3133, %v3359
      %v3361 = vpop.f32.mrf.mxu0
      %v3362 = vpop.f32.mrf.mxu0
      %v3363 = vadd.f32 %v3136, %v3362
      %v3364 = vpop.f32.mrf.mxu0
      %3365 = vmatprep.mubr.bf16.mxu0 0
      %3366 = vmatmul.mubr.bf16.gmra.mxu0 %v3233
      %v3367 = vpop.f32.mrf.mxu0
      %v3368 = vadd.f32 %v3141, %v3367
      %v3369 = vpop.f32.mrf.mxu0
      %v3370 = vpop.f32.mrf.mxu0
      %v3371 = vadd.f32 %v3144, %v3370
      %v3372 = vpop.f32.mrf.mxu0
      %3373 = vmatprep.mubr.bf16.mxu0 0
      %3374 = vmatmul.mubr.bf16.gmra.mxu0 %v3236
      %v3375 = vpop.f32.mrf.mxu0
      %v3376 = vadd.f32 %v3149, %v3375
      %v3377 = vpop.f32.mrf.mxu0
      %v3378 = vpop.f32.mrf.mxu0
      %v3379 = vadd.f32 %v3152, %v3378
      %v3380 = vpop.f32.mrf.mxu0
      %3381 = vmatprep.mubr.bf16.mxu0 0
      %3382 = vmatmul.mubr.bf16.gmra.mxu0 %v3239
      %v3383 = vpop.f32.mrf.mxu0
      %v3384 = vadd.f32 %v3157, %v3383
      %v3385 = vpop.f32.mrf.mxu0
      %v3386 = vpop.f32.mrf.mxu0
      %v3387 = vadd.f32 %v3160, %v3386
      %v3388 = vpop.f32.mrf.mxu0
      %3389 = vmatprep.mubr.bf16.mxu0 0
      %3390 = vmatmul.mubr.bf16.gmra.mxu0 %v3242
      %v3391 = vpop.f32.mrf.mxu0
      %v3392 = vadd.f32 %v3165, %v3391
      %v3393 = vpop.f32.mrf.mxu0
      %v3394 = vpop.f32.mrf.mxu0
      %v3395 = vadd.f32 %v3168, %v3394
      %v3396 = vpop.f32.mrf.mxu0
      %3397 = vmatprep.mubr.bf16.mxu0 0
      %3398 = vmatmul.mubr.bf16.gmra.mxu0 %v3245
      %v3399 = vpop.f32.mrf.mxu0
      %v3400 = vadd.f32 %v3173, %v3399
      %v3401 = vpop.f32.mrf.mxu0
      %v3402 = vpop.f32.mrf.mxu0
      %v3403 = vadd.f32 %v3176, %v3402
      %v3404 = vpop.f32.mrf.mxu0
      %3405 = vmatprep.mubr.bf16.mxu0 0
      %3406 = vmatmul.mubr.bf16.gmra.mxu0 %v3248
      %v3407 = vpop.f32.mrf.mxu0
      %v3408 = vadd.f32 %v3181, %v3407
      %v3409 = vpop.f32.mrf.mxu0
      %v3410 = vpop.f32.mrf.mxu0
      %v3411 = vadd.f32 %v3184, %v3410
      %v3412 = vpop.f32.mrf.mxu0
      %3413 = vdwg.mxu0
      %v3414 = vmul.f32 %v806, %v2726
      %v3415 = vmul.f32 %v807, %v2730
      %v3416 = vmul.f32 %v808, %v2734
      %v3417 = vmul.f32 %v809, %v2738
      %v3418 = vmul.f32 %v810, %v2742
      %v3419 = vmul.f32 %v811, %v2746
      %v3420 = vmul.f32 %v812, %v2750
      %v3421 = vmul.f32 %v813, %v2754
      %v3422 = vmul.f32 %v814, %v2758
      %v3423 = vmul.f32 %v815, %v2762
      %v3424 = vmul.f32 %v816, %v2766
      %v3425 = vmul.f32 %v817, %v2770
      %v3426 = vmul.f32 %v818, %v2774
      %v3427 = vmul.f32 %v819, %v2778
      %v3428 = vmul.f32 %v820, %v2782
      %v3429 = vmul.f32 %v821, %v2786
      %v3430 = vmul.f32 %v822, %v2790
      %v3431 = vmul.f32 %v823, %v2794
      %v3432 = vmul.f32 %v824, %v2798
      %v3433 = vmul.f32 %v825, %v2802
      %v3434 = vmul.f32 %v826, %v2806
      %v3435 = vmul.f32 %v827, %v2810
      %v3436 = vmul.f32 %v828, %v2814
      %v3437 = vmul.f32 %v829, %v2818
      %v3438 = vmul.f32 %v830, %v2822
      %v3439 = vmul.f32 %v831, %v2826
      %v3440 = vmul.f32 %v832, %v2830
      %v3441 = vmul.f32 %v833, %v2834
      %v3442 = vmul.f32 %v834, %v2838
      %v3443 = vmul.f32 %v835, %v2842
      %v3444 = vmul.f32 %v804, %v2846
      %v3445 = vmul.f32 %v805, %v2850
      %v3446 = vpack.c.bf16 %v3415, %v3414
      %v3447 = vpack.c.bf16 %v3417, %v3416
      %v3448 = vpack.c.bf16 %v3419, %v3418
      %v3449 = vpack.c.bf16 %v3421, %v3420
      %v3450 = vpack.c.bf16 %v3423, %v3422
      %v3451 = vpack.c.bf16 %v3425, %v3424
      %v3452 = vpack.c.bf16 %v3427, %v3426
      %v3453 = vpack.c.bf16 %v3429, %v3428
      %v3454 = vpack.c.bf16 %v3431, %v3430
      %v3455 = vpack.c.bf16 %v3433, %v3432
      %v3456 = vpack.c.bf16 %v3435, %v3434
      %v3457 = vpack.c.bf16 %v3437, %v3436
      %v3458 = vpack.c.bf16 %v3439, %v3438
      %v3459 = vpack.c.bf16 %v3441, %v3440
      %v3460 = vpack.c.bf16 %v3443, %v3442
      %v3461 = vpack.c.bf16 %v3445, %v3444
      %s3462 = scalar_lea.vmem %s2, 160
      %v3463 = vld [vmem:[%s3462] sm:$0xf]
      %v3464 = vld [vmem:[%s3462 + $0x4] sm:$0xf]
      %v3465 = vld [vmem:[%s3462 + $0x8] sm:$0xf]
      %v3466 = vld [vmem:[%s3462 + $0xc] sm:$0xf]
      %v3467 = vld [vmem:[%s3462 + $0x10] sm:$0x1]
      %v3473 = vunpack.c.l.b16 %v3463
      %v3474 = vunpack.c.l.b16 %v3464
      %v3475 = vunpack.c.l.b16 %v3465
      %v3476 = vunpack.c.l.b16 %v3466
      %v3477 = vunpack.c.l.b16 %v3467
      %v3478 = vpack.c.b16 %v3474, %v3473
      %v3479 = vpack.c.b16 %v3476, %v3475
      %v3480 = vpack.c.b16 %v3477, %v3477
      %v3484 = vsel %vm944, %v3446, 0
      %v3487 = vsel %vm944, %v3447, 0
      %v3490 = vsel %vm944, %v3448, 0
      %v3493 = vsel %vm944, %v3449, 0
      %v3496 = vsel %vm944, %v3450, 0
      %v3499 = vsel %vm944, %v3451, 0
      %v3502 = vsel %vm944, %v3452, 0
      %v3505 = vsel %vm944, %v3453, 0
      %v3508 = vsel %vm944, %v3454, 0
      %v3511 = vsel %vm944, %v3455, 0
      %v3514 = vsel %vm944, %v3456, 0
      %v3517 = vsel %vm944, %v3457, 0
      %v3520 = vsel %vm944, %v3458, 0
      %v3523 = vsel %vm944, %v3459, 0
      %v3526 = vsel %vm944, %v3460, 0
      %v3529 = vsel %vm944, %v3461, 0
      %v3532 = vand.u32 %v3480, %v995
      %3534 = vmatprep.subr.bf16.mxu0 0
      %3535 = vmatpush1.bf16.msra.mxu0 0
      %3536 = vmatprep.subr.bf16.mxu0 0
      %3537 = vmatpush1.bf16.msra.mxu0 0
      %3538 = vmatprep.subr.bf16.mxu0 0
      %3539 = vmatpush1.bf16.msra.mxu0 0
      %3540 = vmatprep.subr.bf16.mxu0 0
      %3541 = vmatpush1.bf16.msra.mxu0 0
      %3542 = vmatprep.subr.bf16.mxu0 0
      %3543 = vmatpush1.bf16.msra.mxu0 0
      %3544 = vmatprep.subr.bf16.mxu0 0
      %3545 = vmatpush1.bf16.msra.mxu0 %v3532
      %3546 = vmatprep.subr.bf16.mxu0 0
      %3547 = vmatpush1.bf16.msra.mxu0 %v3479
      %3548 = vmatprep.subr.bf16.mxu0 0
      %3549 = vmatpush1.bf16.msra.mxu0 %v3478
      %3550 = vmatprep.subr.bf16.mxu0 0
      %3551 = vmatpush2.bf16.msra.mxu0 0
      %3552 = vmatprep.subr.bf16.mxu0 0
      %3553 = vmatpush2.bf16.msra.mxu0 0
      %3554 = vmatprep.subr.bf16.mxu0 0
      %3555 = vmatpush2.bf16.msra.mxu0 0
      %3556 = vmatprep.subr.bf16.mxu0 0
      %3557 = vmatpush2.bf16.msra.mxu0 0
      %3558 = vmatprep.subr.bf16.mxu0 0
      %3559 = vmatpush2.bf16.msra.mxu0 0
      %3560 = vmatprep.subr.bf16.mxu0 0
      %3561 = vmatpush2.bf16.msra.mxu0 0
      %3562 = vmatprep.subr.bf16.mxu0 0
      %3563 = vmatpush2.bf16.msra.mxu0 0
      %3564 = vmatprep.subr.bf16.mxu0 0
      %3565 = vmatpush2.bf16.msra.mxu0 0
      %3566 = vmatprep.mubr.bf16.mxu0 0
      %3567 = vmatmul.mubr.bf16.gmra.mxu0 %v3484
      %v3568 = vpop.f32.mrf.mxu0
      %v3569 = vadd.f32 0.0, %v3568
      %v3570 = vpop.f32.mrf.mxu0
      %v3571 = vpop.f32.mrf.mxu0
      %v3572 = vadd.f32 0.0, %v3571
      %v3573 = vpop.f32.mrf.mxu0
      %3574 = vmatprep.mubr.bf16.mxu0 0
      %3575 = vmatmul.mubr.bf16.gmra.mxu0 %v3487
      %v3576 = vpop.f32.mrf.mxu0
      %v3577 = vadd.f32 0.0, %v3576
      %v3578 = vpop.f32.mrf.mxu0
      %v3579 = vpop.f32.mrf.mxu0
      %v3580 = vadd.f32 0.0, %v3579
      %v3581 = vpop.f32.mrf.mxu0
      %3582 = vmatprep.mubr.bf16.mxu0 0
      %3583 = vmatmul.mubr.bf16.gmra.mxu0 %v3490
      %v3584 = vpop.f32.mrf.mxu0
      %v3585 = vadd.f32 0.0, %v3584
      %v3586 = vpop.f32.mrf.mxu0
      %v3587 = vpop.f32.mrf.mxu0
      %v3588 = vadd.f32 0.0, %v3587
      %v3589 = vpop.f32.mrf.mxu0
      %3590 = vmatprep.mubr.bf16.mxu0 0
      %3591 = vmatmul.mubr.bf16.gmra.mxu0 %v3493
      %v3592 = vpop.f32.mrf.mxu0
      %v3593 = vadd.f32 0.0, %v3592
      %v3594 = vpop.f32.mrf.mxu0
      %v3595 = vpop.f32.mrf.mxu0
      %v3596 = vadd.f32 0.0, %v3595
      %v3597 = vpop.f32.mrf.mxu0
      %3598 = vmatprep.mubr.bf16.mxu0 0
      %3599 = vmatmul.mubr.bf16.gmra.mxu0 %v3496
      %v3600 = vpop.f32.mrf.mxu0
      %v3601 = vadd.f32 0.0, %v3600
      %v3602 = vpop.f32.mrf.mxu0
      %v3603 = vpop.f32.mrf.mxu0
      %v3604 = vadd.f32 0.0, %v3603
      %v3605 = vpop.f32.mrf.mxu0
      %3606 = vmatprep.mubr.bf16.mxu0 0
      %3607 = vmatmul.mubr.bf16.gmra.mxu0 %v3499
      %v3608 = vpop.f32.mrf.mxu0
      %v3609 = vadd.f32 0.0, %v3608
      %v3610 = vpop.f32.mrf.mxu0
      %v3611 = vpop.f32.mrf.mxu0
      %v3612 = vadd.f32 0.0, %v3611
      %v3613 = vpop.f32.mrf.mxu0
      %3614 = vmatprep.mubr.bf16.mxu0 0
      %3615 = vmatmul.mubr.bf16.gmra.mxu0 %v3502
      %v3616 = vpop.f32.mrf.mxu0
      %v3617 = vadd.f32 0.0, %v3616
      %v3618 = vpop.f32.mrf.mxu0
      %v3619 = vpop.f32.mrf.mxu0
      %v3620 = vadd.f32 0.0, %v3619
      %v3621 = vpop.f32.mrf.mxu0
      %3622 = vmatprep.mubr.bf16.mxu0 0
      %3623 = vmatmul.mubr.bf16.gmra.mxu0 %v3505
      %v3624 = vpop.f32.mrf.mxu0
      %v3625 = vadd.f32 0.0, %v3624
      %v3626 = vpop.f32.mrf.mxu0
      %v3627 = vpop.f32.mrf.mxu0
      %v3628 = vadd.f32 0.0, %v3627
      %v3629 = vpop.f32.mrf.mxu0
      %3630 = vmatprep.mubr.bf16.mxu0 0
      %3631 = vmatmul.mubr.bf16.gmra.mxu0 %v3508
      %v3632 = vpop.f32.mrf.mxu0
      %v3633 = vadd.f32 0.0, %v3632
      %v3634 = vpop.f32.mrf.mxu0
      %v3635 = vpop.f32.mrf.mxu0
      %v3636 = vadd.f32 0.0, %v3635
      %v3637 = vpop.f32.mrf.mxu0
      %3638 = vmatprep.mubr.bf16.mxu0 0
      %3639 = vmatmul.mubr.bf16.gmra.mxu0 %v3511
      %v3640 = vpop.f32.mrf.mxu0
      %v3641 = vadd.f32 0.0, %v3640
      %v3642 = vpop.f32.mrf.mxu0
      %v3643 = vpop.f32.mrf.mxu0
      %v3644 = vadd.f32 0.0, %v3643
      %v3645 = vpop.f32.mrf.mxu0
      %3646 = vmatprep.mubr.bf16.mxu0 0
      %3647 = vmatmul.mubr.bf16.gmra.mxu0 %v3514
      %v3648 = vpop.f32.mrf.mxu0
      %v3649 = vadd.f32 0.0, %v3648
      %v3650 = vpop.f32.mrf.mxu0
      %v3651 = vpop.f32.mrf.mxu0
      %v3652 = vadd.f32 0.0, %v3651
      %v3653 = vpop.f32.mrf.mxu0
      %3654 = vmatprep.mubr.bf16.mxu0 0
      %3655 = vmatmul.mubr.bf16.gmra.mxu0 %v3517
      %v3656 = vpop.f32.mrf.mxu0
      %v3657 = vadd.f32 0.0, %v3656
      %v3658 = vpop.f32.mrf.mxu0
      %v3659 = vpop.f32.mrf.mxu0
      %v3660 = vadd.f32 0.0, %v3659
      %v3661 = vpop.f32.mrf.mxu0
      %3662 = vmatprep.mubr.bf16.mxu0 0
      %3663 = vmatmul.mubr.bf16.gmra.mxu0 %v3520
      %v3664 = vpop.f32.mrf.mxu0
      %v3665 = vadd.f32 0.0, %v3664
      %v3666 = vpop.f32.mrf.mxu0
      %v3667 = vpop.f32.mrf.mxu0
      %v3668 = vadd.f32 0.0, %v3667
      %v3669 = vpop.f32.mrf.mxu0
      %3670 = vmatprep.mubr.bf16.mxu0 0
      %3671 = vmatmul.mubr.bf16.gmra.mxu0 %v3523
      %v3672 = vpop.f32.mrf.mxu0
      %v3673 = vadd.f32 0.0, %v3672
      %v3674 = vpop.f32.mrf.mxu0
      %v3675 = vpop.f32.mrf.mxu0
      %v3676 = vadd.f32 0.0, %v3675
      %v3677 = vpop.f32.mrf.mxu0
      %3678 = vmatprep.mubr.bf16.mxu0 0
      %3679 = vmatmul.mubr.bf16.gmra.mxu0 %v3526
      %v3680 = vpop.f32.mrf.mxu0
      %v3681 = vadd.f32 0.0, %v3680
      %v3682 = vpop.f32.mrf.mxu0
      %v3683 = vpop.f32.mrf.mxu0
      %v3684 = vadd.f32 0.0, %v3683
      %v3685 = vpop.f32.mrf.mxu0
      %3686 = vmatprep.mubr.bf16.mxu0 0
      %3687 = vmatmul.mubr.bf16.gmra.mxu0 %v3529
      %v3688 = vpop.f32.mrf.mxu0
      %v3689 = vadd.f32 0.0, %v3688
      %v3690 = vpop.f32.mrf.mxu0
      %v3691 = vpop.f32.mrf.mxu0
      %v3692 = vadd.f32 0.0, %v3691
      %v3693 = vpop.f32.mrf.mxu0
      %3694 = vdwg.mxu0
      %v3695 = vadd.f32 %v3288, %v3569
      %v3696 = vadd.f32 %v3291, %v3572
      %v3697 = vadd.f32 %v3296, %v3577
      %v3698 = vadd.f32 %v3299, %v3580
      %v3699 = vadd.f32 %v3304, %v3585
      %v3700 = vadd.f32 %v3307, %v3588
      %v3701 = vadd.f32 %v3312, %v3593
      %v3702 = vadd.f32 %v3315, %v3596
      %v3703 = vadd.f32 %v3320, %v3601
      %v3704 = vadd.f32 %v3323, %v3604
      %v3705 = vadd.f32 %v3328, %v3609
      %v3706 = vadd.f32 %v3331, %v3612
      %v3707 = vadd.f32 %v3336, %v3617
      %v3708 = vadd.f32 %v3339, %v3620
      %v3709 = vadd.f32 %v3344, %v3625
      %v3710 = vadd.f32 %v3347, %v3628
      %v3711 = vadd.f32 %v3352, %v3633
      %v3712 = vadd.f32 %v3355, %v3636
      %v3713 = vadd.f32 %v3360, %v3641
      %v3714 = vadd.f32 %v3363, %v3644
      %v3715 = vadd.f32 %v3368, %v3649
      %v3716 = vadd.f32 %v3371, %v3652
      %v3717 = vadd.f32 %v3376, %v3657
      %v3718 = vadd.f32 %v3379, %v3660
      %v3719 = vadd.f32 %v3384, %v3665
      %v3720 = vadd.f32 %v3387, %v3668
      %v3721 = vadd.f32 %v3392, %v3673
      %v3722 = vadd.f32 %v3395, %v3676
      %v3723 = vadd.f32 %v3400, %v3681
      %v3724 = vadd.f32 %v3403, %v3684
      %v3725 = vadd.f32 %v3408, %v3689
      %v3726 = vadd.f32 %v3411, %v3692
      %v3727 = vadd.f32 %v2692, %v3695
      %v3728 = vadd.f32 %v2693, %v3696
      %v3729 = vadd.f32 %v2694, %v3697
      %v3730 = vadd.f32 %v2695, %v3698
      %v3731 = vadd.f32 %v2696, %v3699
      %v3732 = vadd.f32 %v2697, %v3700
      %v3733 = vadd.f32 %v2698, %v3701
      %v3734 = vadd.f32 %v2699, %v3702
      %v3735 = vadd.f32 %v2700, %v3703
      %v3736 = vadd.f32 %v2701, %v3704
      %v3737 = vadd.f32 %v2702, %v3705
      %v3738 = vadd.f32 %v2703, %v3706
      %v3739 = vadd.f32 %v2704, %v3707
      %v3740 = vadd.f32 %v2705, %v3708
      %v3741 = vadd.f32 %v2706, %v3709
      %v3742 = vadd.f32 %v2707, %v3710
      %v3743 = vadd.f32 %v2708, %v3711
      %v3744 = vadd.f32 %v2709, %v3712
      %v3745 = vadd.f32 %v2710, %v3713
      %v3746 = vadd.f32 %v2711, %v3714
      %v3747 = vadd.f32 %v2712, %v3715
      %v3748 = vadd.f32 %v2713, %v3716
      %v3749 = vadd.f32 %v2714, %v3717
      %v3750 = vadd.f32 %v2715, %v3718
      %v3751 = vadd.f32 %v2716, %v3719
      %v3752 = vadd.f32 %v2717, %v3720
      %v3753 = vadd.f32 %v2718, %v3721
      %v3754 = vadd.f32 %v2719, %v3722
      %v3755 = vadd.f32 %v2720, %v3723
      %v3756 = vadd.f32 %v2721, %v3724
      %v3757 = vadd.f32 %v2722, %v3725
      %v3758 = vadd.f32 %v2723, %v3726
      %v3759 = vmul.f32 %v3727, %v3727
      %v3760 = vmul.f32 %v3728, %v3728
      %v3761 = vmul.f32 %v3729, %v3729
      %v3762 = vmul.f32 %v3730, %v3730
      %v3763 = vmul.f32 %v3731, %v3731
      %v3764 = vmul.f32 %v3732, %v3732
      %v3765 = vmul.f32 %v3733, %v3733
      %v3766 = vmul.f32 %v3734, %v3734
      %v3767 = vmul.f32 %v3735, %v3735
      %v3768 = vmul.f32 %v3736, %v3736
      %v3769 = vmul.f32 %v3737, %v3737
      %v3770 = vmul.f32 %v3738, %v3738
      %v3771 = vmul.f32 %v3739, %v3739
      %v3772 = vmul.f32 %v3740, %v3740
      %v3773 = vmul.f32 %v3741, %v3741
      %v3774 = vmul.f32 %v3742, %v3742
      %v3775 = vmul.f32 %v3743, %v3743
      %v3776 = vmul.f32 %v3744, %v3744
      %v3777 = vmul.f32 %v3745, %v3745
      %v3778 = vmul.f32 %v3746, %v3746
      %v3779 = vmul.f32 %v3747, %v3747
      %v3780 = vmul.f32 %v3748, %v3748
      %v3781 = vmul.f32 %v3749, %v3749
      %v3782 = vmul.f32 %v3750, %v3750
      %v3783 = vmul.f32 %v3751, %v3751
      %v3784 = vmul.f32 %v3752, %v3752
      %v3785 = vmul.f32 %v3753, %v3753
      %v3786 = vmul.f32 %v3754, %v3754
      %v3787 = vmul.f32 %v3755, %v3755
      %v3788 = vmul.f32 %v3756, %v3756
      %v3789 = vmul.f32 %v3757, %v3757
      %v3790 = vmul.f32 %v3758, %v3758
      %v3791 = vmul.f32 %v3727, %v3759
      %v3792 = vmul.f32 %v3728, %v3760
      %v3793 = vmul.f32 %v3729, %v3761
      %v3794 = vmul.f32 %v3730, %v3762
      %v3795 = vmul.f32 %v3731, %v3763
      %v3796 = vmul.f32 %v3732, %v3764
      %v3797 = vmul.f32 %v3733, %v3765
      %v3798 = vmul.f32 %v3734, %v3766
      %v3799 = vmul.f32 %v3735, %v3767
      %v3800 = vmul.f32 %v3736, %v3768
      %v3801 = vmul.f32 %v3737, %v3769
      %v3802 = vmul.f32 %v3738, %v3770
      %v3803 = vmul.f32 %v3739, %v3771
      %v3804 = vmul.f32 %v3740, %v3772
      %v3805 = vmul.f32 %v3741, %v3773
      %v3806 = vmul.f32 %v3742, %v3774
      %v3807 = vmul.f32 %v3743, %v3775
      %v3808 = vmul.f32 %v3744, %v3776
      %v3809 = vmul.f32 %v3745, %v3777
      %v3810 = vmul.f32 %v3746, %v3778
      %v3811 = vmul.f32 %v3747, %v3779
      %v3812 = vmul.f32 %v3748, %v3780
      %v3813 = vmul.f32 %v3749, %v3781
      %v3814 = vmul.f32 %v3750, %v3782
      %v3815 = vmul.f32 %v3751, %v3783
      %v3816 = vmul.f32 %v3752, %v3784
      %v3817 = vmul.f32 %v3753, %v3785
      %v3818 = vmul.f32 %v3754, %v3786
      %v3819 = vmul.f32 %v3755, %v3787
      %v3820 = vmul.f32 %v3756, %v3788
      %v3821 = vmul.f32 %v3757, %v3789
      %v3822 = vmul.f32 %v3758, %v3790
      %v3823 = vmul.f32 %v3791, 0.044715
      %v3824 = vmul.f32 %v3792, 0.044715
      %v3825 = vmul.f32 %v3793, 0.044715
      %v3826 = vmul.f32 %v3794, 0.044715
      %v3827 = vmul.f32 %v3795, 0.044715
      %v3828 = vmul.f32 %v3796, 0.044715
      %v3829 = vmul.f32 %v3797, 0.044715
      %v3830 = vmul.f32 %v3798, 0.044715
      %v3831 = vmul.f32 %v3799, 0.044715
      %v3832 = vmul.f32 %v3800, 0.044715
      %v3833 = vmul.f32 %v3801, 0.044715
      %v3834 = vmul.f32 %v3802, 0.044715
      %v3835 = vmul.f32 %v3803, 0.044715
      %v3836 = vmul.f32 %v3804, 0.044715
      %v3837 = vmul.f32 %v3805, 0.044715
      %v3838 = vmul.f32 %v3806, 0.044715
      %v3839 = vmul.f32 %v3807, 0.044715
      %v3840 = vmul.f32 %v3808, 0.044715
      %v3841 = vmul.f32 %v3809, 0.044715
      %v3842 = vmul.f32 %v3810, 0.044715
      %v3843 = vmul.f32 %v3811, 0.044715
      %v3844 = vmul.f32 %v3812, 0.044715
      %v3845 = vmul.f32 %v3813, 0.044715
      %v3846 = vmul.f32 %v3814, 0.044715
      %v3847 = vmul.f32 %v3815, 0.044715
      %v3848 = vmul.f32 %v3816, 0.044715
      %v3849 = vmul.f32 %v3817, 0.044715
      %v3850 = vmul.f32 %v3818, 0.044715
      %v3851 = vmul.f32 %v3819, 0.044715
      %v3852 = vmul.f32 %v3820, 0.044715
      %v3853 = vmul.f32 %v3821, 0.044715
      %v3854 = vmul.f32 %v3822, 0.044715
      %v3855 = vadd.f32 %v3727, %v3823
      %v3856 = vadd.f32 %v3728, %v3824
      %v3857 = vadd.f32 %v3729, %v3825
      %v3858 = vadd.f32 %v3730, %v3826
      %v3859 = vadd.f32 %v3731, %v3827
      %v3860 = vadd.f32 %v3732, %v3828
      %v3861 = vadd.f32 %v3733, %v3829
      %v3862 = vadd.f32 %v3734, %v3830
      %v3863 = vadd.f32 %v3735, %v3831
      %v3864 = vadd.f32 %v3736, %v3832
      %v3865 = vadd.f32 %v3737, %v3833
      %v3866 = vadd.f32 %v3738, %v3834
      %v3867 = vadd.f32 %v3739, %v3835
      %v3868 = vadd.f32 %v3740, %v3836
      %v3869 = vadd.f32 %v3741, %v3837
      %v3870 = vadd.f32 %v3742, %v3838
      %v3871 = vadd.f32 %v3743, %v3839
      %v3872 = vadd.f32 %v3744, %v3840
      %v3873 = vadd.f32 %v3745, %v3841
      %v3874 = vadd.f32 %v3746, %v3842
      %v3875 = vadd.f32 %v3747, %v3843
      %v3876 = vadd.f32 %v3748, %v3844
      %v3877 = vadd.f32 %v3749, %v3845
      %v3878 = vadd.f32 %v3750, %v3846
      %v3879 = vadd.f32 %v3751, %v3847
      %v3880 = vadd.f32 %v3752, %v3848
      %v3881 = vadd.f32 %v3753, %v3849
      %v3882 = vadd.f32 %v3754, %v3850
      %v3883 = vadd.f32 %v3755, %v3851
      %v3884 = vadd.f32 %v3756, %v3852
      %v3885 = vadd.f32 %v3757, %v3853
      %v3886 = vadd.f32 %v3758, %v3854
      %v3887 = vmul.f32 %v3855, 0.7978846
      %v3888 = vmul.f32 %v3856, 0.7978846
      %v3889 = vmul.f32 %v3857, 0.7978846
      %v3890 = vmul.f32 %v3858, 0.7978846
      %v3891 = vmul.f32 %v3859, 0.7978846
      %v3892 = vmul.f32 %v3860, 0.7978846
      %v3893 = vmul.f32 %v3861, 0.7978846
      %v3894 = vmul.f32 %v3862, 0.7978846
      %v3895 = vmul.f32 %v3863, 0.7978846
      %v3896 = vmul.f32 %v3864, 0.7978846
      %v3897 = vmul.f32 %v3865, 0.7978846
      %v3898 = vmul.f32 %v3866, 0.7978846
      %v3899 = vmul.f32 %v3867, 0.7978846
      %v3900 = vmul.f32 %v3868, 0.7978846
      %v3901 = vmul.f32 %v3869, 0.7978846
      %v3902 = vmul.f32 %v3870, 0.7978846
      %v3903 = vmul.f32 %v3871, 0.7978846
      %v3904 = vmul.f32 %v3872, 0.7978846
      %v3905 = vmul.f32 %v3873, 0.7978846
      %v3906 = vmul.f32 %v3874, 0.7978846
      %v3907 = vmul.f32 %v3875, 0.7978846
      %v3908 = vmul.f32 %v3876, 0.7978846
      %v3909 = vmul.f32 %v3877, 0.7978846
      %v3910 = vmul.f32 %v3878, 0.7978846
      %v3911 = vmul.f32 %v3879, 0.7978846
      %v3912 = vmul.f32 %v3880, 0.7978846
      %v3913 = vmul.f32 %v3881, 0.7978846
      %v3914 = vmul.f32 %v3882, 0.7978846
      %v3915 = vmul.f32 %v3883, 0.7978846
      %v3916 = vmul.f32 %v3884, 0.7978846
      %v3917 = vmul.f32 %v3885, 0.7978846
      %v3918 = vmul.f32 %v3886, 0.7978846
      %v3919 = vtanh.pop %v3887
      %v3920 = vtanh.pop %v3888
      %v3921 = vtanh.pop %v3889
      %v3922 = vtanh.pop %v3890
      %v3923 = vtanh.pop %v3891
      %v3924 = vtanh.pop %v3892
      %v3925 = vtanh.pop %v3893
      %v3926 = vtanh.pop %v3894
      %v3927 = vtanh.pop %v3895
      %v3928 = vtanh.pop %v3896
      %v3929 = vtanh.pop %v3897
      %v3930 = vtanh.pop %v3898
      %v3931 = vtanh.pop %v3899
      %v3932 = vtanh.pop %v3900
      %v3933 = vtanh.pop %v3901
      %v3934 = vtanh.pop %v3902
      %v3935 = vtanh.pop %v3903
      %v3936 = vtanh.pop %v3904
      %v3937 = vtanh.pop %v3905
      %v3938 = vtanh.pop %v3906
      %v3939 = vtanh.pop %v3907
      %v3940 = vtanh.pop %v3908
      %v3941 = vtanh.pop %v3909
      %v3942 = vtanh.pop %v3910
      %v3943 = vtanh.pop %v3911
      %v3944 = vtanh.pop %v3912
      %v3945 = vtanh.pop %v3913
      %v3946 = vtanh.pop %v3914
      %v3947 = vtanh.pop %v3915
      %v3948 = vtanh.pop %v3916
      %v3949 = vtanh.pop %v3917
      %v3950 = vtanh.pop %v3918
      %v3951 = vadd.f32 %v3919, 1.0
      %v3952 = vadd.f32 %v3920, 1.0
      %v3953 = vadd.f32 %v3921, 1.0
      %v3954 = vadd.f32 %v3922, 1.0
      %v3955 = vadd.f32 %v3923, 1.0
      %v3956 = vadd.f32 %v3924, 1.0
      %v3957 = vadd.f32 %v3925, 1.0
      %v3958 = vadd.f32 %v3926, 1.0
      %v3959 = vadd.f32 %v3927, 1.0
      %v3960 = vadd.f32 %v3928, 1.0
      %v3961 = vadd.f32 %v3929, 1.0
      %v3962 = vadd.f32 %v3930, 1.0
      %v3963 = vadd.f32 %v3931, 1.0
      %v3964 = vadd.f32 %v3932, 1.0
      %v3965 = vadd.f32 %v3933, 1.0
      %v3966 = vadd.f32 %v3934, 1.0
      %v3967 = vadd.f32 %v3935, 1.0
      %v3968 = vadd.f32 %v3936, 1.0
      %v3969 = vadd.f32 %v3937, 1.0
      %v3970 = vadd.f32 %v3938, 1.0
      %v3971 = vadd.f32 %v3939, 1.0
      %v3972 = vadd.f32 %v3940, 1.0
      %v3973 = vadd.f32 %v3941, 1.0
      %v3974 = vadd.f32 %v3942, 1.0
      %v3975 = vadd.f32 %v3943, 1.0
      %v3976 = vadd.f32 %v3944, 1.0
      %v3977 = vadd.f32 %v3945, 1.0
      %v3978 = vadd.f32 %v3946, 1.0
      %v3979 = vadd.f32 %v3947, 1.0
      %v3980 = vadd.f32 %v3948, 1.0
      %v3981 = vadd.f32 %v3949, 1.0
      %v3982 = vadd.f32 %v3950, 1.0
      %v3983 = vmul.f32 %v3951, 0.5
      %v3984 = vmul.f32 %v3952, 0.5
      %v3985 = vmul.f32 %v3953, 0.5
      %v3986 = vmul.f32 %v3954, 0.5
      %v3987 = vmul.f32 %v3955, 0.5
      %v3988 = vmul.f32 %v3956, 0.5
      %v3989 = vmul.f32 %v3957, 0.5
      %v3990 = vmul.f32 %v3958, 0.5
      %v3991 = vmul.f32 %v3959, 0.5
      %v3992 = vmul.f32 %v3960, 0.5
      %v3993 = vmul.f32 %v3961, 0.5
      %v3994 = vmul.f32 %v3962, 0.5
      %v3995 = vmul.f32 %v3963, 0.5
      %v3996 = vmul.f32 %v3964, 0.5
      %v3997 = vmul.f32 %v3965, 0.5
      %v3998 = vmul.f32 %v3966, 0.5
      %v3999 = vmul.f32 %v3967, 0.5
      %v4000 = vmul.f32 %v3968, 0.5
      %v4001 = vmul.f32 %v3969, 0.5
      %v4002 = vmul.f32 %v3970, 0.5
      %v4003 = vmul.f32 %v3971, 0.5
      %v4004 = vmul.f32 %v3972, 0.5
      %v4005 = vmul.f32 %v3973, 0.5
      %v4006 = vmul.f32 %v3974, 0.5
      %v4007 = vmul.f32 %v3975, 0.5
      %v4008 = vmul.f32 %v3976, 0.5
      %v4009 = vmul.f32 %v3977, 0.5
      %v4010 = vmul.f32 %v3978, 0.5
      %v4011 = vmul.f32 %v3979, 0.5
      %v4012 = vmul.f32 %v3980, 0.5
      %v4013 = vmul.f32 %v3981, 0.5
      %v4014 = vmul.f32 %v3982, 0.5
      %v4015 = vmul.f32 %v3727, %v3983
      %v4016 = vmul.f32 %v3728, %v3984
      %v4017 = vmul.f32 %v3729, %v3985
      %v4018 = vmul.f32 %v3730, %v3986
      %v4019 = vmul.f32 %v3731, %v3987
      %v4020 = vmul.f32 %v3732, %v3988
      %v4021 = vmul.f32 %v3733, %v3989
      %v4022 = vmul.f32 %v3734, %v3990
      %v4023 = vmul.f32 %v3735, %v3991
      %v4024 = vmul.f32 %v3736, %v3992
      %v4025 = vmul.f32 %v3737, %v3993
      %v4026 = vmul.f32 %v3738, %v3994
      %v4027 = vmul.f32 %v3739, %v3995
      %v4028 = vmul.f32 %v3740, %v3996
      %v4029 = vmul.f32 %v3741, %v3997
      %v4030 = vmul.f32 %v3742, %v3998
      %v4031 = vmul.f32 %v3743, %v3999
      %v4032 = vmul.f32 %v3744, %v4000
      %v4033 = vmul.f32 %v3745, %v4001
      %v4034 = vmul.f32 %v3746, %v4002
      %v4035 = vmul.f32 %v3747, %v4003
      %v4036 = vmul.f32 %v3748, %v4004
      %v4037 = vmul.f32 %v3749, %v4005
      %v4038 = vmul.f32 %v3750, %v4006
      %v4039 = vmul.f32 %v3751, %v4007
      %v4040 = vmul.f32 %v3752, %v4008
      %v4041 = vmul.f32 %v3753, %v4009
      %v4042 = vmul.f32 %v3754, %v4010
      %v4043 = vmul.f32 %v3755, %v4011
      %v4044 = vmul.f32 %v3756, %v4012
      %v4045 = vmul.f32 %v3757, %v4013
      %v4046 = vmul.f32 %v3758, %v4014
      %v4047 = vpack.c.bf16 %v4016, %v4015
      %v4048 = vpack.c.bf16 %v4018, %v4017
      %v4049 = vpack.c.bf16 %v4020, %v4019
      %v4050 = vpack.c.bf16 %v4022, %v4021
      %v4051 = vpack.c.bf16 %v4024, %v4023
      %v4052 = vpack.c.bf16 %v4026, %v4025
      %v4053 = vpack.c.bf16 %v4028, %v4027
      %v4054 = vpack.c.bf16 %v4030, %v4029
      %v4055 = vpack.c.bf16 %v4032, %v4031
      %v4056 = vpack.c.bf16 %v4034, %v4033
      %v4057 = vpack.c.bf16 %v4036, %v4035
      %v4058 = vpack.c.bf16 %v4038, %v4037
      %v4059 = vpack.c.bf16 %v4040, %v4039
      %v4060 = vpack.c.bf16 %v4042, %v4041
      %v4061 = vpack.c.bf16 %v4044, %v4043
      %v4062 = vpack.c.bf16 %v4046, %v4045
      %v4063 = vld [vmem:[%s4] sm:$0xf]
      %v4064 = vld [vmem:[%s4 + $0x4] sm:$0xf]
      %v4065 = vld [vmem:[%s4 + $0x8] sm:$0xf]
      %v4066 = vld [vmem:[%s4 + $0xc] sm:$0xf]
      %v4067 = vld [vmem:[%s4 + $0x10] sm:$0xf]
      %v4068 = vld [vmem:[%s4 + $0x14] sm:$0xf]
      %v4069 = vld [vmem:[%s4 + $0x18] sm:$0xf]
      %v4070 = vld [vmem:[%s4 + $0x1c] sm:$0xf]
      %v4071 = vld [vmem:[%s5] sm:$0x1]
      %v4073 = vlaneseq
      %v4074 = vshrl.u32 %v4073, 7
      %v4075 = vsub.s32 0, %v4074
      %v4076 = vrot.slane %v4071, %v4075
      %v4086 = vunpack.c.l.b16 %v4063
      %v4087 = vunpack.c.l.b16 %v4064
      %v4088 = vunpack.c.l.b16 %v4065
      %v4089 = vunpack.c.l.b16 %v4066
      %v4090 = vunpack.c.l.b16 %v4067
      %v4091 = vunpack.c.l.b16 %v4068
      %v4092 = vunpack.c.l.b16 %v4069
      %v4093 = vunpack.c.l.b16 %v4070
      %v4094 = vpack.c.b16 %v4087, %v4086
      %v4095 = vpack.c.b16 %v4089, %v4088
      %v4096 = vpack.c.b16 %v4091, %v4090
      %v4097 = vpack.c.b16 %v4093, %v4092
      %vm4102 = vcmask 523264
      %v4104 = vsel %vm4102, %v4047, 0
      %v4107 = vsel %vm4102, %v4048, 0
      %v4110 = vsel %vm4102, %v4049, 0
      %v4113 = vsel %vm4102, %v4050, 0
      %v4116 = vsel %vm4102, %v4051, 0
      %v4119 = vsel %vm4102, %v4052, 0
      %v4122 = vsel %vm4102, %v4053, 0
      %v4125 = vsel %vm4102, %v4054, 0
      %v4128 = vsel %vm4102, %v4055, 0
      %v4131 = vsel %vm4102, %v4056, 0
      %v4134 = vsel %vm4102, %v4057, 0
      %v4137 = vsel %vm4102, %v4058, 0
      %v4140 = vsel %vm4102, %v4059, 0
      %v4143 = vsel %vm4102, %v4060, 0
      %v4146 = vsel %vm4102, %v4061, 0
      %v4149 = vsel %vm4102, %v4062, 0
      %4151 = vmatprep.subr.bf16.mxu0 0
      %4152 = vmatpush1.bf16.msra.mxu0 0
      %4153 = vmatprep.subr.bf16.mxu0 0
      %4154 = vmatpush1.bf16.msra.mxu0 0
      %4155 = vmatprep.subr.bf16.mxu0 0
      %4156 = vmatpush1.bf16.msra.mxu0 0
      %4157 = vmatprep.subr.bf16.mxu0 0
      %4158 = vmatpush1.bf16.msra.mxu0 0
      %4159 = vmatprep.subr.bf16.mxu0 0
      %4160 = vmatpush1.bf16.msra.mxu0 %v4097
      %4161 = vmatprep.subr.bf16.mxu0 0
      %4162 = vmatpush1.bf16.msra.mxu0 %v4096
      %4163 = vmatprep.subr.bf16.mxu0 0
      %4164 = vmatpush1.bf16.msra.mxu0 %v4095
      %4165 = vmatprep.subr.bf16.mxu0 0
      %4166 = vmatpush1.bf16.msra.mxu0 %v4094
      %4167 = vmatprep.subr.bf16.mxu0 0
      %4168 = vmatpush2.bf16.msra.mxu0 0
      %4169 = vmatprep.subr.bf16.mxu0 0
      %4170 = vmatpush2.bf16.msra.mxu0 0
      %4171 = vmatprep.subr.bf16.mxu0 0
      %4172 = vmatpush2.bf16.msra.mxu0 0
      %4173 = vmatprep.subr.bf16.mxu0 0
      %4174 = vmatpush2.bf16.msra.mxu0 0
      %4175 = vmatprep.subr.bf16.mxu0 0
      %4176 = vmatpush2.bf16.msra.mxu0 0
      %4177 = vmatprep.subr.bf16.mxu0 0
      %4178 = vmatpush2.bf16.msra.mxu0 0
      %4179 = vmatprep.subr.bf16.mxu0 0
      %4180 = vmatpush2.bf16.msra.mxu0 0
      %4181 = vmatprep.subr.bf16.mxu0 0
      %4182 = vmatpush2.bf16.msra.mxu0 0
      %4183 = vmatprep.mubr.bf16.mxu0 0
      %4184 = vmatmul.mubr.bf16.gmra.mxu0 %v4104
      %v4185 = vpop.f32.mrf.mxu0
      %v4186 = vadd.f32 %v4076, %v4185
      %v4187 = vpop.f32.mrf.mxu0
      %v4188 = vpop.f32.mrf.mxu0
      %v4189 = vadd.f32 %v4076, %v4188
      %v4190 = vpop.f32.mrf.mxu0
      %4191 = vmatprep.mubr.bf16.mxu0 0
      %4192 = vmatmul.mubr.bf16.gmra.mxu0 %v4107
      %v4193 = vpop.f32.mrf.mxu0
      %v4194 = vadd.f32 %v4076, %v4193
      %v4195 = vpop.f32.mrf.mxu0
      %v4196 = vpop.f32.mrf.mxu0
      %v4197 = vadd.f32 %v4076, %v4196
      %v4198 = vpop.f32.mrf.mxu0
      %4199 = vmatprep.mubr.bf16.mxu0 0
      %4200 = vmatmul.mubr.bf16.gmra.mxu0 %v4110
      %v4201 = vpop.f32.mrf.mxu0
      %v4202 = vadd.f32 %v4076, %v4201
      %v4203 = vpop.f32.mrf.mxu0
      %v4204 = vpop.f32.mrf.mxu0
      %v4205 = vadd.f32 %v4076, %v4204
      %v4206 = vpop.f32.mrf.mxu0
      %4207 = vmatprep.mubr.bf16.mxu0 0
      %4208 = vmatmul.mubr.bf16.gmra.mxu0 %v4113
      %v4209 = vpop.f32.mrf.mxu0
      %v4210 = vadd.f32 %v4076, %v4209
      %v4211 = vpop.f32.mrf.mxu0
      %v4212 = vpop.f32.mrf.mxu0
      %v4213 = vadd.f32 %v4076, %v4212
      %v4214 = vpop.f32.mrf.mxu0
      %4215 = vmatprep.mubr.bf16.mxu0 0
      %4216 = vmatmul.mubr.bf16.gmra.mxu0 %v4116
      %v4217 = vpop.f32.mrf.mxu0
      %v4218 = vadd.f32 %v4076, %v4217
      %v4219 = vpop.f32.mrf.mxu0
      %v4220 = vpop.f32.mrf.mxu0
      %v4221 = vadd.f32 %v4076, %v4220
      %v4222 = vpop.f32.mrf.mxu0
      %4223 = vmatprep.mubr.bf16.mxu0 0
      %4224 = vmatmul.mubr.bf16.gmra.mxu0 %v4119
      %v4225 = vpop.f32.mrf.mxu0
      %v4226 = vadd.f32 %v4076, %v4225
      %v4227 = vpop.f32.mrf.mxu0
      %v4228 = vpop.f32.mrf.mxu0
      %v4229 = vadd.f32 %v4076, %v4228
      %v4230 = vpop.f32.mrf.mxu0
      %4231 = vmatprep.mubr.bf16.mxu0 0
      %4232 = vmatmul.mubr.bf16.gmra.mxu0 %v4122
      %v4233 = vpop.f32.mrf.mxu0
      %v4234 = vadd.f32 %v4076, %v4233
      %v4235 = vpop.f32.mrf.mxu0
      %v4236 = vpop.f32.mrf.mxu0
      %v4237 = vadd.f32 %v4076, %v4236
      %v4238 = vpop.f32.mrf.mxu0
      %4239 = vmatprep.mubr.bf16.mxu0 0
      %4240 = vmatmul.mubr.bf16.gmra.mxu0 %v4125
      %v4241 = vpop.f32.mrf.mxu0
      %v4242 = vadd.f32 %v4076, %v4241
      %v4243 = vpop.f32.mrf.mxu0
      %v4244 = vpop.f32.mrf.mxu0
      %v4245 = vadd.f32 %v4076, %v4244
      %v4246 = vpop.f32.mrf.mxu0
      %4247 = vmatprep.mubr.bf16.mxu0 0
      %4248 = vmatmul.mubr.bf16.gmra.mxu0 %v4128
      %v4249 = vpop.f32.mrf.mxu0
      %v4250 = vadd.f32 %v4076, %v4249
      %v4251 = vpop.f32.mrf.mxu0
      %v4252 = vpop.f32.mrf.mxu0
      %v4253 = vadd.f32 %v4076, %v4252
      %v4254 = vpop.f32.mrf.mxu0
      %4255 = vmatprep.mubr.bf16.mxu0 0
      %4256 = vmatmul.mubr.bf16.gmra.mxu0 %v4131
      %v4257 = vpop.f32.mrf.mxu0
      %v4258 = vadd.f32 %v4076, %v4257
      %v4259 = vpop.f32.mrf.mxu0
      %v4260 = vpop.f32.mrf.mxu0
      %v4261 = vadd.f32 %v4076, %v4260
      %v4262 = vpop.f32.mrf.mxu0
      %4263 = vmatprep.mubr.bf16.mxu0 0
      %4264 = vmatmul.mubr.bf16.gmra.mxu0 %v4134
      %v4265 = vpop.f32.mrf.mxu0
      %v4266 = vadd.f32 %v4076, %v4265
      %v4267 = vpop.f32.mrf.mxu0
      %v4268 = vpop.f32.mrf.mxu0
      %v4269 = vadd.f32 %v4076, %v4268
      %v4270 = vpop.f32.mrf.mxu0
      %4271 = vmatprep.mubr.bf16.mxu0 0
      %4272 = vmatmul.mubr.bf16.gmra.mxu0 %v4137
      %v4273 = vpop.f32.mrf.mxu0
      %v4274 = vadd.f32 %v4076, %v4273
      %v4275 = vpop.f32.mrf.mxu0
      %v4276 = vpop.f32.mrf.mxu0
      %v4277 = vadd.f32 %v4076, %v4276
      %v4278 = vpop.f32.mrf.mxu0
      %4279 = vmatprep.mubr.bf16.mxu0 0
      %4280 = vmatmul.mubr.bf16.gmra.mxu0 %v4140
      %v4281 = vpop.f32.mrf.mxu0
      %v4282 = vadd.f32 %v4076, %v4281
      %v4283 = vpop.f32.mrf.mxu0
      %v4284 = vpop.f32.mrf.mxu0
      %v4285 = vadd.f32 %v4076, %v4284
      %v4286 = vpop.f32.mrf.mxu0
      %4287 = vmatprep.mubr.bf16.mxu0 0
      %4288 = vmatmul.mubr.bf16.gmra.mxu0 %v4143
      %v4289 = vpop.f32.mrf.mxu0
      %v4290 = vadd.f32 %v4076, %v4289
      %v4291 = vpop.f32.mrf.mxu0
      %v4292 = vpop.f32.mrf.mxu0
      %v4293 = vadd.f32 %v4076, %v4292
      %v4294 = vpop.f32.mrf.mxu0
      %4295 = vmatprep.mubr.bf16.mxu0 0
      %4296 = vmatmul.mubr.bf16.gmra.mxu0 %v4146
      %v4297 = vpop.f32.mrf.mxu0
      %v4298 = vadd.f32 %v4076, %v4297
      %v4299 = vpop.f32.mrf.mxu0
      %v4300 = vpop.f32.mrf.mxu0
      %v4301 = vadd.f32 %v4076, %v4300
      %v4302 = vpop.f32.mrf.mxu0
      %4303 = vmatprep.mubr.bf16.mxu0 0
      %4304 = vmatmul.mubr.bf16.gmra.mxu0 %v4149
      %v4305 = vpop.f32.mrf.mxu0
      %v4306 = vadd.f32 %v4076, %v4305
      %v4307 = vpop.f32.mrf.mxu0
      %v4308 = vpop.f32.mrf.mxu0
      %v4309 = vadd.f32 %v4076, %v4308
      %v4310 = vpop.f32.mrf.mxu0
      %4311 = vdwg.mxu0
      %vm4312 = vcmask 261120
      %4313 = vst.msk [vmem:[%s253] sm:$0xff] %vm4312, %v4186
      %4314 = vst.msk [vmem:[%s253 + $0x8] sm:$0xff] %vm4312, %v4189
      %4315 = vst.msk [vmem:[%s253 + $0x10] sm:$0xff] %vm4312, %v4194
      %4316 = vst.msk [vmem:[%s253 + $0x18] sm:$0xff] %vm4312, %v4197
      %4317 = vst.msk [vmem:[%s253 + $0x20] sm:$0xff] %vm4312, %v4202
      %4318 = vst.msk [vmem:[%s253 + $0x28] sm:$0xff] %vm4312, %v4205
      %4319 = vst.msk [vmem:[%s253 + $0x30] sm:$0xff] %vm4312, %v4210
      %4320 = vst.msk [vmem:[%s253 + $0x38] sm:$0xff] %vm4312, %v4213
      %4321 = vst.msk [vmem:[%s253 + $0x40] sm:$0xff] %vm4312, %v4218
      %4322 = vst.msk [vmem:[%s253 + $0x48] sm:$0xff] %vm4312, %v4221
      %4323 = vst.msk [vmem:[%s253 + $0x50] sm:$0xff] %vm4312, %v4226
      %4324 = vst.msk [vmem:[%s253 + $0x58] sm:$0xff] %vm4312, %v4229
      %4325 = vst.msk [vmem:[%s253 + $0x60] sm:$0xff] %vm4312, %v4234
      %4326 = vst.msk [vmem:[%s253 + $0x68] sm:$0xff] %vm4312, %v4237
      %4327 = vst.msk [vmem:[%s253 + $0x70] sm:$0xff] %vm4312, %v4242
      %4328 = vst.msk [vmem:[%s253 + $0x78] sm:$0xff] %vm4312, %v4245
      %4329 = vst.msk [vmem:[%s253 + $0x80] sm:$0xff] %vm4312, %v4250
      %4330 = vst.msk [vmem:[%s253 + $0x88] sm:$0xff] %vm4312, %v4253
      %4331 = vst.msk [vmem:[%s253 + $0x90] sm:$0xff] %vm4312, %v4258
      %4332 = vst.msk [vmem:[%s253 + $0x98] sm:$0xff] %vm4312, %v4261
      %4333 = vst.msk [vmem:[%s253 + $0xa0] sm:$0xff] %vm4312, %v4266
      %4334 = vst.msk [vmem:[%s253 + $0xa8] sm:$0xff] %vm4312, %v4269
      %4335 = vst.msk [vmem:[%s253 + $0xb0] sm:$0xff] %vm4312, %v4274
      %4336 = vst.msk [vmem:[%s253 + $0xb8] sm:$0xff] %vm4312, %v4277
      %4337 = vst.msk [vmem:[%s253 + $0xc0] sm:$0xff] %vm4312, %v4282
      %4338 = vst.msk [vmem:[%s253 + $0xc8] sm:$0xff] %vm4312, %v4285
      %4339 = vst.msk [vmem:[%s253 + $0xd0] sm:$0xff] %vm4312, %v4290
      %4340 = vst.msk [vmem:[%s253 + $0xd8] sm:$0xff] %vm4312, %v4293
      %4341 = vst.msk [vmem:[%s253 + $0xe0] sm:$0xff] %vm4312, %v4298
      %4342 = vst.msk [vmem:[%s253 + $0xe8] sm:$0xff] %vm4312, %v4301
      %4343 = vst.msk [vmem:[%s253 + $0xf0] sm:$0xff] %vm4312, %v4306
      %4344 = vst.msk [vmem:[%s253 + $0xf8] sm:$0xff] %vm4312, %v4309
      %s4345 = smul.u32 32, %s17
      %p4346 = scmp.lt.s32.totalorder %s4345, 63
      %s4347 = scalar_select %p4346, %s4345, 63
      %s4348 = smul.addr %s4347, 8
      %s4349 = scalar_lea.vmem %s6, %s4348
      // Predicated region
      $region45: #{tpu_custom_call.1} parent=43 // pred_check
        %p4350 = pneg %p166
      $region46: #{tpu_custom_call.1} parent=43 // pred_check_branch
        %4352 = sbr.rel (%p4350) target = $region48
      $region47: #{tpu_custom_call.1} parent=43 // pred_region
        %s4353 = smul.u32 32, %s17
      $region48: #{tpu_custom_call.1} parent=43 // pred_fallthru
        _
    $region44: #{tpu_custom_call.1} parent=5 // pred_fallthru
      _
    %p4354 = scmp.le.s32.totalorder 2, %s12
    // Predicated region
    $region49: #{tpu_custom_call.1} parent=5 // pred_check
      %p4355 = pneg %p4354
    $region50: #{tpu_custom_call.1} parent=5 // pred_check_branch
      %4357 = sbr.rel (%p4355) target = $region52
    $region51: #{tpu_custom_call.1} parent=5 // pred_region
      %s4358 = ssub.s32 %s12, 2
      // Predicated region
      $region53: #{tpu_custom_call.1} parent=51 // pred_check
        %p4359 = pneg %p172
      $region54: #{tpu_custom_call.1} parent=51 // pred_check_branch
        %4361 = sbr.rel (%p4359) target = $region56
      $region55: #{tpu_custom_call.1} parent=51 // pred_region
        %s4362 = smul.u32 32, %s18
        %p4363 = scmp.lt.s32.totalorder %s4362, 63
        %s4364 = scalar_select %p4363, %s4362, 63
        %s4365 = smul.addr %s4364, 8
        %s4366 = scalar_lea.vmem %s6, %s4365
      $region56: #{tpu_custom_call.1} parent=51 // pred_fallthru
        _
    $region52: #{tpu_custom_call.1} parent=5 // pred_fallthru
      _
  $region6: #{tpu_custom_call.1} parent=0 // loop_footer
    %s16 = sadd.s32 1, %s12
  $region7: #{tpu_custom_call.1} parent=0 // loop_footer_branch
    %11 = sbr.rel target = $region3
  $region8: #{tpu_custom_call.1} parent=0 // loop_exit
    _

</llo_original>
